<compile_context>
chip_gen: v5e
topology: v5e:2x2
jax: 0.10.0
libtpu: 0.0.40
codegen_flags: <defaults>
</compile_context>

<pallas_src>
import numpy as np
import jax
import jax.numpy as jnp
from jax import lax
from jax.experimental import pallas as pl
from jax.experimental.pallas import tpu as pltpu

IMG_W = 1600 * 0.25   # 400.0
IMG_H = 900 * 0.25    # 225.0

# Static voxel-grid geometry (module constants).
VOX_ORIGIN = (-50.0, -50.0, -5.0)
SCENE_SIZE = (100.0, 100.0, 8.0)
VOXEL_SIZE = 0.5
VOL_DIM = tuple(int(np.ceil(s / VOXEL_SIZE)) for s in SCENE_SIZE)   # (200, 200, 16)

NX, NY, NZ = VOL_DIM                   # 200, 200, 16
NZ_MASK = NZ - 1                       # 15
NZ_SHIFT = int(np.log2(NZ))            # 4
assert (1 << NZ_SHIFT) == NZ

COLS = NY * NZ                         # 3200  (multiple of 128)
ROWS = NX                              # 200
BLOCK_ROWS = 32                        # multiple of 32 -> dense int8 tiles
ROWS_PAD = ((ROWS + BLOCK_ROWS - 1) // BLOCK_ROWS) * BLOCK_ROWS   # 224
N_VOX = NX * NY * NZ                   # 640000


def _project_kernel(m_ref, b_ref, proj_ref, mask_ref):
    # m_ref:    (3, 3) f32 in SMEM, M = K @ R^T
    # b_ref:    (3,)   f32 in SMEM, b = -M @ T
    # proj_ref: (2, BLOCK_ROWS, COLS) f32 in VMEM  (u, v pixel coords)
    # mask_ref: (BLOCK_ROWS, COLS)    i8  in VMEM  (fov mask, 0/1)
    row0 = pl.program_id(0) * BLOCK_ROWS

    # In-kernel voxel index generation: flat layout is (ix, iy, iz) C-order,
    # reshaped to rows = ix, cols = iy*NZ + iz.
    ix_i = lax.broadcasted_iota(jnp.int32, (BLOCK_ROWS, COLS), 0) + row0
    c_i = lax.broadcasted_iota(jnp.int32, (BLOCK_ROWS, COLS), 1)
    iy_i = jnp.right_shift(c_i, NZ_SHIFT)     # c // 16
    iz_i = jnp.bitwise_and(c_i, NZ_MASK)      # c %  16

    half = VOXEL_SIZE * 0.5
    x = VOX_ORIGIN[0] + VOXEL_SIZE * ix_i.astype(jnp.float32) + half
    y = VOX_ORIGIN[1] + VOXEL_SIZE * iy_i.astype(jnp.float32) + half
    z = VOX_ORIGIN[2] + VOXEL_SIZE * iz_i.astype(jnp.float32) + half

    # Fused affine map: cam = M @ p + b  (VPU elementwise, scalars from SMEM).
    cx = m_ref[0, 0] * x + m_ref[0, 1] * y + m_ref[0, 2] * z + b_ref[0]
    cy = m_ref[1, 0] * x + m_ref[1, 1] * y + m_ref[1, 2] * z + b_ref[1]
    cz = m_ref[2, 0] * x + m_ref[2, 1] * y + m_ref[2, 2] * z + b_ref[2]

    # One EUP reciprocal + Newton refinement instead of two VPU divides.
    r = pl.reciprocal(cz, approx=True)
    r = r * (2.0 - cz * r)
    u = cx * r
    v = cy * r

    proj_ref[0, :, :] = u
    proj_ref[1, :, :] = v

    fov = (cz > 0.0) & (u >= 0.0) & (u < IMG_W) & (v >= 0.0) & (v < IMG_H)
    mask_ref[:, :] = fov.astype(jnp.int8)


def vox2pix_pallas(intrinsic, R, T):
    intrinsic = jnp.asarray(intrinsic, jnp.float32)
    R = jnp.asarray(R, jnp.float32)
    T = jnp.asarray(T, jnp.float32)

    # Fold (p - T) -> R^T -> K into a single affine map: cam = M @ p + b.
    M = intrinsic @ R.T
    b = -(M @ T)

    grid = (ROWS_PAD // BLOCK_ROWS,)   # 7 steps

    proj, mask = pl.pallas_call(
        _project_kernel,
        out_shape=(
            jax.ShapeDtypeStruct((2, ROWS_PAD, COLS), jnp.float32),
            jax.ShapeDtypeStruct((ROWS_PAD, COLS), jnp.int8),
        ),
        grid=grid,
        in_specs=[
            pl.BlockSpec(memory_space=pltpu.MemorySpace.SMEM),   # M (3,3)
            pl.BlockSpec(memory_space=pltpu.MemorySpace.SMEM),   # b (3,)
        ],
        out_specs=(
            pl.BlockSpec((2, BLOCK_ROWS, COLS), lambda i: (0, i, 0)),
            pl.BlockSpec((BLOCK_ROWS, COLS), lambda i: (i, 0)),
        ),
        compiler_params=pltpu.CompilerParams(
            dimension_semantics=("parallel",)),
    )(M, b)

    # API-parity relayout (PyTorch reference returns (N, 2) and (N,) bool).
    projected_pix = proj.reshape(2, ROWS_PAD * COLS)[:, :N_VOX].T   # (N, 2) f32
    fov_mask = mask.reshape(-1)[:N_VOX].astype(jnp.bool_)           # (N,)   bool
    return fov_mask, projected_pix


class DatasetProPallas:
    """JAX/Pallas port of Dataset_Pro.forward (module has no learned weights)."""

    def __init__(self, frustum_size=4):
        self.frustum_size = frustum_size
        self.vox_origin = np.array(VOX_ORIGIN)
        self.scene_size = SCENE_SIZE
        self.voxel_size = VOXEL_SIZE
        self.img_W = IMG_W
        self.img_H = IMG_H
        self._fn = jax.jit(vox2pix_pallas)

    def forward(self, Intrinsic, R, T):
        fov_mask, projected_pix = self._fn(Intrinsic, R, T)
        return {"projected_pix": projected_pix, "fov_mask": fov_mask}


def _vox2pix_ref(cam_k, vox_origin, voxel_size, W, H, scene_size, R, T):
    # pure-numpy re-implementation of the PyTorch reference (for verification)
    vol_dim = np.ceil(np.asarray(scene_size) / voxel_size).astype(int)
    xv, yv, zv = np.meshgrid(range(vol_dim[0]), range(vol_dim[1]),
                             range(vol_dim[2]), indexing="ij")
    vox_coords = np.concatenate(
        [xv.reshape(1, -1), yv.reshape(1, -1), zv.reshape(1, -1)], axis=0
    ).astype(np.float32).T
    cam_pts = (vox_origin.astype(np.float32)[None, :]
               + voxel_size * vox_coords + voxel_size * 0.5)
    p = cam_pts.T.astype(np.float32)                        # (3, N)
    p = p - np.asarray(T, np.float32)[:, None]
    p = np.asarray(R, np.float32).T @ p
    p = np.asarray(cam_k, np.float32) @ p
    p[:2] /= p[2:3]
    pts = p.T
    projected_pix = pts[:, 0:2]
    fov_mask = ((pts[:, 2] > 0) & (pts[:, 0] >= 0) & (pts[:, 0] < W)
                & (pts[:, 1] >= 0) & (pts[:, 1] < H))
    return fov_mask, projected_pix


if __name__ == "__main__":
    key = jax.random.PRNGKey(0)
    k1, k2, k3 = jax.random.split(key, 3)

    # deterministic example inputs: a realistic (scaled) pinhole intrinsic,
    # a camera-to-ego rotation looking along ego +x with a small random
    # perturbation, and a small random translation.
    Intrinsic = jnp.array([[316.0, 0.0, 200.0],
                           [0.0, 316.0, 112.0],
                           [0.0, 0.0, 1.0]], dtype=jnp.float32)
    Intrinsic = Intrinsic + 0.01 * jax.random.normal(k1, (3, 3), dtype=jnp.float32)

    base_R = jnp.array([[0.0, 0.0, 1.0],
                        [-1.0, 0.0, 0.0],
                        [0.0, -1.0, 0.0]], dtype=jnp.float32)
    a = jax.random.uniform(k2, (3,), minval=-0.05, maxval=0.05)
    ca, sa = jnp.cos(a), jnp.sin(a)
    Rx = jnp.array([[1.0, 0.0, 0.0], [0.0, ca[0], -sa[0]], [0.0, sa[0], ca[0]]], dtype=jnp.float32)
    Ry = jnp.array([[ca[1], 0.0, sa[1]], [0.0, 1.0, 0.0], [-sa[1], 0.0, ca[1]]], dtype=jnp.float32)
    Rz = jnp.array([[ca[2], -sa[2], 0.0], [sa[2], ca[2], 0.0], [0.0, 0.0, 1.0]], dtype=jnp.float32)
    R = base_R @ (Rz @ Ry @ Rx)
    T = (jnp.array([0.5, 0.2, 1.8], dtype=jnp.float32)
         + 0.1 * jax.random.normal(k3, (3,), dtype=jnp.float32))

    model = DatasetProPallas()
    data = model.forward(Intrinsic, R, T)
    jax.block_until_ready(data)

    # lightweight correctness check against the numpy reference semantics
    ref_mask, ref_pix = _vox2pix_ref(np.asarray(Intrinsic), model.vox_origin,
                                     model.voxel_size, model.img_W, model.img_H,
                                     model.scene_size, np.asarray(R), np.asarray(T))
    got_mask = np.asarray(data["fov_mask"])
    got_pix = np.asarray(data["projected_pix"])
    assert got_pix.shape == ref_pix.shape and got_mask.shape == ref_mask.shape
    mask_mismatch = int((got_mask != ref_mask).sum())
    assert mask_mismatch < 64, f"fov_mask mismatch count {mask_mismatch}"
    both = got_mask & ref_mask
    assert np.allclose(got_pix[both], ref_pix[both], rtol=1e-3, atol=1e-1), \
        "projected_pix mismatch"
    print("KERNEL_OK")
</pallas_src>

<mosaic_0001>
module attributes {stable_mosaic.version = 11 : i64} {
  func.func @_project_kernel(%arg0: i32, %arg1: memref<3x3xf32, #tpu.memory_space<smem>>, %arg2: memref<3xf32, #tpu.memory_space<smem>>, %arg3: memref<2x32x3200xf32, #tpu.memory_space<vmem>>, %arg4: memref<32x3200xi8, #tpu.memory_space<vmem>>) attributes {dimension_semantics = [#tpu.dimension_semantics<parallel>], iteration_bounds = array<i64: 7>, scalar_prefetch = 0 : i64, scratch_operands = 0 : i64, tpu.core_type = #tpu.core_type<tc>, window_params = [{transform_indices = @transform_0, window_bounds = array<i64: 3, 3>}, {transform_indices = @transform_1, window_bounds = array<i64: 3>}, {transform_indices = @transform_2, window_bounds = array<i64: 2, 32, 3200>}, {transform_indices = @transform_3, window_bounds = array<i64: 32, 3200>}]} {
    %c32_i32 = arith.constant 32 : i32
    %0 = arith.muli %arg0, %c32_i32 : i32
    %1 = tpu.iota {dimensions = array<i32: 0>} : vector<32x3200xi32>
    %2 = vector.broadcast %0 : i32 to vector<32x3200xi32>
    %3 = arith.addi %1, %2 : vector<32x3200xi32>
    %4 = tpu.iota {dimensions = array<i32: 1>} : vector<32x3200xi32>
    %c4_i32 = arith.constant 4 : i32
    %5 = vector.broadcast %c4_i32 : i32 to vector<32x3200xi32>
    %6 = arith.shrsi %4, %5 : vector<32x3200xi32>
    %c15_i32 = arith.constant 15 : i32
    %7 = vector.broadcast %c15_i32 : i32 to vector<32x3200xi32>
    %8 = arith.andi %4, %7 : vector<32x3200xi32>
    %9 = arith.sitofp %3 : vector<32x3200xi32> to vector<32x3200xf32>
    %cst = arith.constant 5.000000e-01 : f32
    %10 = vector.broadcast %cst : f32 to vector<32x3200xf32>
    %11 = arith.mulf %10, %9 : vector<32x3200xf32>
    %cst_0 = arith.constant -5.000000e+01 : f32
    %12 = vector.broadcast %cst_0 : f32 to vector<32x3200xf32>
    %13 = arith.addf %12, %11 : vector<32x3200xf32>
    %cst_1 = arith.constant 2.500000e-01 : f32
    %14 = vector.broadcast %cst_1 : f32 to vector<32x3200xf32>
    %15 = arith.addf %13, %14 : vector<32x3200xf32>
    %16 = arith.sitofp %6 : vector<32x3200xi32> to vector<32x3200xf32>
    %cst_2 = arith.constant 5.000000e-01 : f32
    %17 = vector.broadcast %cst_2 : f32 to vector<32x3200xf32>
    %18 = arith.mulf %17, %16 : vector<32x3200xf32>
    %cst_3 = arith.constant -5.000000e+01 : f32
    %19 = vector.broadcast %cst_3 : f32 to vector<32x3200xf32>
    %20 = arith.addf %19, %18 : vector<32x3200xf32>
    %cst_4 = arith.constant 2.500000e-01 : f32
    %21 = vector.broadcast %cst_4 : f32 to vector<32x3200xf32>
    %22 = arith.addf %20, %21 : vector<32x3200xf32>
    %23 = arith.sitofp %8 : vector<32x3200xi32> to vector<32x3200xf32>
    %cst_5 = arith.constant 5.000000e-01 : f32
    %24 = vector.broadcast %cst_5 : f32 to vector<32x3200xf32>
    %25 = arith.mulf %24, %23 : vector<32x3200xf32>
    %cst_6 = arith.constant -5.000000e+00 : f32
    %26 = vector.broadcast %cst_6 : f32 to vector<32x3200xf32>
    %27 = arith.addf %26, %25 : vector<32x3200xf32>
    %cst_7 = arith.constant 2.500000e-01 : f32
    %28 = vector.broadcast %cst_7 : f32 to vector<32x3200xf32>
    %29 = arith.addf %27, %28 : vector<32x3200xf32>
    %c0 = arith.constant 0 : index
    %c0_8 = arith.constant 0 : index
    %30 = memref.load %arg1[%c0, %c0_8] : memref<3x3xf32, #tpu.memory_space<smem>>
    %31 = vector.broadcast %30 : f32 to vector<32x3200xf32>
    %32 = arith.mulf %31, %15 : vector<32x3200xf32>
    %c0_9 = arith.constant 0 : index
    %c1 = arith.constant 1 : index
    %33 = memref.load %arg1[%c0_9, %c1] : memref<3x3xf32, #tpu.memory_space<smem>>
    %34 = vector.broadcast %33 : f32 to vector<32x3200xf32>
    %35 = arith.mulf %34, %22 : vector<32x3200xf32>
    %36 = arith.addf %32, %35 : vector<32x3200xf32>
    %c0_10 = arith.constant 0 : index
    %c2 = arith.constant 2 : index
    %37 = memref.load %arg1[%c0_10, %c2] : memref<3x3xf32, #tpu.memory_space<smem>>
    %38 = vector.broadcast %37 : f32 to vector<32x3200xf32>
    %39 = arith.mulf %38, %29 : vector<32x3200xf32>
    %40 = arith.addf %36, %39 : vector<32x3200xf32>
    %c0_11 = arith.constant 0 : index
    %41 = memref.load %arg2[%c0_11] : memref<3xf32, #tpu.memory_space<smem>>
    %42 = vector.broadcast %41 : f32 to vector<32x3200xf32>
    %43 = arith.addf %40, %42 : vector<32x3200xf32>
    %c1_12 = arith.constant 1 : index
    %c0_13 = arith.constant 0 : index
    %44 = memref.load %arg1[%c1_12, %c0_13] : memref<3x3xf32, #tpu.memory_space<smem>>
    %45 = vector.broadcast %44 : f32 to vector<32x3200xf32>
    %46 = arith.mulf %45, %15 : vector<32x3200xf32>
    %c1_14 = arith.constant 1 : index
    %c1_15 = arith.constant 1 : index
    %47 = memref.load %arg1[%c1_14, %c1_15] : memref<3x3xf32, #tpu.memory_space<smem>>
    %48 = vector.broadcast %47 : f32 to vector<32x3200xf32>
    %49 = arith.mulf %48, %22 : vector<32x3200xf32>
    %50 = arith.addf %46, %49 : vector<32x3200xf32>
    %c1_16 = arith.constant 1 : index
    %c2_17 = arith.constant 2 : index
    %51 = memref.load %arg1[%c1_16, %c2_17] : memref<3x3xf32, #tpu.memory_space<smem>>
    %52 = vector.broadcast %51 : f32 to vector<32x3200xf32>
    %53 = arith.mulf %52, %29 : vector<32x3200xf32>
    %54 = arith.addf %50, %53 : vector<32x3200xf32>
    %c1_18 = arith.constant 1 : index
    %55 = memref.load %arg2[%c1_18] : memref<3xf32, #tpu.memory_space<smem>>
    %56 = vector.broadcast %55 : f32 to vector<32x3200xf32>
    %57 = arith.addf %54, %56 : vector<32x3200xf32>
    %c2_19 = arith.constant 2 : index
    %c0_20 = arith.constant 0 : index
    %58 = memref.load %arg1[%c2_19, %c0_20] : memref<3x3xf32, #tpu.memory_space<smem>>
    %59 = vector.broadcast %58 : f32 to vector<32x3200xf32>
    %60 = arith.mulf %59, %15 : vector<32x3200xf32>
    %c2_21 = arith.constant 2 : index
    %c1_22 = arith.constant 1 : index
    %61 = memref.load %arg1[%c2_21, %c1_22] : memref<3x3xf32, #tpu.memory_space<smem>>
    %62 = vector.broadcast %61 : f32 to vector<32x3200xf32>
    %63 = arith.mulf %62, %22 : vector<32x3200xf32>
    %64 = arith.addf %60, %63 : vector<32x3200xf32>
    %c2_23 = arith.constant 2 : index
    %c2_24 = arith.constant 2 : index
    %65 = memref.load %arg1[%c2_23, %c2_24] : memref<3x3xf32, #tpu.memory_space<smem>>
    %66 = vector.broadcast %65 : f32 to vector<32x3200xf32>
    %67 = arith.mulf %66, %29 : vector<32x3200xf32>
    %68 = arith.addf %64, %67 : vector<32x3200xf32>
    %c2_25 = arith.constant 2 : index
    %69 = memref.load %arg2[%c2_25] : memref<3xf32, #tpu.memory_space<smem>>
    %70 = vector.broadcast %69 : f32 to vector<32x3200xf32>
    %71 = arith.addf %68, %70 : vector<32x3200xf32>
    %72 = tpu.reciprocal %71 {approx = true} : vector<32x3200xf32> -> vector<32x3200xf32>
    %73 = arith.mulf %71, %72 : vector<32x3200xf32>
    %cst_26 = arith.constant 2.000000e+00 : f32
    %74 = vector.broadcast %cst_26 : f32 to vector<32x3200xf32>
    %75 = arith.subf %74, %73 : vector<32x3200xf32>
    %76 = arith.mulf %72, %75 : vector<32x3200xf32>
    %77 = arith.mulf %43, %76 : vector<32x3200xf32>
    %78 = arith.mulf %57, %76 : vector<32x3200xf32>
    %c0_27 = arith.constant 0 : index
    %c0_28 = arith.constant 0 : index
    %c0_29 = arith.constant 0 : index
    %79 = vector.load %arg3[%c0_27, %c0_28, %c0_29] : memref<2x32x3200xf32, #tpu.memory_space<vmem>>, vector<1x32x3200xf32>
    %80 = vector.shape_cast %79 : vector<1x32x3200xf32> to vector<32x3200xf32>
    %81 = vector.shape_cast %77 : vector<32x3200xf32> to vector<1x32x3200xf32>
    tpu.vector_store %arg3[%c0_27, %c0_28, %c0_29], %81 {strides = array<i32>} : memref<2x32x3200xf32, #tpu.memory_space<vmem>>, vector<1x32x3200xf32>,
    %c1_30 = arith.constant 1 : index
    %c0_31 = arith.constant 0 : index
    %c0_32 = arith.constant 0 : index
    %82 = vector.load %arg3[%c1_30, %c0_31, %c0_32] : memref<2x32x3200xf32, #tpu.memory_space<vmem>>, vector<1x32x3200xf32>
    %83 = vector.shape_cast %82 : vector<1x32x3200xf32> to vector<32x3200xf32>
    %84 = vector.shape_cast %78 : vector<32x3200xf32> to vector<1x32x3200xf32>
    tpu.vector_store %arg3[%c1_30, %c0_31, %c0_32], %84 {strides = array<i32>} : memref<2x32x3200xf32, #tpu.memory_space<vmem>>, vector<1x32x3200xf32>,
    %cst_33 = arith.constant 0.000000e+00 : f32
    %85 = vector.broadcast %cst_33 : f32 to vector<32x3200xf32>
    %86 = arith.cmpf ogt, %71, %85 : vector<32x3200xf32>
    %cst_34 = arith.constant 0.000000e+00 : f32
    %87 = vector.broadcast %cst_34 : f32 to vector<32x3200xf32>
    %88 = arith.cmpf oge, %77, %87 : vector<32x3200xf32>
    %89 = arith.andi %86, %88 : vector<32x3200xi1>
    %cst_35 = arith.constant 4.000000e+02 : f32
    %90 = vector.broadcast %cst_35 : f32 to vector<32x3200xf32>
    %91 = arith.cmpf olt, %77, %90 : vector<32x3200xf32>
    %92 = arith.andi %89, %91 : vector<32x3200xi1>
    %cst_36 = arith.constant 0.000000e+00 : f32
    %93 = vector.broadcast %cst_36 : f32 to vector<32x3200xf32>
    %94 = arith.cmpf oge, %78, %93 : vector<32x3200xf32>
    %95 = arith.andi %92, %94 : vector<32x3200xi1>
    %cst_37 = arith.constant 2.250000e+02 : f32
    %96 = vector.broadcast %cst_37 : f32 to vector<32x3200xf32>
    %97 = arith.cmpf olt, %78, %96 : vector<32x3200xf32>
    %98 = arith.andi %95, %97 : vector<32x3200xi1>
    %99 = arith.extui %98 : vector<32x3200xi1> to vector<32x3200xi8>
    %c0_38 = arith.constant 0 : index
    %c0_39 = arith.constant 0 : index
    %100 = vector.load %arg4[%c0_38, %c0_39] : memref<32x3200xi8, #tpu.memory_space<vmem>>, vector<32x3200xi8>
    tpu.vector_store %arg4[%c0_38, %c0_39], %99 {strides = array<i32>} : memref<32x3200xi8, #tpu.memory_space<vmem>>, vector<32x3200xi8>,
    return
  }
  func.func @transform_0(%arg0: i32) -> (i32, i32) {
    %c0_i32 = arith.constant 0 : i32
    %c0_i32_0 = arith.constant 0 : i32
    %c0_i32_1 = arith.constant 0 : i32
    return %c0_i32, %c0_i32_0 : i32, i32
  }
  func.func @transform_1(%arg0: i32) -> i32 {
    %c0_i32 = arith.constant 0 : i32
    %c0_i32_0 = arith.constant 0 : i32
    return %c0_i32 : i32
  }
  func.func @transform_2(%arg0: i32) -> (i32, i32, i32) {
    %c0_i32 = arith.constant 0 : i32
    %c0_i32_0 = arith.constant 0 : i32
    %c0_i32_1 = arith.constant 0 : i32
    return %c0_i32, %arg0, %c0_i32_0 : i32, i32, i32
  }
  func.func @transform_3(%arg0: i32) -> (i32, i32) {
    %c0_i32 = arith.constant 0 : i32
    %c0_i32_0 = arith.constant 0 : i32
    return %arg0, %c0_i32 : i32, i32
  }
}

</mosaic_0001>

<llo_original>
// kernel: neg.1
$region0: #{neg.1}
  #allocation0 [shape = 's32[1]{0}', space=sflag, size = 0x4, scoped, tag = 'scoped memory for neg.1']
  %s0 = inlined_call_operand.vmem [shape: f32[3], index: 0, kind: input, shape index: {}]
  %s1 = inlined_call_operand.vmem [shape: f32[3], index: 1, kind: output, shape index: {}]
  %v2 = vld [vmem:[%s0] sm:$0x1]
  %3 = xla_tuple %v2
  %4 = xla_tuple %3
  %v5 = vxor.u32 %v2, 2147483648
  %6 = xla_tuple %v5
  %7 = vst [vmem:[%s1] sm:$0x1] %v5

// kernel: vox2pix_pallas.1
$region0: #{vox2pix_pallas.1}
  #allocation0 [shape = 'u32[]', space=smem, size = 0x4, offset = 0x4, fixed_abs, tag = 'smem constant byte address 0x4 - core index']
  #allocation1 [shape = 'u32[72,128]{1,0:T(1,128)}', space=vmem, size = 0x9000, scoped, tag = 'internal scratch']
  %s0 = inlined_call_operand.vmem [shape: f32[3,3], index: 0, kind: input, shape index: {}]
  %s1 = inlined_call_operand.vmem [shape: f32[3], index: 1, kind: input, shape index: {}]
  %s2 = inlined_call_operand.vmem [shape: f32[2,224,3200], index: 2, kind: output, shape index: {0}]
  %s3 = inlined_call_operand.vmem [shape: s8[224,3200], index: 3, kind: output, shape index: {1}]
  %4 = xla_tuple %s2, %s3
  %s5 = sld [smem:[#allocation0]]
  $region76: #{vox2pix_pallas.1} parent=0
    _
  %s7 = ssub.s32 1, %s5
  %s8 = scalar_select 0, %s7, %s5
  $region1: #{vox2pix_pallas.1} parent=0
    #allocation2 [shape = 'u8[2048]{0}', space=smem, size = 0x800, scoped, tag = 'input window, operand 0, single buffered']
    #allocation3 [shape = 's32[2]{0}', space=sflag, size = 0x8, scoped, tag = 'scoped memory for vox2pix_pallas.1']
    #allocation4 [shape = 'u8[512]{0}', space=smem, size = 0x200, scoped, tag = 'input window, operand 1, single buffered']
    #allocation5 [shape = 's32[1]{0}', space=sflag, size = 0x4, scoped, tag = 'scoped memory for vox2pix_pallas.1']
    #allocation6 [shape = 'u8[1638400]{0}', space=vmem, size = 0x190000, scoped, tag = 'output window, operand 0']
    %9 = vsyncpa [#allocation3], 0
    %10 = vsyncpa [#allocation5], 0
    loop: start=0, step=1, limit=9
    $region2: #{vox2pix_pallas.1} parent=1 // loop_pre_header
      _
    $region3: #{vox2pix_pallas.1} parent=1 // loop_header
      %s12 = sphi 0, %s16
      %p13 = scmp.ge.s32.totalorder %s12, 9
      %s20 = sphi 0, %s20
      %s22 = sphi 0, %s20
      %s23 = sphi 0, %s22
      %s37 = sphi 0, %s23
      %s41 = sphi 0, %s41
      %s43 = sphi 0, %s41
      %s44 = sphi 0, %s43
      %s58 = sphi 0, %s44
      %s64 = sphi 0, %s66
      %s67 = sphi 0, %s64
      %s68 = sphi 0, %s67
      %s84 = sphi 0, %s68
      %s90 = sphi 0, %s92
      %s93 = sphi 0, %s90
      %s94 = sphi 0, %s93
      %s110 = sphi 0, %s94
    $region4: #{vox2pix_pallas.1} parent=1 // loop_header_branch
      %15 = sbr.rel (%p13) target = $region8
    $region5: #{vox2pix_pallas.1} parent=1 // loop_body
      %s17 = ssub.s32 %s12, 1
      %s18 = ssub.s32 %s12, 2
      %s19 = sadd.s32 %s12, 1
      %s21 = sadd.s32 %s20, 1
      %p24 = scmp.eq.s32.totalorder %s12, 6
      %p25 = scmp.ne.s32.totalorder %s20, %s22
      %p26 = scmp.eq.s32.totalorder %s12, 0
      %p27 = por %p25, %p26
      %p28 = scmp.ne.s32.totalorder %s20, %s22
      %p29 = scmp.eq.s32.totalorder %s17, 6
      %p30 = por %p28, %p29
      %p31 = scmp.ne.s32.totalorder %s22, %s23
      %p32 = scmp.eq.s32.totalorder %s17, 0
      %p33 = por %p31, %p32
      %p34 = scmp.ne.s32.totalorder %s22, %s23
      %p35 = scmp.eq.s32.totalorder %s18, 6
      %p36 = por %p34, %p35
      %p38 = scmp.ne.s32.totalorder %s23, %s37
      %p39 = scmp.eq.s32.totalorder %s18, 0
      %p40 = por %p38, %p39
      %s42 = sadd.s32 %s41, 1
      %p45 = scmp.eq.s32.totalorder %s12, 6
      %p46 = scmp.ne.s32.totalorder %s41, %s43
      %p47 = scmp.eq.s32.totalorder %s12, 0
      %p48 = por %p46, %p47
      %p49 = scmp.ne.s32.totalorder %s41, %s43
      %p50 = scmp.eq.s32.totalorder %s17, 6
      %p51 = por %p49, %p50
      %p52 = scmp.ne.s32.totalorder %s43, %s44
      %p53 = scmp.eq.s32.totalorder %s17, 0
      %p54 = por %p52, %p53
      %p55 = scmp.ne.s32.totalorder %s43, %s44
      %p56 = scmp.eq.s32.totalorder %s18, 6
      %p57 = por %p55, %p56
      %p59 = scmp.ne.s32.totalorder %s44, %s58
      %p60 = scmp.eq.s32.totalorder %s18, 0
      %p61 = por %p59, %p60
      %s62 = ssub.s32 %s12, %s19
      %p63 = scmp.eq.s32.totalorder %s62, 0
      %s65 = sadd.s32 %s64, 1
      %s66 = scalar_select %p63, %s64, %s65
      %p69 = pneg %p63
      %p70 = scmp.eq.s32.totalorder %s12, 6
      %p71 = por %p69, %p70
      %p72 = scmp.ne.s32.totalorder %s64, %s67
      %p73 = scmp.eq.s32.totalorder %s12, 0
      %p74 = por %p72, %p73
      %p75 = scmp.ne.s32.totalorder %s64, %s67
      %p76 = scmp.eq.s32.totalorder %s17, 6
      %p77 = por %p75, %p76
      %p78 = scmp.ne.s32.totalorder %s67, %s68
      %p79 = scmp.eq.s32.totalorder %s17, 0
      %p80 = por %p78, %p79
      %p81 = scmp.ne.s32.totalorder %s67, %s68
      %p82 = scmp.eq.s32.totalorder %s18, 6
      %p83 = por %p81, %p82
      %p85 = scmp.ne.s32.totalorder %s68, %s84
      %p86 = scmp.eq.s32.totalorder %s18, 0
      %p87 = por %p85, %p86
      %s88 = ssub.s32 %s12, %s19
      %p89 = scmp.eq.s32.totalorder %s88, 0
      %s91 = sadd.s32 %s90, 1
      %s92 = scalar_select %p89, %s90, %s91
      %p95 = pneg %p89
      %p96 = scmp.eq.s32.totalorder %s12, 6
      %p97 = por %p95, %p96
      %p98 = scmp.ne.s32.totalorder %s90, %s93
      %p99 = scmp.eq.s32.totalorder %s12, 0
      %p100 = por %p98, %p99
      %p101 = scmp.ne.s32.totalorder %s90, %s93
      %p102 = scmp.eq.s32.totalorder %s17, 6
      %p103 = por %p101, %p102
      %p104 = scmp.ne.s32.totalorder %s93, %s94
      %p105 = scmp.eq.s32.totalorder %s17, 0
      %p106 = por %p104, %p105
      %p107 = scmp.ne.s32.totalorder %s93, %s94
      %p108 = scmp.eq.s32.totalorder %s18, 6
      %p109 = por %p107, %p108
      %p111 = scmp.ne.s32.totalorder %s94, %s110
      %p112 = scmp.eq.s32.totalorder %s18, 0
      %p113 = por %p111, %p112
      %p114 = scmp.le.s32.totalorder 1, %s12
      %p115 = scmp.lt.s32.totalorder %s12, 8
      %p116 = pnand %p114, %p115
      %p117 = pneg %p116
      // Predicated region
      $region9: #{vox2pix_pallas.1} parent=5 // pred_check
        _
      $region10: #{vox2pix_pallas.1} parent=5 // pred_check_branch
        %119 = sbr.rel (%p116) target = $region12
      $region11: #{vox2pix_pallas.1} parent=5 // pred_region
        %s120 = ssub.s32 %s12, 1
        // Predicated region
        $region13: #{vox2pix_pallas.1} parent=11 // pred_check
          %p121 = pneg %p33
        $region14: #{vox2pix_pallas.1} parent=11 // pred_check_branch
          %123 = sbr.rel (%p121) target = $region16
        $region15: #{vox2pix_pallas.1} parent=11 // pred_region
          %125 = vsyncadd [#allocation3], 0
          %s127 = sshll.u32 %s0, 4
          %s128 = int_to_ptr.vmem [resolvable:$true] %s127
          %130 = dma.vmem_to_smem %s128, 64, [#allocation2], [#allocation3]
        $region16: #{vox2pix_pallas.1} parent=11 // pred_fallthru
          _
        // Predicated region
        $region17: #{vox2pix_pallas.1} parent=11 // pred_check
          %p131 = pneg %p54
        $region18: #{vox2pix_pallas.1} parent=11 // pred_check_branch
          %133 = sbr.rel (%p131) target = $region20
        $region19: #{vox2pix_pallas.1} parent=11 // pred_region
          %135 = vsyncadd [#allocation5], 0
          %s137 = sshll.u32 %s1, 4
          %s138 = int_to_ptr.vmem [resolvable:$true] %s137
          %140 = dma.vmem_to_smem %s138, 16, [#allocation4], [#allocation5]
        $region20: #{vox2pix_pallas.1} parent=11 // pred_fallthru
          _
      $region12: #{vox2pix_pallas.1} parent=5 // pred_fallthru
        _
      %p141 = scmp.lt.s32.totalorder %s12, 7
      // Predicated region
      $region21: #{vox2pix_pallas.1} parent=5 // pred_check
        %p142 = pneg %p141
      $region22: #{vox2pix_pallas.1} parent=5 // pred_check_branch
        %144 = sbr.rel (%p142) target = $region24
      $region23: #{vox2pix_pallas.1} parent=5 // pred_region
        _
      $region24: #{vox2pix_pallas.1} parent=5 // pred_fallthru
        _
      %p145 = scmp.le.s32.totalorder 1, %s12
      %p146 = scmp.lt.s32.totalorder %s12, 8
      %p147 = pnand %p145, %p146
      %p148 = pneg %p147
      // Predicated region
      $region25: #{vox2pix_pallas.1} parent=5 // pred_check
        _
      $region26: #{vox2pix_pallas.1} parent=5 // pred_check_branch
        %150 = sbr.rel (%p147) target = $region28
      $region27: #{vox2pix_pallas.1} parent=5 // pred_region
        %s151 = ssub.s32 %s12, 1
        // Predicated region
        $region29: #{vox2pix_pallas.1} parent=27 // pred_check
          %p152 = pneg %p33
        $region30: #{vox2pix_pallas.1} parent=27 // pred_check_branch
          %154 = sbr.rel (%p152) target = $region32
        $region31: #{vox2pix_pallas.1} parent=27 // pred_region
          %156 = dma.done [#allocation3], 64
        $region32: #{vox2pix_pallas.1} parent=27 // pred_fallthru
          _
        // Predicated region
        $region33: #{vox2pix_pallas.1} parent=27 // pred_check
          %p157 = pneg %p54
        $region34: #{vox2pix_pallas.1} parent=27 // pred_check_branch
          %159 = sbr.rel (%p157) target = $region36
        $region35: #{vox2pix_pallas.1} parent=27 // pred_region
          %161 = dma.done [#allocation5], 16
        $region36: #{vox2pix_pallas.1} parent=27 // pred_fallthru
          _
        %162 = sfence
        %p163 = pneg %p33
        %p164 = pneg %p30
        %p165 = pneg %p54
        %p166 = pneg %p51
        %p167 = pneg %p80
        %p168 = pneg %p77
        %s169 = sand.u32 %s67, 1
        %s170 = sand.u32 %s67, 1
        %s171 = smul.addr %s170, 1600
        %s172 = scalar_lea.vmem [#allocation6], %s171
        %p173 = pneg %p106
        %p174 = pneg %p103
        %s175 = smul.u32 4, %s17
        %p176 = scmp.lt.s32.totalorder %s175, 27
        %s177 = scalar_select %p176, %s175, 27
        %s178 = smul.addr %s177, 25
        %s179 = smul.addr %s178, 2
        %s180 = scalar_lea.vmem %s3, %s179
        %s181 = smul.u32 4, %s17
        %s182 = smul.u32 4, %s17
        %p183 = scmp.lt.s32.totalorder %s182, 27
        %s184 = scalar_select %p183, %s182, 27
        %s185 = smul.addr %s184, 25
        %s186 = smul.addr %s185, 2
        %s187 = scalar_lea.vmem %s3, %s186
        %s188 = smul.u32 4, %s17
        %s191 = smul.u32 %s17, 32
        %v192 = vlaneseq
        %v193 = vshrl.u32 %v192, 7
        %v194 = vadd.s32 %v193, 8
        %v195 = vadd.s32 %v193, 16
        %v196 = vadd.s32 %v193, 24
        %v197 = vstv %s191
        %v198 = vadd.s32 %v193, %v197
        %v199 = vadd.s32 %v194, %v197
        %v200 = vadd.s32 %v195, %v197
        %v201 = vadd.s32 %v196, %v197
        %v202 = vlaneseq
        %v203 = vand.u32 %v202, 127
        %v204 = vadd.s32 %v203, 128
        %v205 = vadd.s32 %v203, 256
        %v206 = vadd.s32 %v203, 384
        %v207 = vadd.s32 %v203, 512
        %v208 = vadd.s32 %v203, 640
        %v209 = vadd.s32 %v203, 768
        %v210 = vadd.s32 %v203, 896
        %v211 = vadd.s32 %v203, 1024
        %v212 = vadd.s32 %v203, 1152
        %v213 = vadd.s32 %v203, 1280
        %v214 = vadd.s32 %v203, 1408
        %v215 = vadd.s32 %v203, 1536
        %v216 = vadd.s32 %v203, 1664
        %v217 = vadd.s32 %v203, 1792
        %v218 = vadd.s32 %v203, 1920
        %v219 = vadd.s32 %v203, 2048
        %v220 = vadd.s32 %v203, 2176
        %v221 = vadd.s32 %v203, 2304
        %v222 = vadd.s32 %v203, 2432
        %v223 = vadd.s32 %v203, 2560
        %v224 = vadd.s32 %v203, 2688
        %v225 = vadd.s32 %v203, 2816
        %v226 = vadd.s32 %v203, 2944
        %v227 = vadd.s32 %v203, 3072
        %v228 = vshra.s32 %v203, 4
        %v229 = vshra.s32 %v204, 4
        %v230 = vshra.s32 %v205, 4
        %v231 = vshra.s32 %v206, 4
        %v232 = vshra.s32 %v207, 4
        %v233 = vshra.s32 %v208, 4
        %v234 = vshra.s32 %v209, 4
        %v235 = vshra.s32 %v210, 4
        %v236 = vshra.s32 %v211, 4
        %v237 = vshra.s32 %v212, 4
        %v238 = vshra.s32 %v213, 4
        %v239 = vshra.s32 %v214, 4
        %v240 = vshra.s32 %v215, 4
        %v241 = vshra.s32 %v216, 4
        %v242 = vshra.s32 %v217, 4
        %v243 = vshra.s32 %v218, 4
        %v244 = vshra.s32 %v219, 4
        %v245 = vshra.s32 %v220, 4
        %v246 = vshra.s32 %v221, 4
        %v247 = vshra.s32 %v222, 4
        %v248 = vshra.s32 %v223, 4
        %v249 = vshra.s32 %v224, 4
        %v250 = vshra.s32 %v225, 4
        %v251 = vshra.s32 %v226, 4
        %v252 = vshra.s32 %v227, 4
        %v253 = vand.u32 %v203, 15
        %v254 = vand.u32 %v204, 15
        %v255 = vand.u32 %v205, 15
        %v256 = vand.u32 %v206, 15
        %v257 = vand.u32 %v207, 15
        %v258 = vand.u32 %v208, 15
        %v259 = vand.u32 %v209, 15
        %v260 = vand.u32 %v210, 15
        %v261 = vand.u32 %v211, 15
        %v262 = vand.u32 %v212, 15
        %v263 = vand.u32 %v213, 15
        %v264 = vand.u32 %v214, 15
        %v265 = vand.u32 %v215, 15
        %v266 = vand.u32 %v216, 15
        %v267 = vand.u32 %v217, 15
        %v268 = vand.u32 %v218, 15
        %v269 = vand.u32 %v219, 15
        %v270 = vand.u32 %v220, 15
        %v271 = vand.u32 %v221, 15
        %v272 = vand.u32 %v222, 15
        %v273 = vand.u32 %v223, 15
        %v274 = vand.u32 %v224, 15
        %v275 = vand.u32 %v225, 15
        %v276 = vand.u32 %v226, 15
        %v277 = vand.u32 %v227, 15
        %v278 = vcvt.s32.f32 %v198
        %v279 = vcvt.s32.f32 %v199
        %v280 = vcvt.s32.f32 %v200
        %v281 = vcvt.s32.f32 %v201
        %v282 = vmul.f32 %v278, 0.5
        %v283 = vmul.f32 %v279, 0.5
        %v284 = vmul.f32 %v280, 0.5
        %v285 = vmul.f32 %v281, 0.5
        %v286 = vadd.f32 %v282, -50.0
        %v287 = vadd.f32 %v283, -50.0
        %v288 = vadd.f32 %v284, -50.0
        %v289 = vadd.f32 %v285, -50.0
        %v290 = vadd.f32 %v286, 0.25
        %v291 = vadd.f32 %v287, 0.25
        %v292 = vadd.f32 %v288, 0.25
        %v293 = vadd.f32 %v289, 0.25
        %v294 = vcvt.s32.f32 %v228
        %v295 = vcvt.s32.f32 %v229
        %v296 = vcvt.s32.f32 %v230
        %v297 = vcvt.s32.f32 %v231
        %v298 = vcvt.s32.f32 %v232
        %v299 = vcvt.s32.f32 %v233
        %v300 = vcvt.s32.f32 %v234
        %v301 = vcvt.s32.f32 %v235
        %v302 = vcvt.s32.f32 %v236
        %v303 = vcvt.s32.f32 %v237
        %v304 = vcvt.s32.f32 %v238
        %v305 = vcvt.s32.f32 %v239
        %v306 = vcvt.s32.f32 %v240
        %v307 = vcvt.s32.f32 %v241
        %v308 = vcvt.s32.f32 %v242
        %v309 = vcvt.s32.f32 %v243
        %v310 = vcvt.s32.f32 %v244
        %v311 = vcvt.s32.f32 %v245
        %v312 = vcvt.s32.f32 %v246
        %v313 = vcvt.s32.f32 %v247
        %v314 = vcvt.s32.f32 %v248
        %v315 = vcvt.s32.f32 %v249
        %v316 = vcvt.s32.f32 %v250
        %v317 = vcvt.s32.f32 %v251
        %v318 = vcvt.s32.f32 %v252
        %v319 = vmul.f32 %v294, 0.5
        %v320 = vmul.f32 %v295, 0.5
        %v321 = vmul.f32 %v296, 0.5
        %v322 = vmul.f32 %v297, 0.5
        %v323 = vmul.f32 %v298, 0.5
        %v324 = vmul.f32 %v299, 0.5
        %v325 = vmul.f32 %v300, 0.5
        %v326 = vmul.f32 %v301, 0.5
        %v327 = vmul.f32 %v302, 0.5
        %v328 = vmul.f32 %v303, 0.5
        %v329 = vmul.f32 %v304, 0.5
        %v330 = vmul.f32 %v305, 0.5
        %v331 = vmul.f32 %v306, 0.5
        %v332 = vmul.f32 %v307, 0.5
        %v333 = vmul.f32 %v308, 0.5
        %v334 = vmul.f32 %v309, 0.5
        %v335 = vmul.f32 %v310, 0.5
        %v336 = vmul.f32 %v311, 0.5
        %v337 = vmul.f32 %v312, 0.5
        %v338 = vmul.f32 %v313, 0.5
        %v339 = vmul.f32 %v314, 0.5
        %v340 = vmul.f32 %v315, 0.5
        %v341 = vmul.f32 %v316, 0.5
        %v342 = vmul.f32 %v317, 0.5
        %v343 = vmul.f32 %v318, 0.5
        %v344 = vadd.f32 %v319, -50.0
        %v345 = vadd.f32 %v320, -50.0
        %v346 = vadd.f32 %v321, -50.0
        %v347 = vadd.f32 %v322, -50.0
        %v348 = vadd.f32 %v323, -50.0
        %v349 = vadd.f32 %v324, -50.0
        %v350 = vadd.f32 %v325, -50.0
        %v351 = vadd.f32 %v326, -50.0
        %v352 = vadd.f32 %v327, -50.0
        %v353 = vadd.f32 %v328, -50.0
        %v354 = vadd.f32 %v329, -50.0
        %v355 = vadd.f32 %v330, -50.0
        %v356 = vadd.f32 %v331, -50.0
        %v357 = vadd.f32 %v332, -50.0
        %v358 = vadd.f32 %v333, -50.0
        %v359 = vadd.f32 %v334, -50.0
        %v360 = vadd.f32 %v335, -50.0
        %v361 = vadd.f32 %v336, -50.0
        %v362 = vadd.f32 %v337, -50.0
        %v363 = vadd.f32 %v338, -50.0
        %v364 = vadd.f32 %v339, -50.0
        %v365 = vadd.f32 %v340, -50.0
        %v366 = vadd.f32 %v341, -50.0
        %v367 = vadd.f32 %v342, -50.0
        %v368 = vadd.f32 %v343, -50.0
        %v369 = vadd.f32 %v344, 0.25
        %v370 = vadd.f32 %v345, 0.25
        %v371 = vadd.f32 %v346, 0.25
        %v372 = vadd.f32 %v347, 0.25
        %v373 = vadd.f32 %v348, 0.25
        %v374 = vadd.f32 %v349, 0.25
        %v375 = vadd.f32 %v350, 0.25
        %v376 = vadd.f32 %v351, 0.25
        %v377 = vadd.f32 %v352, 0.25
        %v378 = vadd.f32 %v353, 0.25
        %v379 = vadd.f32 %v354, 0.25
        %v380 = vadd.f32 %v355, 0.25
        %v381 = vadd.f32 %v356, 0.25
        %v382 = vadd.f32 %v357, 0.25
        %v383 = vadd.f32 %v358, 0.25
        %v384 = vadd.f32 %v359, 0.25
        %v385 = vadd.f32 %v360, 0.25
        %v386 = vadd.f32 %v361, 0.25
        %v387 = vadd.f32 %v362, 0.25
        %v388 = vadd.f32 %v363, 0.25
        %v389 = vadd.f32 %v364, 0.25
        %v390 = vadd.f32 %v365, 0.25
        %v391 = vadd.f32 %v366, 0.25
        %v392 = vadd.f32 %v367, 0.25
        %v393 = vadd.f32 %v368, 0.25
        %v394 = vcvt.s32.f32 %v253
        %v395 = vcvt.s32.f32 %v254
        %v396 = vcvt.s32.f32 %v255
        %v397 = vcvt.s32.f32 %v256
        %v398 = vcvt.s32.f32 %v257
        %v399 = vcvt.s32.f32 %v258
        %v400 = vcvt.s32.f32 %v259
        %v401 = vcvt.s32.f32 %v260
        %v402 = vcvt.s32.f32 %v261
        %v403 = vcvt.s32.f32 %v262
        %v404 = vcvt.s32.f32 %v263
        %v405 = vcvt.s32.f32 %v264
        %v406 = vcvt.s32.f32 %v265
        %v407 = vcvt.s32.f32 %v266
        %v408 = vcvt.s32.f32 %v267
        %v409 = vcvt.s32.f32 %v268
        %v410 = vcvt.s32.f32 %v269
        %v411 = vcvt.s32.f32 %v270
        %v412 = vcvt.s32.f32 %v271
        %v413 = vcvt.s32.f32 %v272
        %v414 = vcvt.s32.f32 %v273
        %v415 = vcvt.s32.f32 %v274
        %v416 = vcvt.s32.f32 %v275
        %v417 = vcvt.s32.f32 %v276
        %v418 = vcvt.s32.f32 %v277
        %v419 = vmul.f32 %v394, 0.5
        %v420 = vmul.f32 %v395, 0.5
        %v421 = vmul.f32 %v396, 0.5
        %v422 = vmul.f32 %v397, 0.5
        %v423 = vmul.f32 %v398, 0.5
        %v424 = vmul.f32 %v399, 0.5
        %v425 = vmul.f32 %v400, 0.5
        %v426 = vmul.f32 %v401, 0.5
        %v427 = vmul.f32 %v402, 0.5
        %v428 = vmul.f32 %v403, 0.5
        %v429 = vmul.f32 %v404, 0.5
        %v430 = vmul.f32 %v405, 0.5
        %v431 = vmul.f32 %v406, 0.5
        %v432 = vmul.f32 %v407, 0.5
        %v433 = vmul.f32 %v408, 0.5
        %v434 = vmul.f32 %v409, 0.5
        %v435 = vmul.f32 %v410, 0.5
        %v436 = vmul.f32 %v411, 0.5
        %v437 = vmul.f32 %v412, 0.5
        %v438 = vmul.f32 %v413, 0.5
        %v439 = vmul.f32 %v414, 0.5
        %v440 = vmul.f32 %v415, 0.5
        %v441 = vmul.f32 %v416, 0.5
        %v442 = vmul.f32 %v417, 0.5
        %v443 = vmul.f32 %v418, 0.5
        %v444 = vadd.f32 %v419, -5.0
        %v445 = vadd.f32 %v420, -5.0
        %v446 = vadd.f32 %v421, -5.0
        %v447 = vadd.f32 %v422, -5.0
        %v448 = vadd.f32 %v423, -5.0
        %v449 = vadd.f32 %v424, -5.0
        %v450 = vadd.f32 %v425, -5.0
        %v451 = vadd.f32 %v426, -5.0
        %v452 = vadd.f32 %v427, -5.0
        %v453 = vadd.f32 %v428, -5.0
        %v454 = vadd.f32 %v429, -5.0
        %v455 = vadd.f32 %v430, -5.0
        %v456 = vadd.f32 %v431, -5.0
        %v457 = vadd.f32 %v432, -5.0
        %v458 = vadd.f32 %v433, -5.0
        %v459 = vadd.f32 %v434, -5.0
        %v460 = vadd.f32 %v435, -5.0
        %v461 = vadd.f32 %v436, -5.0
        %v462 = vadd.f32 %v437, -5.0
        %v463 = vadd.f32 %v438, -5.0
        %v464 = vadd.f32 %v439, -5.0
        %v465 = vadd.f32 %v440, -5.0
        %v466 = vadd.f32 %v441, -5.0
        %v467 = vadd.f32 %v442, -5.0
        %v468 = vadd.f32 %v443, -5.0
        %v469 = vadd.f32 %v444, 0.25
        %v470 = vadd.f32 %v445, 0.25
        %v471 = vadd.f32 %v446, 0.25
        %v472 = vadd.f32 %v447, 0.25
        %v473 = vadd.f32 %v448, 0.25
        %v474 = vadd.f32 %v449, 0.25
        %v475 = vadd.f32 %v450, 0.25
        %v476 = vadd.f32 %v451, 0.25
        %v477 = vadd.f32 %v452, 0.25
        %v478 = vadd.f32 %v453, 0.25
        %v479 = vadd.f32 %v454, 0.25
        %v480 = vadd.f32 %v455, 0.25
        %v481 = vadd.f32 %v456, 0.25
        %v482 = vadd.f32 %v457, 0.25
        %v483 = vadd.f32 %v458, 0.25
        %v484 = vadd.f32 %v459, 0.25
        %v485 = vadd.f32 %v460, 0.25
        %v486 = vadd.f32 %v461, 0.25
        %v487 = vadd.f32 %v462, 0.25
        %v488 = vadd.f32 %v463, 0.25
        %v489 = vadd.f32 %v464, 0.25
        %v490 = vadd.f32 %v465, 0.25
        %v491 = vadd.f32 %v466, 0.25
        %v492 = vadd.f32 %v467, 0.25
        %v493 = vadd.f32 %v468, 0.25
        %s494 = sld [smem:[#allocation2]]
        %v495 = vstv %s494
        %v496 = vmul.f32 %v495, %v290
        %v497 = vmul.f32 %v495, %v291
        %v498 = vmul.f32 %v495, %v292
        %v499 = vmul.f32 %v495, %v293
        %s500 = sld [smem:[#allocation2 + $0x1]]
        %v501 = vstv %s500
        %v502 = vmul.f32 %v501, %v369
        %v503 = vmul.f32 %v501, %v370
        %v504 = vmul.f32 %v501, %v371
        %v505 = vmul.f32 %v501, %v372
        %v506 = vmul.f32 %v501, %v373
        %v507 = vmul.f32 %v501, %v374
        %v508 = vmul.f32 %v501, %v375
        %v509 = vmul.f32 %v501, %v376
        %v510 = vmul.f32 %v501, %v377
        %v511 = vmul.f32 %v501, %v378
        %v512 = vmul.f32 %v501, %v379
        %v513 = vmul.f32 %v501, %v380
        %v514 = vmul.f32 %v501, %v381
        %v515 = vmul.f32 %v501, %v382
        %v516 = vmul.f32 %v501, %v383
        %v517 = vmul.f32 %v501, %v384
        %v518 = vmul.f32 %v501, %v385
        %v519 = vmul.f32 %v501, %v386
        %v520 = vmul.f32 %v501, %v387
        %v521 = vmul.f32 %v501, %v388
        %v522 = vmul.f32 %v501, %v389
        %v523 = vmul.f32 %v501, %v390
        %v524 = vmul.f32 %v501, %v391
        %v525 = vmul.f32 %v501, %v392
        %v526 = vmul.f32 %v501, %v393
        %v527 = vadd.f32 %v496, %v502
        %v528 = vadd.f32 %v496, %v503
        %v529 = vadd.f32 %v496, %v504
        %v530 = vadd.f32 %v496, %v505
        %v531 = vadd.f32 %v496, %v506
        %v532 = vadd.f32 %v496, %v507
        %v533 = vadd.f32 %v496, %v508
        %v534 = vadd.f32 %v496, %v509
        %v535 = vadd.f32 %v496, %v510
        %v536 = vadd.f32 %v496, %v511
        %v537 = vadd.f32 %v496, %v512
        %v538 = vadd.f32 %v496, %v513
        %v539 = vadd.f32 %v496, %v514
        %v540 = vadd.f32 %v496, %v515
        %v541 = vadd.f32 %v496, %v516
        %v542 = vadd.f32 %v496, %v517
        %v543 = vadd.f32 %v496, %v518
        %v544 = vadd.f32 %v496, %v519
        %v545 = vadd.f32 %v496, %v520
        %v546 = vadd.f32 %v496, %v521
        %v547 = vadd.f32 %v496, %v522
        %v548 = vadd.f32 %v496, %v523
        %v549 = vadd.f32 %v496, %v524
        %v550 = vadd.f32 %v496, %v525
        %v551 = vadd.f32 %v496, %v526
        %v552 = vadd.f32 %v497, %v502
        %v553 = vadd.f32 %v497, %v503
        %v554 = vadd.f32 %v497, %v504
        %v555 = vadd.f32 %v497, %v505
        %v556 = vadd.f32 %v497, %v506
        %v557 = vadd.f32 %v497, %v507
        %v558 = vadd.f32 %v497, %v508
        %v559 = vadd.f32 %v497, %v509
        %v560 = vadd.f32 %v497, %v510
        %v561 = vadd.f32 %v497, %v511
        %v562 = vadd.f32 %v497, %v512
        %v563 = vadd.f32 %v497, %v513
        %v564 = vadd.f32 %v497, %v514
        %v565 = vadd.f32 %v497, %v515
        %v566 = vadd.f32 %v497, %v516
        %v567 = vadd.f32 %v497, %v517
        %v568 = vadd.f32 %v497, %v518
        %v569 = vadd.f32 %v497, %v519
        %v570 = vadd.f32 %v497, %v520
        %v571 = vadd.f32 %v497, %v521
        %v572 = vadd.f32 %v497, %v522
        %v573 = vadd.f32 %v497, %v523
        %v574 = vadd.f32 %v497, %v524
        %v575 = vadd.f32 %v497, %v525
        %v576 = vadd.f32 %v497, %v526
        %v577 = vadd.f32 %v498, %v502
        %v578 = vadd.f32 %v498, %v503
        %v579 = vadd.f32 %v498, %v504
        %v580 = vadd.f32 %v498, %v505
        %v581 = vadd.f32 %v498, %v506
        %v582 = vadd.f32 %v498, %v507
        %v583 = vadd.f32 %v498, %v508
        %v584 = vadd.f32 %v498, %v509
        %v585 = vadd.f32 %v498, %v510
        %v586 = vadd.f32 %v498, %v511
        %v587 = vadd.f32 %v498, %v512
        %v588 = vadd.f32 %v498, %v513
        %v589 = vadd.f32 %v498, %v514
        %v590 = vadd.f32 %v498, %v515
        %v591 = vadd.f32 %v498, %v516
        %v592 = vadd.f32 %v498, %v517
        %v593 = vadd.f32 %v498, %v518
        %v594 = vadd.f32 %v498, %v519
        %v595 = vadd.f32 %v498, %v520
        %v596 = vadd.f32 %v498, %v521
        %v597 = vadd.f32 %v498, %v522
        %v598 = vadd.f32 %v498, %v523
        %v599 = vadd.f32 %v498, %v524
        %v600 = vadd.f32 %v498, %v525
        %v601 = vadd.f32 %v498, %v526
        %v602 = vadd.f32 %v499, %v502
        %v603 = vadd.f32 %v499, %v503
        %v604 = vadd.f32 %v499, %v504
        %v605 = vadd.f32 %v499, %v505
        %v606 = vadd.f32 %v499, %v506
        %v607 = vadd.f32 %v499, %v507
        %v608 = vadd.f32 %v499, %v508
        %v609 = vadd.f32 %v499, %v509
        %v610 = vadd.f32 %v499, %v510
        %v611 = vadd.f32 %v499, %v511
        %v612 = vadd.f32 %v499, %v512
        %v613 = vadd.f32 %v499, %v513
        %v614 = vadd.f32 %v499, %v514
        %v615 = vadd.f32 %v499, %v515
        %v616 = vadd.f32 %v499, %v516
        %v617 = vadd.f32 %v499, %v517
        %v618 = vadd.f32 %v499, %v518
        %v619 = vadd.f32 %v499, %v519
        %v620 = vadd.f32 %v499, %v520
        %v621 = vadd.f32 %v499, %v521
        %v622 = vadd.f32 %v499, %v522
        %v623 = vadd.f32 %v499, %v523
        %v624 = vadd.f32 %v499, %v524
        %v625 = vadd.f32 %v499, %v525
        %v626 = vadd.f32 %v499, %v526
        %s627 = sld [smem:[#allocation2 + $0x2]]
        %v628 = vstv %s627
        %v629 = vmul.f32 %v628, %v469
        %v630 = vmul.f32 %v628, %v470
        %v631 = vmul.f32 %v628, %v471
        %v632 = vmul.f32 %v628, %v472
        %v633 = vmul.f32 %v628, %v473
        %v634 = vmul.f32 %v628, %v474
        %v635 = vmul.f32 %v628, %v475
        %v636 = vmul.f32 %v628, %v476
        %v637 = vmul.f32 %v628, %v477
        %v638 = vmul.f32 %v628, %v478
        %v639 = vmul.f32 %v628, %v479
        %v640 = vmul.f32 %v628, %v480
        %v641 = vmul.f32 %v628, %v481
        %v642 = vmul.f32 %v628, %v482
        %v643 = vmul.f32 %v628, %v483
        %v644 = vmul.f32 %v628, %v484
        %v645 = vmul.f32 %v628, %v485
        %v646 = vmul.f32 %v628, %v486
        %v647 = vmul.f32 %v628, %v487
        %v648 = vmul.f32 %v628, %v488
        %v649 = vmul.f32 %v628, %v489
        %v650 = vmul.f32 %v628, %v490
        %v651 = vmul.f32 %v628, %v491
        %v652 = vmul.f32 %v628, %v492
        %v653 = vmul.f32 %v628, %v493
        %v654 = vadd.f32 %v527, %v629
        %v655 = vadd.f32 %v528, %v630
        %v656 = vadd.f32 %v529, %v631
        %v657 = vadd.f32 %v530, %v632
        %v658 = vadd.f32 %v531, %v633
        %v659 = vadd.f32 %v532, %v634
        %v660 = vadd.f32 %v533, %v635
        %v661 = vadd.f32 %v534, %v636
        %v662 = vadd.f32 %v535, %v637
        %v663 = vadd.f32 %v536, %v638
        %v664 = vadd.f32 %v537, %v639
        %v665 = vadd.f32 %v538, %v640
        %v666 = vadd.f32 %v539, %v641
        %v667 = vadd.f32 %v540, %v642
        %v668 = vadd.f32 %v541, %v643
        %v669 = vadd.f32 %v542, %v644
        %v670 = vadd.f32 %v543, %v645
        %v671 = vadd.f32 %v544, %v646
        %v672 = vadd.f32 %v545, %v647
        %v673 = vadd.f32 %v546, %v648
        %v674 = vadd.f32 %v547, %v649
        %v675 = vadd.f32 %v548, %v650
        %v676 = vadd.f32 %v549, %v651
        %v677 = vadd.f32 %v550, %v652
        %v678 = vadd.f32 %v551, %v653
        %v679 = vadd.f32 %v552, %v629
        %v680 = vadd.f32 %v553, %v630
        %v681 = vadd.f32 %v554, %v631
        %v682 = vadd.f32 %v555, %v632
        %v683 = vadd.f32 %v556, %v633
        %v684 = vadd.f32 %v557, %v634
        %v685 = vadd.f32 %v558, %v635
        %v686 = vadd.f32 %v559, %v636
        %v687 = vadd.f32 %v560, %v637
        %v688 = vadd.f32 %v561, %v638
        %v689 = vadd.f32 %v562, %v639
        %v690 = vadd.f32 %v563, %v640
        %v691 = vadd.f32 %v564, %v641
        %v692 = vadd.f32 %v565, %v642
        %v693 = vadd.f32 %v566, %v643
        %v694 = vadd.f32 %v567, %v644
        %v695 = vadd.f32 %v568, %v645
        %v696 = vadd.f32 %v569, %v646
        %v697 = vadd.f32 %v570, %v647
        %v698 = vadd.f32 %v571, %v648
        %v699 = vadd.f32 %v572, %v649
        %v700 = vadd.f32 %v573, %v650
        %v701 = vadd.f32 %v574, %v651
        %v702 = vadd.f32 %v575, %v652
        %v703 = vadd.f32 %v576, %v653
        %v704 = vadd.f32 %v577, %v629
        %v705 = vadd.f32 %v578, %v630
        %v706 = vadd.f32 %v579, %v631
        %v707 = vadd.f32 %v580, %v632
        %v708 = vadd.f32 %v581, %v633
        %v709 = vadd.f32 %v582, %v634
        %v710 = vadd.f32 %v583, %v635
        %v711 = vadd.f32 %v584, %v636
        %v712 = vadd.f32 %v585, %v637
        %v713 = vadd.f32 %v586, %v638
        %v714 = vadd.f32 %v587, %v639
        %v715 = vadd.f32 %v588, %v640
        %v716 = vadd.f32 %v589, %v641
        %v717 = vadd.f32 %v590, %v642
        %v718 = vadd.f32 %v591, %v643
        %v719 = vadd.f32 %v592, %v644
        %v720 = vadd.f32 %v593, %v645
        %v721 = vadd.f32 %v594, %v646
        %v722 = vadd.f32 %v595, %v647
        %v723 = vadd.f32 %v596, %v648
        %v724 = vadd.f32 %v597, %v649
        %v725 = vadd.f32 %v598, %v650
        %v726 = vadd.f32 %v599, %v651
        %v727 = vadd.f32 %v600, %v652
        %v728 = vadd.f32 %v601, %v653
        %v729 = vadd.f32 %v602, %v629
        %v730 = vadd.f32 %v603, %v630
        %v731 = vadd.f32 %v604, %v631
        %v732 = vadd.f32 %v605, %v632
        %v733 = vadd.f32 %v606, %v633
        %v734 = vadd.f32 %v607, %v634
        %v735 = vadd.f32 %v608, %v635
        %v736 = vadd.f32 %v609, %v636
        %v737 = vadd.f32 %v610, %v637
        %v738 = vadd.f32 %v611, %v638
        %v739 = vadd.f32 %v612, %v639
        %v740 = vadd.f32 %v613, %v640
        %v741 = vadd.f32 %v614, %v641
        %v742 = vadd.f32 %v615, %v642
        %v743 = vadd.f32 %v616, %v643
        %v744 = vadd.f32 %v617, %v644
        %v745 = vadd.f32 %v618, %v645
        %v746 = vadd.f32 %v619, %v646
        %v747 = vadd.f32 %v620, %v647
        %v748 = vadd.f32 %v621, %v648
        %v749 = vadd.f32 %v622, %v649
        %v750 = vadd.f32 %v623, %v650
        %v751 = vadd.f32 %v624, %v651
        %v752 = vadd.f32 %v625, %v652
        %v753 = vadd.f32 %v626, %v653
        %s754 = sld [smem:[#allocation4]]
        %v755 = vstv %s754
        %v756 = vadd.f32 %v654, %v755
        %v757 = vadd.f32 %v655, %v755
        %v758 = vadd.f32 %v656, %v755
        %v759 = vadd.f32 %v657, %v755
        %v760 = vadd.f32 %v658, %v755
        %v761 = vadd.f32 %v659, %v755
        %v762 = vadd.f32 %v660, %v755
        %v763 = vadd.f32 %v661, %v755
        %v764 = vadd.f32 %v662, %v755
        %v765 = vadd.f32 %v663, %v755
        %v766 = vadd.f32 %v664, %v755
        %v767 = vadd.f32 %v665, %v755
        %v768 = vadd.f32 %v666, %v755
        %v769 = vadd.f32 %v667, %v755
        %v770 = vadd.f32 %v668, %v755
        %v771 = vadd.f32 %v669, %v755
        %v772 = vadd.f32 %v670, %v755
        %v773 = vadd.f32 %v671, %v755
        %v774 = vadd.f32 %v672, %v755
        %v775 = vadd.f32 %v673, %v755
        %v776 = vadd.f32 %v674, %v755
        %v777 = vadd.f32 %v675, %v755
        %v778 = vadd.f32 %v676, %v755
        %v779 = vadd.f32 %v677, %v755
        %v780 = vadd.f32 %v678, %v755
        %v781 = vadd.f32 %v679, %v755
        %v782 = vadd.f32 %v680, %v755
        %v783 = vadd.f32 %v681, %v755
        %v784 = vadd.f32 %v682, %v755
        %v785 = vadd.f32 %v683, %v755
        %v786 = vadd.f32 %v684, %v755
        %v787 = vadd.f32 %v685, %v755
        %v788 = vadd.f32 %v686, %v755
        %v789 = vadd.f32 %v687, %v755
        %v790 = vadd.f32 %v688, %v755
        %v791 = vadd.f32 %v689, %v755
        %v792 = vadd.f32 %v690, %v755
        %v793 = vadd.f32 %v691, %v755
        %v794 = vadd.f32 %v692, %v755
        %v795 = vadd.f32 %v693, %v755
        %v796 = vadd.f32 %v694, %v755
        %v797 = vadd.f32 %v695, %v755
        %v798 = vadd.f32 %v696, %v755
        %v799 = vadd.f32 %v697, %v755
        %v800 = vadd.f32 %v698, %v755
        %v801 = vadd.f32 %v699, %v755
        %v802 = vadd.f32 %v700, %v755
        %v803 = vadd.f32 %v701, %v755
        %v804 = vadd.f32 %v702, %v755
        %v805 = vadd.f32 %v703, %v755
        %v806 = vadd.f32 %v704, %v755
        %v807 = vadd.f32 %v705, %v755
        %v808 = vadd.f32 %v706, %v755
        %v809 = vadd.f32 %v707, %v755
        %v810 = vadd.f32 %v708, %v755
        %v811 = vadd.f32 %v709, %v755
        %v812 = vadd.f32 %v710, %v755
        %v813 = vadd.f32 %v711, %v755
        %v814 = vadd.f32 %v712, %v755
        %v815 = vadd.f32 %v713, %v755
        %v816 = vadd.f32 %v714, %v755
        %v817 = vadd.f32 %v715, %v755
        %v818 = vadd.f32 %v716, %v755
        %v819 = vadd.f32 %v717, %v755
        %v820 = vadd.f32 %v718, %v755
        %v821 = vadd.f32 %v719, %v755
        %v822 = vadd.f32 %v720, %v755
        %v823 = vadd.f32 %v721, %v755
        %v824 = vadd.f32 %v722, %v755
        %v825 = vadd.f32 %v723, %v755
        %v826 = vadd.f32 %v724, %v755
        %v827 = vadd.f32 %v725, %v755
        %v828 = vadd.f32 %v726, %v755
        %v829 = vadd.f32 %v727, %v755
        %v830 = vadd.f32 %v728, %v755
        %v831 = vadd.f32 %v729, %v755
        %v832 = vadd.f32 %v730, %v755
        %v833 = vadd.f32 %v731, %v755
        %v834 = vadd.f32 %v732, %v755
        %v835 = vadd.f32 %v733, %v755
        %v836 = vadd.f32 %v734, %v755
        %v837 = vadd.f32 %v735, %v755
        %v838 = vadd.f32 %v736, %v755
        %v839 = vadd.f32 %v737, %v755
        %v840 = vadd.f32 %v738, %v755
        %v841 = vadd.f32 %v739, %v755
        %v842 = vadd.f32 %v740, %v755
        %v843 = vadd.f32 %v741, %v755
        %v844 = vadd.f32 %v742, %v755
        %v845 = vadd.f32 %v743, %v755
        %v846 = vadd.f32 %v744, %v755
        %v847 = vadd.f32 %v745, %v755
        %v848 = vadd.f32 %v746, %v755
        %v849 = vadd.f32 %v747, %v755
        %v850 = vadd.f32 %v748, %v755
        %v851 = vadd.f32 %v749, %v755
        %v852 = vadd.f32 %v750, %v755
        %v853 = vadd.f32 %v751, %v755
        %v854 = vadd.f32 %v752, %v755
        %v855 = vadd.f32 %v753, %v755
        %s856 = sld [smem:[#allocation2 + $0x80]]
        %v857 = vstv %s856
        %v858 = vmul.f32 %v857, %v290
        %v859 = vmul.f32 %v857, %v291
        %v860 = vmul.f32 %v857, %v292
        %v861 = vmul.f32 %v857, %v293
        %s862 = sld [smem:[#allocation2 + $0x81]]
        %v863 = vstv %s862
        %v864 = vmul.f32 %v863, %v369
        %v865 = vmul.f32 %v863, %v370
        %v866 = vmul.f32 %v863, %v371
        %v867 = vmul.f32 %v863, %v372
        %v868 = vmul.f32 %v863, %v373
        %v869 = vmul.f32 %v863, %v374
        %v870 = vmul.f32 %v863, %v375
        %v871 = vmul.f32 %v863, %v376
        %v872 = vmul.f32 %v863, %v377
        %v873 = vmul.f32 %v863, %v378
        %v874 = vmul.f32 %v863, %v379
        %v875 = vmul.f32 %v863, %v380
        %v876 = vmul.f32 %v863, %v381
        %v877 = vmul.f32 %v863, %v382
        %v878 = vmul.f32 %v863, %v383
        %v879 = vmul.f32 %v863, %v384
        %v880 = vmul.f32 %v863, %v385
        %v881 = vmul.f32 %v863, %v386
        %v882 = vmul.f32 %v863, %v387
        %v883 = vmul.f32 %v863, %v388
        %v884 = vmul.f32 %v863, %v389
        %v885 = vmul.f32 %v863, %v390
        %v886 = vmul.f32 %v863, %v391
        %v887 = vmul.f32 %v863, %v392
        %v888 = vmul.f32 %v863, %v393
        %v889 = vadd.f32 %v858, %v864
        %v890 = vadd.f32 %v858, %v865
        %v891 = vadd.f32 %v858, %v866
        %v892 = vadd.f32 %v858, %v867
        %v893 = vadd.f32 %v858, %v868
        %v894 = vadd.f32 %v858, %v869
        %v895 = vadd.f32 %v858, %v870
        %v896 = vadd.f32 %v858, %v871
        %v897 = vadd.f32 %v858, %v872
        %v898 = vadd.f32 %v858, %v873
        %v899 = vadd.f32 %v858, %v874
        %v900 = vadd.f32 %v858, %v875
        %v901 = vadd.f32 %v858, %v876
        %v902 = vadd.f32 %v858, %v877
        %v903 = vadd.f32 %v858, %v878
        %v904 = vadd.f32 %v858, %v879
        %v905 = vadd.f32 %v858, %v880
        %v906 = vadd.f32 %v858, %v881
        %v907 = vadd.f32 %v858, %v882
        %v908 = vadd.f32 %v858, %v883
        %v909 = vadd.f32 %v858, %v884
        %v910 = vadd.f32 %v858, %v885
        %v911 = vadd.f32 %v858, %v886
        %v912 = vadd.f32 %v858, %v887
        %v913 = vadd.f32 %v858, %v888
        %v914 = vadd.f32 %v859, %v864
        %v915 = vadd.f32 %v859, %v865
        %v916 = vadd.f32 %v859, %v866
        %v917 = vadd.f32 %v859, %v867
        %v918 = vadd.f32 %v859, %v868
        %v919 = vadd.f32 %v859, %v869
        %v920 = vadd.f32 %v859, %v870
        %v921 = vadd.f32 %v859, %v871
        %v922 = vadd.f32 %v859, %v872
        %v923 = vadd.f32 %v859, %v873
        %v924 = vadd.f32 %v859, %v874
        %v925 = vadd.f32 %v859, %v875
        %v926 = vadd.f32 %v859, %v876
        %v927 = vadd.f32 %v859, %v877
        %v928 = vadd.f32 %v859, %v878
        %v929 = vadd.f32 %v859, %v879
        %v930 = vadd.f32 %v859, %v880
        %v931 = vadd.f32 %v859, %v881
        %v932 = vadd.f32 %v859, %v882
        %v933 = vadd.f32 %v859, %v883
        %v934 = vadd.f32 %v859, %v884
        %v935 = vadd.f32 %v859, %v885
        %v936 = vadd.f32 %v859, %v886
        %v937 = vadd.f32 %v859, %v887
        %v938 = vadd.f32 %v859, %v888
        %v939 = vadd.f32 %v860, %v864
        %v940 = vadd.f32 %v860, %v865
        %v941 = vadd.f32 %v860, %v866
        %v942 = vadd.f32 %v860, %v867
        %v943 = vadd.f32 %v860, %v868
        %v944 = vadd.f32 %v860, %v869
        %v945 = vadd.f32 %v860, %v870
        %v946 = vadd.f32 %v860, %v871
        %v947 = vadd.f32 %v860, %v872
        %v948 = vadd.f32 %v860, %v873
        %v949 = vadd.f32 %v860, %v874
        %v950 = vadd.f32 %v860, %v875
        %v951 = vadd.f32 %v860, %v876
        %v952 = vadd.f32 %v860, %v877
        %v953 = vadd.f32 %v860, %v878
        %v954 = vadd.f32 %v860, %v879
        %v955 = vadd.f32 %v860, %v880
        %v956 = vadd.f32 %v860, %v881
        %v957 = vadd.f32 %v860, %v882
        %v958 = vadd.f32 %v860, %v883
        %v959 = vadd.f32 %v860, %v884
        %v960 = vadd.f32 %v860, %v885
        %v961 = vadd.f32 %v860, %v886
        %v962 = vadd.f32 %v860, %v887
        %v963 = vadd.f32 %v860, %v888
        %v964 = vadd.f32 %v861, %v864
        %v965 = vadd.f32 %v861, %v865
        %v966 = vadd.f32 %v861, %v866
        %v967 = vadd.f32 %v861, %v867
        %v968 = vadd.f32 %v861, %v868
        %v969 = vadd.f32 %v861, %v869
        %v970 = vadd.f32 %v861, %v870
        %v971 = vadd.f32 %v861, %v871
        %v972 = vadd.f32 %v861, %v872
        %v973 = vadd.f32 %v861, %v873
        %v974 = vadd.f32 %v861, %v874
        %v975 = vadd.f32 %v861, %v875
        %v976 = vadd.f32 %v861, %v876
        %v977 = vadd.f32 %v861, %v877
        %v978 = vadd.f32 %v861, %v878
        %v979 = vadd.f32 %v861, %v879
        %v980 = vadd.f32 %v861, %v880
        %v981 = vadd.f32 %v861, %v881
        %v982 = vadd.f32 %v861, %v882
        %v983 = vadd.f32 %v861, %v883
        %v984 = vadd.f32 %v861, %v884
        %v985 = vadd.f32 %v861, %v885
        %v986 = vadd.f32 %v861, %v886
        %v987 = vadd.f32 %v861, %v887
        %v988 = vadd.f32 %v861, %v888
        %s989 = sld [smem:[#allocation2 + $0x82]]
        %v990 = vstv %s989
        %v991 = vmul.f32 %v990, %v469
        %v992 = vmul.f32 %v990, %v470
        %v993 = vmul.f32 %v990, %v471
        %v994 = vmul.f32 %v990, %v472
        %v995 = vmul.f32 %v990, %v473
        %v996 = vmul.f32 %v990, %v474
        %v997 = vmul.f32 %v990, %v475
        %v998 = vmul.f32 %v990, %v476
        %v999 = vmul.f32 %v990, %v477
        %v1000 = vmul.f32 %v990, %v478
        %v1001 = vmul.f32 %v990, %v479
        %v1002 = vmul.f32 %v990, %v480
        %v1003 = vmul.f32 %v990, %v481
        %v1004 = vmul.f32 %v990, %v482
        %v1005 = vmul.f32 %v990, %v483
        %v1006 = vmul.f32 %v990, %v484
        %v1007 = vmul.f32 %v990, %v485
        %v1008 = vmul.f32 %v990, %v486
        %v1009 = vmul.f32 %v990, %v487
        %v1010 = vmul.f32 %v990, %v488
        %v1011 = vmul.f32 %v990, %v489
        %v1012 = vmul.f32 %v990, %v490
        %v1013 = vmul.f32 %v990, %v491
        %v1014 = vmul.f32 %v990, %v492
        %v1015 = vmul.f32 %v990, %v493
        %v1016 = vadd.f32 %v889, %v991
        %v1017 = vadd.f32 %v890, %v992
        %v1018 = vadd.f32 %v891, %v993
        %v1019 = vadd.f32 %v892, %v994
        %v1020 = vadd.f32 %v893, %v995
        %v1021 = vadd.f32 %v894, %v996
        %v1022 = vadd.f32 %v895, %v997
        %v1023 = vadd.f32 %v896, %v998
        %v1024 = vadd.f32 %v897, %v999
        %v1025 = vadd.f32 %v898, %v1000
        %v1026 = vadd.f32 %v899, %v1001
        %v1027 = vadd.f32 %v900, %v1002
        %v1028 = vadd.f32 %v901, %v1003
        %v1029 = vadd.f32 %v902, %v1004
        %v1030 = vadd.f32 %v903, %v1005
        %v1031 = vadd.f32 %v904, %v1006
        %v1032 = vadd.f32 %v905, %v1007
        %v1033 = vadd.f32 %v906, %v1008
        %v1034 = vadd.f32 %v907, %v1009
        %v1035 = vadd.f32 %v908, %v1010
        %v1036 = vadd.f32 %v909, %v1011
        %v1037 = vadd.f32 %v910, %v1012
        %v1038 = vadd.f32 %v911, %v1013
        %v1039 = vadd.f32 %v912, %v1014
        %v1040 = vadd.f32 %v913, %v1015
        %v1041 = vadd.f32 %v914, %v991
        %v1042 = vadd.f32 %v915, %v992
        %v1043 = vadd.f32 %v916, %v993
        %v1044 = vadd.f32 %v917, %v994
        %v1045 = vadd.f32 %v918, %v995
        %v1046 = vadd.f32 %v919, %v996
        %v1047 = vadd.f32 %v920, %v997
        %v1048 = vadd.f32 %v921, %v998
        %v1049 = vadd.f32 %v922, %v999
        %v1050 = vadd.f32 %v923, %v1000
        %v1051 = vadd.f32 %v924, %v1001
        %v1052 = vadd.f32 %v925, %v1002
        %v1053 = vadd.f32 %v926, %v1003
        %v1054 = vadd.f32 %v927, %v1004
        %v1055 = vadd.f32 %v928, %v1005
        %v1056 = vadd.f32 %v929, %v1006
        %v1057 = vadd.f32 %v930, %v1007
        %v1058 = vadd.f32 %v931, %v1008
        %v1059 = vadd.f32 %v932, %v1009
        %v1060 = vadd.f32 %v933, %v1010
        %v1061 = vadd.f32 %v934, %v1011
        %v1062 = vadd.f32 %v935, %v1012
        %v1063 = vadd.f32 %v936, %v1013
        %v1064 = vadd.f32 %v937, %v1014
        %v1065 = vadd.f32 %v938, %v1015
        %v1066 = vadd.f32 %v939, %v991
        %v1067 = vadd.f32 %v940, %v992
        %v1068 = vadd.f32 %v941, %v993
        %v1069 = vadd.f32 %v942, %v994
        %v1070 = vadd.f32 %v943, %v995
        %v1071 = vadd.f32 %v944, %v996
        %v1072 = vadd.f32 %v945, %v997
        %v1073 = vadd.f32 %v946, %v998
        %v1074 = vadd.f32 %v947, %v999
        %v1075 = vadd.f32 %v948, %v1000
        %v1076 = vadd.f32 %v949, %v1001
        %v1077 = vadd.f32 %v950, %v1002
        %v1078 = vadd.f32 %v951, %v1003
        %v1079 = vadd.f32 %v952, %v1004
        %v1080 = vadd.f32 %v953, %v1005
        %v1081 = vadd.f32 %v954, %v1006
        %v1082 = vadd.f32 %v955, %v1007
        %v1083 = vadd.f32 %v956, %v1008
        %v1084 = vadd.f32 %v957, %v1009
        %v1085 = vadd.f32 %v958, %v1010
        %v1086 = vadd.f32 %v959, %v1011
        %v1087 = vadd.f32 %v960, %v1012
        %v1088 = vadd.f32 %v961, %v1013
        %v1089 = vadd.f32 %v962, %v1014
        %v1090 = vadd.f32 %v963, %v1015
        %v1091 = vadd.f32 %v964, %v991
        %v1092 = vadd.f32 %v965, %v992
        %v1093 = vadd.f32 %v966, %v993
        %v1094 = vadd.f32 %v967, %v994
        %v1095 = vadd.f32 %v968, %v995
        %v1096 = vadd.f32 %v969, %v996
        %v1097 = vadd.f32 %v970, %v997
        %v1098 = vadd.f32 %v971, %v998
        %v1099 = vadd.f32 %v972, %v999
        %v1100 = vadd.f32 %v973, %v1000
        %v1101 = vadd.f32 %v974, %v1001
        %v1102 = vadd.f32 %v975, %v1002
        %v1103 = vadd.f32 %v976, %v1003
        %v1104 = vadd.f32 %v977, %v1004
        %v1105 = vadd.f32 %v978, %v1005
        %v1106 = vadd.f32 %v979, %v1006
        %v1107 = vadd.f32 %v980, %v1007
        %v1108 = vadd.f32 %v981, %v1008
        %v1109 = vadd.f32 %v982, %v1009
        %v1110 = vadd.f32 %v983, %v1010
        %v1111 = vadd.f32 %v984, %v1011
        %v1112 = vadd.f32 %v985, %v1012
        %v1113 = vadd.f32 %v986, %v1013
        %v1114 = vadd.f32 %v987, %v1014
        %v1115 = vadd.f32 %v988, %v1015
        %s1116 = sld [smem:[#allocation4 + $0x1]]
        %v1117 = vstv %s1116
        %v1118 = vadd.f32 %v1016, %v1117
        %v1119 = vadd.f32 %v1017, %v1117
        %v1120 = vadd.f32 %v1018, %v1117
        %v1121 = vadd.f32 %v1019, %v1117
        %v1122 = vadd.f32 %v1020, %v1117
        %v1123 = vadd.f32 %v1021, %v1117
        %v1124 = vadd.f32 %v1022, %v1117
        %v1125 = vadd.f32 %v1023, %v1117
        %v1126 = vadd.f32 %v1024, %v1117
        %v1127 = vadd.f32 %v1025, %v1117
        %v1128 = vadd.f32 %v1026, %v1117
        %v1129 = vadd.f32 %v1027, %v1117
        %v1130 = vadd.f32 %v1028, %v1117
        %v1131 = vadd.f32 %v1029, %v1117
        %v1132 = vadd.f32 %v1030, %v1117
        %v1133 = vadd.f32 %v1031, %v1117
        %v1134 = vadd.f32 %v1032, %v1117
        %v1135 = vadd.f32 %v1033, %v1117
        %v1136 = vadd.f32 %v1034, %v1117
        %v1137 = vadd.f32 %v1035, %v1117
        %v1138 = vadd.f32 %v1036, %v1117
        %v1139 = vadd.f32 %v1037, %v1117
        %v1140 = vadd.f32 %v1038, %v1117
        %v1141 = vadd.f32 %v1039, %v1117
        %v1142 = vadd.f32 %v1040, %v1117
        %v1143 = vadd.f32 %v1041, %v1117
        %v1144 = vadd.f32 %v1042, %v1117
        %v1145 = vadd.f32 %v1043, %v1117
        %v1146 = vadd.f32 %v1044, %v1117
        %v1147 = vadd.f32 %v1045, %v1117
        %v1148 = vadd.f32 %v1046, %v1117
        %v1149 = vadd.f32 %v1047, %v1117
        %v1150 = vadd.f32 %v1048, %v1117
        %v1151 = vadd.f32 %v1049, %v1117
        %v1152 = vadd.f32 %v1050, %v1117
        %v1153 = vadd.f32 %v1051, %v1117
        %v1154 = vadd.f32 %v1052, %v1117
        %v1155 = vadd.f32 %v1053, %v1117
        %v1156 = vadd.f32 %v1054, %v1117
        %v1157 = vadd.f32 %v1055, %v1117
        %v1158 = vadd.f32 %v1056, %v1117
        %v1159 = vadd.f32 %v1057, %v1117
        %v1160 = vadd.f32 %v1058, %v1117
        %v1161 = vadd.f32 %v1059, %v1117
        %v1162 = vadd.f32 %v1060, %v1117
        %v1163 = vadd.f32 %v1061, %v1117
        %v1164 = vadd.f32 %v1062, %v1117
        %v1165 = vadd.f32 %v1063, %v1117
        %v1166 = vadd.f32 %v1064, %v1117
        %v1167 = vadd.f32 %v1065, %v1117
        %v1168 = vadd.f32 %v1066, %v1117
        %v1169 = vadd.f32 %v1067, %v1117
        %v1170 = vadd.f32 %v1068, %v1117
        %v1171 = vadd.f32 %v1069, %v1117
        %v1172 = vadd.f32 %v1070, %v1117
        %v1173 = vadd.f32 %v1071, %v1117
        %v1174 = vadd.f32 %v1072, %v1117
        %v1175 = vadd.f32 %v1073, %v1117
        %v1176 = vadd.f32 %v1074, %v1117
        %v1177 = vadd.f32 %v1075, %v1117
        %v1178 = vadd.f32 %v1076, %v1117
        %v1179 = vadd.f32 %v1077, %v1117
        %v1180 = vadd.f32 %v1078, %v1117
        %v1181 = vadd.f32 %v1079, %v1117
        %v1182 = vadd.f32 %v1080, %v1117
        %v1183 = vadd.f32 %v1081, %v1117
        %v1184 = vadd.f32 %v1082, %v1117
        %v1185 = vadd.f32 %v1083, %v1117
        %v1186 = vadd.f32 %v1084, %v1117
        %v1187 = vadd.f32 %v1085, %v1117
        %v1188 = vadd.f32 %v1086, %v1117
        %v1189 = vadd.f32 %v1087, %v1117
        %v1190 = vadd.f32 %v1088, %v1117
        %v1191 = vadd.f32 %v1089, %v1117
        %v1192 = vadd.f32 %v1090, %v1117
        %v1193 = vadd.f32 %v1091, %v1117
        %v1194 = vadd.f32 %v1092, %v1117
        %v1195 = vadd.f32 %v1093, %v1117
        %v1196 = vadd.f32 %v1094, %v1117
        %v1197 = vadd.f32 %v1095, %v1117
        %v1198 = vadd.f32 %v1096, %v1117
        %v1199 = vadd.f32 %v1097, %v1117
        %v1200 = vadd.f32 %v1098, %v1117
        %v1201 = vadd.f32 %v1099, %v1117
        %v1202 = vadd.f32 %v1100, %v1117
        %v1203 = vadd.f32 %v1101, %v1117
        %v1204 = vadd.f32 %v1102, %v1117
        %v1205 = vadd.f32 %v1103, %v1117
        %v1206 = vadd.f32 %v1104, %v1117
        %v1207 = vadd.f32 %v1105, %v1117
        %v1208 = vadd.f32 %v1106, %v1117
        %v1209 = vadd.f32 %v1107, %v1117
        %v1210 = vadd.f32 %v1108, %v1117
        %v1211 = vadd.f32 %v1109, %v1117
        %v1212 = vadd.f32 %v1110, %v1117
        %v1213 = vadd.f32 %v1111, %v1117
        %v1214 = vadd.f32 %v1112, %v1117
        %v1215 = vadd.f32 %v1113, %v1117
        %v1216 = vadd.f32 %v1114, %v1117
        %v1217 = vadd.f32 %v1115, %v1117
        %s1218 = sld [smem:[#allocation2 + $0x100]]
        %v1219 = vstv %s1218
        %v1220 = vmul.f32 %v1219, %v290
        %v1221 = vmul.f32 %v1219, %v291
        %v1222 = vmul.f32 %v1219, %v292
        %v1223 = vmul.f32 %v1219, %v293
        %s1224 = sld [smem:[#allocation2 + $0x101]]
        %v1225 = vstv %s1224
        %v1226 = vmul.f32 %v1225, %v369
        %v1227 = vmul.f32 %v1225, %v370
        %v1228 = vmul.f32 %v1225, %v371
        %v1229 = vmul.f32 %v1225, %v372
        %v1230 = vmul.f32 %v1225, %v373
        %v1231 = vmul.f32 %v1225, %v374
        %v1232 = vmul.f32 %v1225, %v375
        %v1233 = vmul.f32 %v1225, %v376
        %v1234 = vmul.f32 %v1225, %v377
        %v1235 = vmul.f32 %v1225, %v378
        %v1236 = vmul.f32 %v1225, %v379
        %v1237 = vmul.f32 %v1225, %v380
        %v1238 = vmul.f32 %v1225, %v381
        %v1239 = vmul.f32 %v1225, %v382
        %v1240 = vmul.f32 %v1225, %v383
        %v1241 = vmul.f32 %v1225, %v384
        %v1242 = vmul.f32 %v1225, %v385
        %v1243 = vmul.f32 %v1225, %v386
        %v1244 = vmul.f32 %v1225, %v387
        %v1245 = vmul.f32 %v1225, %v388
        %v1246 = vmul.f32 %v1225, %v389
        %v1247 = vmul.f32 %v1225, %v390
        %v1248 = vmul.f32 %v1225, %v391
        %v1249 = vmul.f32 %v1225, %v392
        %v1250 = vmul.f32 %v1225, %v393
        %v1251 = vadd.f32 %v1220, %v1226
        %v1252 = vadd.f32 %v1220, %v1227
        %v1253 = vadd.f32 %v1220, %v1228
        %v1254 = vadd.f32 %v1220, %v1229
        %v1255 = vadd.f32 %v1220, %v1230
        %v1256 = vadd.f32 %v1220, %v1231
        %v1257 = vadd.f32 %v1220, %v1232
        %v1258 = vadd.f32 %v1220, %v1233
        %v1259 = vadd.f32 %v1220, %v1234
        %v1260 = vadd.f32 %v1220, %v1235
        %v1261 = vadd.f32 %v1220, %v1236
        %v1262 = vadd.f32 %v1220, %v1237
        %v1263 = vadd.f32 %v1220, %v1238
        %v1264 = vadd.f32 %v1220, %v1239
        %v1265 = vadd.f32 %v1220, %v1240
        %v1266 = vadd.f32 %v1220, %v1241
        %v1267 = vadd.f32 %v1220, %v1242
        %v1268 = vadd.f32 %v1220, %v1243
        %v1269 = vadd.f32 %v1220, %v1244
        %v1270 = vadd.f32 %v1220, %v1245
        %v1271 = vadd.f32 %v1220, %v1246
        %v1272 = vadd.f32 %v1220, %v1247
        %v1273 = vadd.f32 %v1220, %v1248
        %v1274 = vadd.f32 %v1220, %v1249
        %v1275 = vadd.f32 %v1220, %v1250
        %v1276 = vadd.f32 %v1221, %v1226
        %v1277 = vadd.f32 %v1221, %v1227
        %v1278 = vadd.f32 %v1221, %v1228
        %v1279 = vadd.f32 %v1221, %v1229
        %v1280 = vadd.f32 %v1221, %v1230
        %v1281 = vadd.f32 %v1221, %v1231
        %v1282 = vadd.f32 %v1221, %v1232
        %v1283 = vadd.f32 %v1221, %v1233
        %v1284 = vadd.f32 %v1221, %v1234
        %v1285 = vadd.f32 %v1221, %v1235
        %v1286 = vadd.f32 %v1221, %v1236
        %v1287 = vadd.f32 %v1221, %v1237
        %v1288 = vadd.f32 %v1221, %v1238
        %v1289 = vadd.f32 %v1221, %v1239
        %v1290 = vadd.f32 %v1221, %v1240
        %v1291 = vadd.f32 %v1221, %v1241
        %v1292 = vadd.f32 %v1221, %v1242
        %v1293 = vadd.f32 %v1221, %v1243
        %v1294 = vadd.f32 %v1221, %v1244
        %v1295 = vadd.f32 %v1221, %v1245
        %v1296 = vadd.f32 %v1221, %v1246
        %v1297 = vadd.f32 %v1221, %v1247
        %v1298 = vadd.f32 %v1221, %v1248
        %v1299 = vadd.f32 %v1221, %v1249
        %v1300 = vadd.f32 %v1221, %v1250
        %v1301 = vadd.f32 %v1222, %v1226
        %v1302 = vadd.f32 %v1222, %v1227
        %v1303 = vadd.f32 %v1222, %v1228
        %v1304 = vadd.f32 %v1222, %v1229
        %v1305 = vadd.f32 %v1222, %v1230
        %v1306 = vadd.f32 %v1222, %v1231
        %v1307 = vadd.f32 %v1222, %v1232
        %v1308 = vadd.f32 %v1222, %v1233
        %v1309 = vadd.f32 %v1222, %v1234
        %v1310 = vadd.f32 %v1222, %v1235
        %v1311 = vadd.f32 %v1222, %v1236
        %v1312 = vadd.f32 %v1222, %v1237
        %v1313 = vadd.f32 %v1222, %v1238
        %v1314 = vadd.f32 %v1222, %v1239
        %v1315 = vadd.f32 %v1222, %v1240
        %v1316 = vadd.f32 %v1222, %v1241
        %v1317 = vadd.f32 %v1222, %v1242
        %v1318 = vadd.f32 %v1222, %v1243
        %v1319 = vadd.f32 %v1222, %v1244
        %v1320 = vadd.f32 %v1222, %v1245
        %v1321 = vadd.f32 %v1222, %v1246
        %v1322 = vadd.f32 %v1222, %v1247
        %v1323 = vadd.f32 %v1222, %v1248
        %v1324 = vadd.f32 %v1222, %v1249
        %v1325 = vadd.f32 %v1222, %v1250
        %v1326 = vadd.f32 %v1223, %v1226
        %v1327 = vadd.f32 %v1223, %v1227
        %v1328 = vadd.f32 %v1223, %v1228
        %v1329 = vadd.f32 %v1223, %v1229
        %v1330 = vadd.f32 %v1223, %v1230
        %v1331 = vadd.f32 %v1223, %v1231
        %v1332 = vadd.f32 %v1223, %v1232
        %v1333 = vadd.f32 %v1223, %v1233
        %v1334 = vadd.f32 %v1223, %v1234
        %v1335 = vadd.f32 %v1223, %v1235
        %v1336 = vadd.f32 %v1223, %v1236
        %v1337 = vadd.f32 %v1223, %v1237
        %v1338 = vadd.f32 %v1223, %v1238
        %v1339 = vadd.f32 %v1223, %v1239
        %v1340 = vadd.f32 %v1223, %v1240
        %v1341 = vadd.f32 %v1223, %v1241
        %v1342 = vadd.f32 %v1223, %v1242
        %v1343 = vadd.f32 %v1223, %v1243
        %v1344 = vadd.f32 %v1223, %v1244
        %v1345 = vadd.f32 %v1223, %v1245
        %v1346 = vadd.f32 %v1223, %v1246
        %v1347 = vadd.f32 %v1223, %v1247
        %v1348 = vadd.f32 %v1223, %v1248
        %v1349 = vadd.f32 %v1223, %v1249
        %v1350 = vadd.f32 %v1223, %v1250
        %s1351 = sld [smem:[#allocation2 + $0x102]]
        %v1352 = vstv %s1351
        %v1353 = vmul.f32 %v1352, %v469
        %v1354 = vmul.f32 %v1352, %v470
        %v1355 = vmul.f32 %v1352, %v471
        %v1356 = vmul.f32 %v1352, %v472
        %v1357 = vmul.f32 %v1352, %v473
        %v1358 = vmul.f32 %v1352, %v474
        %v1359 = vmul.f32 %v1352, %v475
        %v1360 = vmul.f32 %v1352, %v476
        %v1361 = vmul.f32 %v1352, %v477
        %v1362 = vmul.f32 %v1352, %v478
        %v1363 = vmul.f32 %v1352, %v479
        %v1364 = vmul.f32 %v1352, %v480
        %v1365 = vmul.f32 %v1352, %v481
        %v1366 = vmul.f32 %v1352, %v482
        %v1367 = vmul.f32 %v1352, %v483
        %v1368 = vmul.f32 %v1352, %v484
        %v1369 = vmul.f32 %v1352, %v485
        %v1370 = vmul.f32 %v1352, %v486
        %v1371 = vmul.f32 %v1352, %v487
        %v1372 = vmul.f32 %v1352, %v488
        %v1373 = vmul.f32 %v1352, %v489
        %v1374 = vmul.f32 %v1352, %v490
        %v1375 = vmul.f32 %v1352, %v491
        %v1376 = vmul.f32 %v1352, %v492
        %v1377 = vmul.f32 %v1352, %v493
        %v1378 = vadd.f32 %v1251, %v1353
        %v1379 = vadd.f32 %v1252, %v1354
        %v1380 = vadd.f32 %v1253, %v1355
        %v1381 = vadd.f32 %v1254, %v1356
        %v1382 = vadd.f32 %v1255, %v1357
        %v1383 = vadd.f32 %v1256, %v1358
        %v1384 = vadd.f32 %v1257, %v1359
        %v1385 = vadd.f32 %v1258, %v1360
        %v1386 = vadd.f32 %v1259, %v1361
        %v1387 = vadd.f32 %v1260, %v1362
        %v1388 = vadd.f32 %v1261, %v1363
        %v1389 = vadd.f32 %v1262, %v1364
        %v1390 = vadd.f32 %v1263, %v1365
        %v1391 = vadd.f32 %v1264, %v1366
        %v1392 = vadd.f32 %v1265, %v1367
        %v1393 = vadd.f32 %v1266, %v1368
        %v1394 = vadd.f32 %v1267, %v1369
        %v1395 = vadd.f32 %v1268, %v1370
        %v1396 = vadd.f32 %v1269, %v1371
        %v1397 = vadd.f32 %v1270, %v1372
        %v1398 = vadd.f32 %v1271, %v1373
        %v1399 = vadd.f32 %v1272, %v1374
        %v1400 = vadd.f32 %v1273, %v1375
        %v1401 = vadd.f32 %v1274, %v1376
        %v1402 = vadd.f32 %v1275, %v1377
        %v1403 = vadd.f32 %v1276, %v1353
        %v1404 = vadd.f32 %v1277, %v1354
        %v1405 = vadd.f32 %v1278, %v1355
        %v1406 = vadd.f32 %v1279, %v1356
        %v1407 = vadd.f32 %v1280, %v1357
        %v1408 = vadd.f32 %v1281, %v1358
        %v1409 = vadd.f32 %v1282, %v1359
        %v1410 = vadd.f32 %v1283, %v1360
        %v1411 = vadd.f32 %v1284, %v1361
        %v1412 = vadd.f32 %v1285, %v1362
        %v1413 = vadd.f32 %v1286, %v1363
        %v1414 = vadd.f32 %v1287, %v1364
        %v1415 = vadd.f32 %v1288, %v1365
        %v1416 = vadd.f32 %v1289, %v1366
        %v1417 = vadd.f32 %v1290, %v1367
        %v1418 = vadd.f32 %v1291, %v1368
        %v1419 = vadd.f32 %v1292, %v1369
        %v1420 = vadd.f32 %v1293, %v1370
        %v1421 = vadd.f32 %v1294, %v1371
        %v1422 = vadd.f32 %v1295, %v1372
        %v1423 = vadd.f32 %v1296, %v1373
        %v1424 = vadd.f32 %v1297, %v1374
        %v1425 = vadd.f32 %v1298, %v1375
        %v1426 = vadd.f32 %v1299, %v1376
        %v1427 = vadd.f32 %v1300, %v1377
        %v1428 = vadd.f32 %v1301, %v1353
        %v1429 = vadd.f32 %v1302, %v1354
        %v1430 = vadd.f32 %v1303, %v1355
        %v1431 = vadd.f32 %v1304, %v1356
        %v1432 = vadd.f32 %v1305, %v1357
        %v1433 = vadd.f32 %v1306, %v1358
        %v1434 = vadd.f32 %v1307, %v1359
        %v1435 = vadd.f32 %v1308, %v1360
        %v1436 = vadd.f32 %v1309, %v1361
        %v1437 = vadd.f32 %v1310, %v1362
        %v1438 = vadd.f32 %v1311, %v1363
        %v1439 = vadd.f32 %v1312, %v1364
        %v1440 = vadd.f32 %v1313, %v1365
        %v1441 = vadd.f32 %v1314, %v1366
        %v1442 = vadd.f32 %v1315, %v1367
        %v1443 = vadd.f32 %v1316, %v1368
        %v1444 = vadd.f32 %v1317, %v1369
        %v1445 = vadd.f32 %v1318, %v1370
        %v1446 = vadd.f32 %v1319, %v1371
        %v1447 = vadd.f32 %v1320, %v1372
        %v1448 = vadd.f32 %v1321, %v1373
        %v1449 = vadd.f32 %v1322, %v1374
        %v1450 = vadd.f32 %v1323, %v1375
        %v1451 = vadd.f32 %v1324, %v1376
        %v1452 = vadd.f32 %v1325, %v1377
        %v1453 = vadd.f32 %v1326, %v1353
        %v1454 = vadd.f32 %v1327, %v1354
        %v1455 = vadd.f32 %v1328, %v1355
        %v1456 = vadd.f32 %v1329, %v1356
        %v1457 = vadd.f32 %v1330, %v1357
        %v1458 = vadd.f32 %v1331, %v1358
        %v1459 = vadd.f32 %v1332, %v1359
        %v1460 = vadd.f32 %v1333, %v1360
        %v1461 = vadd.f32 %v1334, %v1361
        %v1462 = vadd.f32 %v1335, %v1362
        %v1463 = vadd.f32 %v1336, %v1363
        %v1464 = vadd.f32 %v1337, %v1364
        %v1465 = vadd.f32 %v1338, %v1365
        %v1466 = vadd.f32 %v1339, %v1366
        %v1467 = vadd.f32 %v1340, %v1367
        %v1468 = vadd.f32 %v1341, %v1368
        %v1469 = vadd.f32 %v1342, %v1369
        %v1470 = vadd.f32 %v1343, %v1370
        %v1471 = vadd.f32 %v1344, %v1371
        %v1472 = vadd.f32 %v1345, %v1372
        %v1473 = vadd.f32 %v1346, %v1373
        %v1474 = vadd.f32 %v1347, %v1374
        %v1475 = vadd.f32 %v1348, %v1375
        %v1476 = vadd.f32 %v1349, %v1376
        %v1477 = vadd.f32 %v1350, %v1377
        %s1478 = sld [smem:[#allocation4 + $0x2]]
        %v1479 = vstv %s1478
        %v1480 = vadd.f32 %v1378, %v1479
        %v1481 = vadd.f32 %v1379, %v1479
        %v1482 = vadd.f32 %v1380, %v1479
        %v1483 = vadd.f32 %v1381, %v1479
        %v1484 = vadd.f32 %v1382, %v1479
        %v1485 = vadd.f32 %v1383, %v1479
        %v1486 = vadd.f32 %v1384, %v1479
        %v1487 = vadd.f32 %v1385, %v1479
        %v1488 = vadd.f32 %v1386, %v1479
        %v1489 = vadd.f32 %v1387, %v1479
        %v1490 = vadd.f32 %v1388, %v1479
        %v1491 = vadd.f32 %v1389, %v1479
        %v1492 = vadd.f32 %v1390, %v1479
        %v1493 = vadd.f32 %v1391, %v1479
        %v1494 = vadd.f32 %v1392, %v1479
        %v1495 = vadd.f32 %v1393, %v1479
        %v1496 = vadd.f32 %v1394, %v1479
        %v1497 = vadd.f32 %v1395, %v1479
        %v1498 = vadd.f32 %v1396, %v1479
        %v1499 = vadd.f32 %v1397, %v1479
        %v1500 = vadd.f32 %v1398, %v1479
        %v1501 = vadd.f32 %v1399, %v1479
        %v1502 = vadd.f32 %v1400, %v1479
        %v1503 = vadd.f32 %v1401, %v1479
        %v1504 = vadd.f32 %v1402, %v1479
        %v1505 = vadd.f32 %v1403, %v1479
        %v1506 = vadd.f32 %v1404, %v1479
        %v1507 = vadd.f32 %v1405, %v1479
        %v1508 = vadd.f32 %v1406, %v1479
        %v1509 = vadd.f32 %v1407, %v1479
        %v1510 = vadd.f32 %v1408, %v1479
        %v1511 = vadd.f32 %v1409, %v1479
        %v1512 = vadd.f32 %v1410, %v1479
        %v1513 = vadd.f32 %v1411, %v1479
        %v1514 = vadd.f32 %v1412, %v1479
        %v1515 = vadd.f32 %v1413, %v1479
        %v1516 = vadd.f32 %v1414, %v1479
        %v1517 = vadd.f32 %v1415, %v1479
        %v1518 = vadd.f32 %v1416, %v1479
        %v1519 = vadd.f32 %v1417, %v1479
        %v1520 = vadd.f32 %v1418, %v1479
        %v1521 = vadd.f32 %v1419, %v1479
        %v1522 = vadd.f32 %v1420, %v1479
        %v1523 = vadd.f32 %v1421, %v1479
        %v1524 = vadd.f32 %v1422, %v1479
        %v1525 = vadd.f32 %v1423, %v1479
        %v1526 = vadd.f32 %v1424, %v1479
        %v1527 = vadd.f32 %v1425, %v1479
        %v1528 = vadd.f32 %v1426, %v1479
        %v1529 = vadd.f32 %v1427, %v1479
        %v1530 = vadd.f32 %v1428, %v1479
        %v1531 = vadd.f32 %v1429, %v1479
        %v1532 = vadd.f32 %v1430, %v1479
        %v1533 = vadd.f32 %v1431, %v1479
        %v1534 = vadd.f32 %v1432, %v1479
        %v1535 = vadd.f32 %v1433, %v1479
        %v1536 = vadd.f32 %v1434, %v1479
        %v1537 = vadd.f32 %v1435, %v1479
        %v1538 = vadd.f32 %v1436, %v1479
        %v1539 = vadd.f32 %v1437, %v1479
        %v1540 = vadd.f32 %v1438, %v1479
        %v1541 = vadd.f32 %v1439, %v1479
        %v1542 = vadd.f32 %v1440, %v1479
        %v1543 = vadd.f32 %v1441, %v1479
        %v1544 = vadd.f32 %v1442, %v1479
        %v1545 = vadd.f32 %v1443, %v1479
        %v1546 = vadd.f32 %v1444, %v1479
        %v1547 = vadd.f32 %v1445, %v1479
        %v1548 = vadd.f32 %v1446, %v1479
        %v1549 = vadd.f32 %v1447, %v1479
        %v1550 = vadd.f32 %v1448, %v1479
        %v1551 = vadd.f32 %v1449, %v1479
        %v1552 = vadd.f32 %v1450, %v1479
        %v1553 = vadd.f32 %v1451, %v1479
        %v1554 = vadd.f32 %v1452, %v1479
        %v1555 = vadd.f32 %v1453, %v1479
        %v1556 = vadd.f32 %v1454, %v1479
        %v1557 = vadd.f32 %v1455, %v1479
        %v1558 = vadd.f32 %v1456, %v1479
        %v1559 = vadd.f32 %v1457, %v1479
        %v1560 = vadd.f32 %v1458, %v1479
        %v1561 = vadd.f32 %v1459, %v1479
        %v1562 = vadd.f32 %v1460, %v1479
        %v1563 = vadd.f32 %v1461, %v1479
        %v1564 = vadd.f32 %v1462, %v1479
        %v1565 = vadd.f32 %v1463, %v1479
        %v1566 = vadd.f32 %v1464, %v1479
        %v1567 = vadd.f32 %v1465, %v1479
        %v1568 = vadd.f32 %v1466, %v1479
        %v1569 = vadd.f32 %v1467, %v1479
        %v1570 = vadd.f32 %v1468, %v1479
        %v1571 = vadd.f32 %v1469, %v1479
        %v1572 = vadd.f32 %v1470, %v1479
        %v1573 = vadd.f32 %v1471, %v1479
        %v1574 = vadd.f32 %v1472, %v1479
        %v1575 = vadd.f32 %v1473, %v1479
        %v1576 = vadd.f32 %v1474, %v1479
        %v1577 = vadd.f32 %v1475, %v1479
        %v1578 = vadd.f32 %v1476, %v1479
        %v1579 = vadd.f32 %v1477, %v1479
        %v1580 = vrcp.pop %v1480
        %v1581 = vrcp.pop %v1481
        %v1582 = vrcp.pop %v1482
        %v1583 = vrcp.pop %v1483
        %v1584 = vrcp.pop %v1484
        %v1585 = vrcp.pop %v1485
        %v1586 = vrcp.pop %v1486
        %v1587 = vrcp.pop %v1487
        %v1588 = vrcp.pop %v1488
        %v1589 = vrcp.pop %v1489
        %v1590 = vrcp.pop %v1490
        %v1591 = vrcp.pop %v1491
        %v1592 = vrcp.pop %v1492
        %v1593 = vrcp.pop %v1493
        %v1594 = vrcp.pop %v1494
        %v1595 = vrcp.pop %v1495
        %v1596 = vrcp.pop %v1496
        %v1597 = vrcp.pop %v1497
        %v1598 = vrcp.pop %v1498
        %v1599 = vrcp.pop %v1499
        %v1600 = vrcp.pop %v1500
        %v1601 = vrcp.pop %v1501
        %v1602 = vrcp.pop %v1502
        %v1603 = vrcp.pop %v1503
        %v1604 = vrcp.pop %v1504
        %v1605 = vrcp.pop %v1505
        %v1606 = vrcp.pop %v1506
        %v1607 = vrcp.pop %v1507
        %v1608 = vrcp.pop %v1508
        %v1609 = vrcp.pop %v1509
        %v1610 = vrcp.pop %v1510
        %v1611 = vrcp.pop %v1511
        %v1612 = vrcp.pop %v1512
        %v1613 = vrcp.pop %v1513
        %v1614 = vrcp.pop %v1514
        %v1615 = vrcp.pop %v1515
        %v1616 = vrcp.pop %v1516
        %v1617 = vrcp.pop %v1517
        %v1618 = vrcp.pop %v1518
        %v1619 = vrcp.pop %v1519
        %v1620 = vrcp.pop %v1520
        %v1621 = vrcp.pop %v1521
        %v1622 = vrcp.pop %v1522
        %v1623 = vrcp.pop %v1523
        %v1624 = vrcp.pop %v1524
        %v1625 = vrcp.pop %v1525
        %v1626 = vrcp.pop %v1526
        %v1627 = vrcp.pop %v1527
        %v1628 = vrcp.pop %v1528
        %v1629 = vrcp.pop %v1529
        %v1630 = vrcp.pop %v1530
        %v1631 = vrcp.pop %v1531
        %v1632 = vrcp.pop %v1532
        %v1633 = vrcp.pop %v1533
        %v1634 = vrcp.pop %v1534
        %v1635 = vrcp.pop %v1535
        %v1636 = vrcp.pop %v1536
        %v1637 = vrcp.pop %v1537
        %v1638 = vrcp.pop %v1538
        %v1639 = vrcp.pop %v1539
        %v1640 = vrcp.pop %v1540
        %v1641 = vrcp.pop %v1541
        %v1642 = vrcp.pop %v1542
        %v1643 = vrcp.pop %v1543
        %v1644 = vrcp.pop %v1544
        %v1645 = vrcp.pop %v1545
        %v1646 = vrcp.pop %v1546
        %v1647 = vrcp.pop %v1547
        %v1648 = vrcp.pop %v1548
        %v1649 = vrcp.pop %v1549
        %v1650 = vrcp.pop %v1550
        %v1651 = vrcp.pop %v1551
        %v1652 = vrcp.pop %v1552
        %v1653 = vrcp.pop %v1553
        %v1654 = vrcp.pop %v1554
        %v1655 = vrcp.pop %v1555
        %v1656 = vrcp.pop %v1556
        %v1657 = vrcp.pop %v1557
        %v1658 = vrcp.pop %v1558
        %v1659 = vrcp.pop %v1559
        %v1660 = vrcp.pop %v1560
        %v1661 = vrcp.pop %v1561
        %v1662 = vrcp.pop %v1562
        %v1663 = vrcp.pop %v1563
        %v1664 = vrcp.pop %v1564
        %v1665 = vrcp.pop %v1565
        %v1666 = vrcp.pop %v1566
        %v1667 = vrcp.pop %v1567
        %v1668 = vrcp.pop %v1568
        %v1669 = vrcp.pop %v1569
        %v1670 = vrcp.pop %v1570
        %v1671 = vrcp.pop %v1571
        %v1672 = vrcp.pop %v1572
        %v1673 = vrcp.pop %v1573
        %v1674 = vrcp.pop %v1574
        %v1675 = vrcp.pop %v1575
        %v1676 = vrcp.pop %v1576
        %v1677 = vrcp.pop %v1577
        %v1678 = vrcp.pop %v1578
        %v1679 = vrcp.pop %v1579
        %v1680 = vmul.f32 %v1480, %v1580
        %v1681 = vmul.f32 %v1481, %v1581
        %v1682 = vmul.f32 %v1482, %v1582
        %v1683 = vmul.f32 %v1483, %v1583
        %v1684 = vmul.f32 %v1484, %v1584
        %v1685 = vmul.f32 %v1485, %v1585
        %v1686 = vmul.f32 %v1486, %v1586
        %v1687 = vmul.f32 %v1487, %v1587
        %v1688 = vmul.f32 %v1488, %v1588
        %v1689 = vmul.f32 %v1489, %v1589
        %v1690 = vmul.f32 %v1490, %v1590
        %v1691 = vmul.f32 %v1491, %v1591
        %v1692 = vmul.f32 %v1492, %v1592
        %v1693 = vmul.f32 %v1493, %v1593
        %v1694 = vmul.f32 %v1494, %v1594
        %v1695 = vmul.f32 %v1495, %v1595
        %v1696 = vmul.f32 %v1496, %v1596
        %v1697 = vmul.f32 %v1497, %v1597
        %v1698 = vmul.f32 %v1498, %v1598
        %v1699 = vmul.f32 %v1499, %v1599
        %v1700 = vmul.f32 %v1500, %v1600
        %v1701 = vmul.f32 %v1501, %v1601
        %v1702 = vmul.f32 %v1502, %v1602
        %v1703 = vmul.f32 %v1503, %v1603
        %v1704 = vmul.f32 %v1504, %v1604
        %v1705 = vmul.f32 %v1505, %v1605
        %v1706 = vmul.f32 %v1506, %v1606
        %v1707 = vmul.f32 %v1507, %v1607
        %v1708 = vmul.f32 %v1508, %v1608
        %v1709 = vmul.f32 %v1509, %v1609
        %v1710 = vmul.f32 %v1510, %v1610
        %v1711 = vmul.f32 %v1511, %v1611
        %v1712 = vmul.f32 %v1512, %v1612
        %v1713 = vmul.f32 %v1513, %v1613
        %v1714 = vmul.f32 %v1514, %v1614
        %v1715 = vmul.f32 %v1515, %v1615
        %v1716 = vmul.f32 %v1516, %v1616
        %v1717 = vmul.f32 %v1517, %v1617
        %v1718 = vmul.f32 %v1518, %v1618
        %v1719 = vmul.f32 %v1519, %v1619
        %v1720 = vmul.f32 %v1520, %v1620
        %v1721 = vmul.f32 %v1521, %v1621
        %v1722 = vmul.f32 %v1522, %v1622
        %v1723 = vmul.f32 %v1523, %v1623
        %v1724 = vmul.f32 %v1524, %v1624
        %v1725 = vmul.f32 %v1525, %v1625
        %v1726 = vmul.f32 %v1526, %v1626
        %v1727 = vmul.f32 %v1527, %v1627
        %v1728 = vmul.f32 %v1528, %v1628
        %v1729 = vmul.f32 %v1529, %v1629
        %v1730 = vmul.f32 %v1530, %v1630
        %v1731 = vmul.f32 %v1531, %v1631
        %v1732 = vmul.f32 %v1532, %v1632
        %v1733 = vmul.f32 %v1533, %v1633
        %v1734 = vmul.f32 %v1534, %v1634
        %v1735 = vmul.f32 %v1535, %v1635
        %v1736 = vmul.f32 %v1536, %v1636
        %v1737 = vmul.f32 %v1537, %v1637
        %v1738 = vmul.f32 %v1538, %v1638
        %v1739 = vmul.f32 %v1539, %v1639
        %v1740 = vmul.f32 %v1540, %v1640
        %v1741 = vmul.f32 %v1541, %v1641
        %v1742 = vmul.f32 %v1542, %v1642
        %v1743 = vmul.f32 %v1543, %v1643
        %v1744 = vmul.f32 %v1544, %v1644
        %v1745 = vmul.f32 %v1545, %v1645
        %v1746 = vmul.f32 %v1546, %v1646
        %v1747 = vmul.f32 %v1547, %v1647
        %v1748 = vmul.f32 %v1548, %v1648
        %v1749 = vmul.f32 %v1549, %v1649
        %v1750 = vmul.f32 %v1550, %v1650
        %v1751 = vmul.f32 %v1551, %v1651
        %v1752 = vmul.f32 %v1552, %v1652
        %v1753 = vmul.f32 %v1553, %v1653
        %v1754 = vmul.f32 %v1554, %v1654
        %v1755 = vmul.f32 %v1555, %v1655
        %v1756 = vmul.f32 %v1556, %v1656
        %v1757 = vmul.f32 %v1557, %v1657
        %v1758 = vmul.f32 %v1558, %v1658
        %v1759 = vmul.f32 %v1559, %v1659
        %v1760 = vmul.f32 %v1560, %v1660
        %v1761 = vmul.f32 %v1561, %v1661
        %v1762 = vmul.f32 %v1562, %v1662
        %v1763 = vmul.f32 %v1563, %v1663
        %v1764 = vmul.f32 %v1564, %v1664
        %v1765 = vmul.f32 %v1565, %v1665
        %v1766 = vmul.f32 %v1566, %v1666
        %v1767 = vmul.f32 %v1567, %v1667
        %v1768 = vmul.f32 %v1568, %v1668
        %v1769 = vmul.f32 %v1569, %v1669
        %v1770 = vmul.f32 %v1570, %v1670
        %v1771 = vmul.f32 %v1571, %v1671
        %v1772 = vmul.f32 %v1572, %v1672
        %v1773 = vmul.f32 %v1573, %v1673
        %v1774 = vmul.f32 %v1574, %v1674
        %v1775 = vmul.f32 %v1575, %v1675
        %v1776 = vmul.f32 %v1576, %v1676
        %v1777 = vmul.f32 %v1577, %v1677
        %v1778 = vmul.f32 %v1578, %v1678
        %v1779 = vmul.f32 %v1579, %v1679
        %v1780 = vsub.f32 2.0, %v1680
        %v1781 = vsub.f32 2.0, %v1681
        %v1782 = vsub.f32 2.0, %v1682
        %v1783 = vsub.f32 2.0, %v1683
        %v1784 = vsub.f32 2.0, %v1684
        %v1785 = vsub.f32 2.0, %v1685
        %v1786 = vsub.f32 2.0, %v1686
        %v1787 = vsub.f32 2.0, %v1687
        %v1788 = vsub.f32 2.0, %v1688
        %v1789 = vsub.f32 2.0, %v1689
        %v1790 = vsub.f32 2.0, %v1690
        %v1791 = vsub.f32 2.0, %v1691
        %v1792 = vsub.f32 2.0, %v1692
        %v1793 = vsub.f32 2.0, %v1693
        %v1794 = vsub.f32 2.0, %v1694
        %v1795 = vsub.f32 2.0, %v1695
        %v1796 = vsub.f32 2.0, %v1696
        %v1797 = vsub.f32 2.0, %v1697
        %v1798 = vsub.f32 2.0, %v1698
        %v1799 = vsub.f32 2.0, %v1699
        %v1800 = vsub.f32 2.0, %v1700
        %v1801 = vsub.f32 2.0, %v1701
        %v1802 = vsub.f32 2.0, %v1702
        %v1803 = vsub.f32 2.0, %v1703
        %v1804 = vsub.f32 2.0, %v1704
        %v1805 = vsub.f32 2.0, %v1705
        %v1806 = vsub.f32 2.0, %v1706
        %v1807 = vsub.f32 2.0, %v1707
        %v1808 = vsub.f32 2.0, %v1708
        %v1809 = vsub.f32 2.0, %v1709
        %v1810 = vsub.f32 2.0, %v1710
        %v1811 = vsub.f32 2.0, %v1711
        %v1812 = vsub.f32 2.0, %v1712
        %v1813 = vsub.f32 2.0, %v1713
        %v1814 = vsub.f32 2.0, %v1714
        %v1815 = vsub.f32 2.0, %v1715
        %v1816 = vsub.f32 2.0, %v1716
        %v1817 = vsub.f32 2.0, %v1717
        %v1818 = vsub.f32 2.0, %v1718
        %v1819 = vsub.f32 2.0, %v1719
        %v1820 = vsub.f32 2.0, %v1720
        %v1821 = vsub.f32 2.0, %v1721
        %v1822 = vsub.f32 2.0, %v1722
        %v1823 = vsub.f32 2.0, %v1723
        %v1824 = vsub.f32 2.0, %v1724
        %v1825 = vsub.f32 2.0, %v1725
        %v1826 = vsub.f32 2.0, %v1726
        %v1827 = vsub.f32 2.0, %v1727
        %v1828 = vsub.f32 2.0, %v1728
        %v1829 = vsub.f32 2.0, %v1729
        %v1830 = vsub.f32 2.0, %v1730
        %v1831 = vsub.f32 2.0, %v1731
        %v1832 = vsub.f32 2.0, %v1732
        %v1833 = vsub.f32 2.0, %v1733
        %v1834 = vsub.f32 2.0, %v1734
        %v1835 = vsub.f32 2.0, %v1735
        %v1836 = vsub.f32 2.0, %v1736
        %v1837 = vsub.f32 2.0, %v1737
        %v1838 = vsub.f32 2.0, %v1738
        %v1839 = vsub.f32 2.0, %v1739
        %v1840 = vsub.f32 2.0, %v1740
        %v1841 = vsub.f32 2.0, %v1741
        %v1842 = vsub.f32 2.0, %v1742
        %v1843 = vsub.f32 2.0, %v1743
        %v1844 = vsub.f32 2.0, %v1744
        %v1845 = vsub.f32 2.0, %v1745
        %v1846 = vsub.f32 2.0, %v1746
        %v1847 = vsub.f32 2.0, %v1747
        %v1848 = vsub.f32 2.0, %v1748
        %v1849 = vsub.f32 2.0, %v1749
        %v1850 = vsub.f32 2.0, %v1750
        %v1851 = vsub.f32 2.0, %v1751
        %v1852 = vsub.f32 2.0, %v1752
        %v1853 = vsub.f32 2.0, %v1753
        %v1854 = vsub.f32 2.0, %v1754
        %v1855 = vsub.f32 2.0, %v1755
        %v1856 = vsub.f32 2.0, %v1756
        %v1857 = vsub.f32 2.0, %v1757
        %v1858 = vsub.f32 2.0, %v1758
        %v1859 = vsub.f32 2.0, %v1759
        %v1860 = vsub.f32 2.0, %v1760
        %v1861 = vsub.f32 2.0, %v1761
        %v1862 = vsub.f32 2.0, %v1762
        %v1863 = vsub.f32 2.0, %v1763
        %v1864 = vsub.f32 2.0, %v1764
        %v1865 = vsub.f32 2.0, %v1765
        %v1866 = vsub.f32 2.0, %v1766
        %v1867 = vsub.f32 2.0, %v1767
        %v1868 = vsub.f32 2.0, %v1768
        %v1869 = vsub.f32 2.0, %v1769
        %v1870 = vsub.f32 2.0, %v1770
        %v1871 = vsub.f32 2.0, %v1771
        %v1872 = vsub.f32 2.0, %v1772
        %v1873 = vsub.f32 2.0, %v1773
        %v1874 = vsub.f32 2.0, %v1774
        %v1875 = vsub.f32 2.0, %v1775
        %v1876 = vsub.f32 2.0, %v1776
        %v1877 = vsub.f32 2.0, %v1777
        %v1878 = vsub.f32 2.0, %v1778
        %v1879 = vsub.f32 2.0, %v1779
        %v1880 = vmul.f32 %v1580, %v1780
        %v1881 = vmul.f32 %v1581, %v1781
        %v1882 = vmul.f32 %v1582, %v1782
        %v1883 = vmul.f32 %v1583, %v1783
        %v1884 = vmul.f32 %v1584, %v1784
        %v1885 = vmul.f32 %v1585, %v1785
        %v1886 = vmul.f32 %v1586, %v1786
        %v1887 = vmul.f32 %v1587, %v1787
        %v1888 = vmul.f32 %v1588, %v1788
        %v1889 = vmul.f32 %v1589, %v1789
        %v1890 = vmul.f32 %v1590, %v1790
        %v1891 = vmul.f32 %v1591, %v1791
        %v1892 = vmul.f32 %v1592, %v1792
        %v1893 = vmul.f32 %v1593, %v1793
        %v1894 = vmul.f32 %v1594, %v1794
        %v1895 = vmul.f32 %v1595, %v1795
        %v1896 = vmul.f32 %v1596, %v1796
        %v1897 = vmul.f32 %v1597, %v1797
        %v1898 = vmul.f32 %v1598, %v1798
        %v1899 = vmul.f32 %v1599, %v1799
        %v1900 = vmul.f32 %v1600, %v1800
        %v1901 = vmul.f32 %v1601, %v1801
        %v1902 = vmul.f32 %v1602, %v1802
        %v1903 = vmul.f32 %v1603, %v1803
        %v1904 = vmul.f32 %v1604, %v1804
        %v1905 = vmul.f32 %v1605, %v1805
        %v1906 = vmul.f32 %v1606, %v1806
        %v1907 = vmul.f32 %v1607, %v1807
        %v1908 = vmul.f32 %v1608, %v1808
        %v1909 = vmul.f32 %v1609, %v1809
        %v1910 = vmul.f32 %v1610, %v1810
        %v1911 = vmul.f32 %v1611, %v1811
        %v1912 = vmul.f32 %v1612, %v1812
        %v1913 = vmul.f32 %v1613, %v1813
        %v1914 = vmul.f32 %v1614, %v1814
        %v1915 = vmul.f32 %v1615, %v1815
        %v1916 = vmul.f32 %v1616, %v1816
        %v1917 = vmul.f32 %v1617, %v1817
        %v1918 = vmul.f32 %v1618, %v1818
        %v1919 = vmul.f32 %v1619, %v1819
        %v1920 = vmul.f32 %v1620, %v1820
        %v1921 = vmul.f32 %v1621, %v1821
        %v1922 = vmul.f32 %v1622, %v1822
        %v1923 = vmul.f32 %v1623, %v1823
        %v1924 = vmul.f32 %v1624, %v1824
        %v1925 = vmul.f32 %v1625, %v1825
        %v1926 = vmul.f32 %v1626, %v1826
        %v1927 = vmul.f32 %v1627, %v1827
        %v1928 = vmul.f32 %v1628, %v1828
        %v1929 = vmul.f32 %v1629, %v1829
        %v1930 = vmul.f32 %v1630, %v1830
        %v1931 = vmul.f32 %v1631, %v1831
        %v1932 = vmul.f32 %v1632, %v1832
        %v1933 = vmul.f32 %v1633, %v1833
        %v1934 = vmul.f32 %v1634, %v1834
        %v1935 = vmul.f32 %v1635, %v1835
        %v1936 = vmul.f32 %v1636, %v1836
        %v1937 = vmul.f32 %v1637, %v1837
        %v1938 = vmul.f32 %v1638, %v1838
        %v1939 = vmul.f32 %v1639, %v1839
        %v1940 = vmul.f32 %v1640, %v1840
        %v1941 = vmul.f32 %v1641, %v1841
        %v1942 = vmul.f32 %v1642, %v1842
        %v1943 = vmul.f32 %v1643, %v1843
        %v1944 = vmul.f32 %v1644, %v1844
        %v1945 = vmul.f32 %v1645, %v1845
        %v1946 = vmul.f32 %v1646, %v1846
        %v1947 = vmul.f32 %v1647, %v1847
        %v1948 = vmul.f32 %v1648, %v1848
        %v1949 = vmul.f32 %v1649, %v1849
        %v1950 = vmul.f32 %v1650, %v1850
        %v1951 = vmul.f32 %v1651, %v1851
        %v1952 = vmul.f32 %v1652, %v1852
        %v1953 = vmul.f32 %v1653, %v1853
        %v1954 = vmul.f32 %v1654, %v1854
        %v1955 = vmul.f32 %v1655, %v1855
        %v1956 = vmul.f32 %v1656, %v1856
        %v1957 = vmul.f32 %v1657, %v1857
        %v1958 = vmul.f32 %v1658, %v1858
        %v1959 = vmul.f32 %v1659, %v1859
        %v1960 = vmul.f32 %v1660, %v1860
        %v1961 = vmul.f32 %v1661, %v1861
        %v1962 = vmul.f32 %v1662, %v1862
        %v1963 = vmul.f32 %v1663, %v1863
        %v1964 = vmul.f32 %v1664, %v1864
        %v1965 = vmul.f32 %v1665, %v1865
        %v1966 = vmul.f32 %v1666, %v1866
        %v1967 = vmul.f32 %v1667, %v1867
        %v1968 = vmul.f32 %v1668, %v1868
        %v1969 = vmul.f32 %v1669, %v1869
        %v1970 = vmul.f32 %v1670, %v1870
        %v1971 = vmul.f32 %v1671, %v1871
        %v1972 = vmul.f32 %v1672, %v1872
        %v1973 = vmul.f32 %v1673, %v1873
        %v1974 = vmul.f32 %v1674, %v1874
        %v1975 = vmul.f32 %v1675, %v1875
        %v1976 = vmul.f32 %v1676, %v1876
        %v1977 = vmul.f32 %v1677, %v1877
        %v1978 = vmul.f32 %v1678, %v1878
        %v1979 = vmul.f32 %v1679, %v1879
        %v1980 = vmul.f32 %v756, %v1880
        %v1981 = vmul.f32 %v757, %v1881
        %v1982 = vmul.f32 %v758, %v1882
        %v1983 = vmul.f32 %v759, %v1883
        %v1984 = vmul.f32 %v760, %v1884
        %v1985 = vmul.f32 %v761, %v1885
        %v1986 = vmul.f32 %v762, %v1886
        %v1987 = vmul.f32 %v763, %v1887
        %v1988 = vmul.f32 %v764, %v1888
        %v1989 = vmul.f32 %v765, %v1889
        %v1990 = vmul.f32 %v766, %v1890
        %v1991 = vmul.f32 %v767, %v1891
        %v1992 = vmul.f32 %v768, %v1892
        %v1993 = vmul.f32 %v769, %v1893
        %v1994 = vmul.f32 %v770, %v1894
        %v1995 = vmul.f32 %v771, %v1895
        %v1996 = vmul.f32 %v772, %v1896
        %v1997 = vmul.f32 %v773, %v1897
        %v1998 = vmul.f32 %v774, %v1898
        %v1999 = vmul.f32 %v775, %v1899
        %v2000 = vmul.f32 %v776, %v1900
        %v2001 = vmul.f32 %v777, %v1901
        %v2002 = vmul.f32 %v778, %v1902
        %v2003 = vmul.f32 %v779, %v1903
        %v2004 = vmul.f32 %v780, %v1904
        %v2005 = vmul.f32 %v781, %v1905
        %v2006 = vmul.f32 %v782, %v1906
        %v2007 = vmul.f32 %v783, %v1907
        %v2008 = vmul.f32 %v784, %v1908
        %v2009 = vmul.f32 %v785, %v1909
        %v2010 = vmul.f32 %v786, %v1910
        %v2011 = vmul.f32 %v787, %v1911
        %v2012 = vmul.f32 %v788, %v1912
        %v2013 = vmul.f32 %v789, %v1913
        %v2014 = vmul.f32 %v790, %v1914
        %v2015 = vmul.f32 %v791, %v1915
        %v2016 = vmul.f32 %v792, %v1916
        %v2017 = vmul.f32 %v793, %v1917
        %v2018 = vmul.f32 %v794, %v1918
        %v2019 = vmul.f32 %v795, %v1919
        %v2020 = vmul.f32 %v796, %v1920
        %v2021 = vmul.f32 %v797, %v1921
        %v2022 = vmul.f32 %v798, %v1922
        %v2023 = vmul.f32 %v799, %v1923
        %v2024 = vmul.f32 %v800, %v1924
        %v2025 = vmul.f32 %v801, %v1925
        %v2026 = vmul.f32 %v802, %v1926
        %v2027 = vmul.f32 %v803, %v1927
        %v2028 = vmul.f32 %v804, %v1928
        %v2029 = vmul.f32 %v805, %v1929
        %v2030 = vmul.f32 %v806, %v1930
        %v2031 = vmul.f32 %v807, %v1931
        %v2032 = vmul.f32 %v808, %v1932
        %v2033 = vmul.f32 %v809, %v1933
        %v2034 = vmul.f32 %v810, %v1934
        %v2035 = vmul.f32 %v811, %v1935
        %v2036 = vmul.f32 %v812, %v1936
        %v2037 = vmul.f32 %v813, %v1937
        %v2038 = vmul.f32 %v814, %v1938
        %v2039 = vmul.f32 %v815, %v1939
        %v2040 = vmul.f32 %v816, %v1940
        %v2041 = vmul.f32 %v817, %v1941
        %v2042 = vmul.f32 %v818, %v1942
        %v2043 = vmul.f32 %v819, %v1943
        %v2044 = vmul.f32 %v820, %v1944
        %v2045 = vmul.f32 %v821, %v1945
        %v2046 = vmul.f32 %v822, %v1946
        %v2047 = vmul.f32 %v823, %v1947
        %v2048 = vmul.f32 %v824, %v1948
        %v2049 = vmul.f32 %v825, %v1949
        %v2050 = vmul.f32 %v826, %v1950
        %v2051 = vmul.f32 %v827, %v1951
        %v2052 = vmul.f32 %v828, %v1952
        %v2053 = vmul.f32 %v829, %v1953
        %v2054 = vmul.f32 %v830, %v1954
        %v2055 = vmul.f32 %v831, %v1955
        %v2056 = vmul.f32 %v832, %v1956
        %v2057 = vmul.f32 %v833, %v1957
        %v2058 = vmul.f32 %v834, %v1958
        %v2059 = vmul.f32 %v835, %v1959
        %v2060 = vmul.f32 %v836, %v1960
        %v2061 = vmul.f32 %v837, %v1961
        %v2062 = vmul.f32 %v838, %v1962
        %v2063 = vmul.f32 %v839, %v1963
        %v2064 = vmul.f32 %v840, %v1964
        %v2065 = vmul.f32 %v841, %v1965
        %v2066 = vmul.f32 %v842, %v1966
        %v2067 = vmul.f32 %v843, %v1967
        %v2068 = vmul.f32 %v844, %v1968
        %v2069 = vmul.f32 %v845, %v1969
        %v2070 = vmul.f32 %v846, %v1970
        %v2071 = vmul.f32 %v847, %v1971
        %v2072 = vmul.f32 %v848, %v1972
        %v2073 = vmul.f32 %v849, %v1973
        %v2074 = vmul.f32 %v850, %v1974
        %v2075 = vmul.f32 %v851, %v1975
        %v2076 = vmul.f32 %v852, %v1976
        %v2077 = vmul.f32 %v853, %v1977
        %v2078 = vmul.f32 %v854, %v1978
        %v2079 = vmul.f32 %v855, %v1979
        %v2080 = vmul.f32 %v1118, %v1880
        %v2081 = vmul.f32 %v1119, %v1881
        %v2082 = vmul.f32 %v1120, %v1882
        %v2083 = vmul.f32 %v1121, %v1883
        %v2084 = vmul.f32 %v1122, %v1884
        %v2085 = vmul.f32 %v1123, %v1885
        %v2086 = vmul.f32 %v1124, %v1886
        %v2087 = vmul.f32 %v1125, %v1887
        %v2088 = vmul.f32 %v1126, %v1888
        %v2089 = vmul.f32 %v1127, %v1889
        %v2090 = vmul.f32 %v1128, %v1890
        %v2091 = vmul.f32 %v1129, %v1891
        %v2092 = vmul.f32 %v1130, %v1892
        %v2093 = vmul.f32 %v1131, %v1893
        %v2094 = vmul.f32 %v1132, %v1894
        %v2095 = vmul.f32 %v1133, %v1895
        %v2096 = vmul.f32 %v1134, %v1896
        %v2097 = vmul.f32 %v1135, %v1897
        %v2098 = vmul.f32 %v1136, %v1898
        %v2099 = vmul.f32 %v1137, %v1899
        %v2100 = vmul.f32 %v1138, %v1900
        %v2101 = vmul.f32 %v1139, %v1901
        %v2102 = vmul.f32 %v1140, %v1902
        %v2103 = vmul.f32 %v1141, %v1903
        %v2104 = vmul.f32 %v1142, %v1904
        %v2105 = vmul.f32 %v1143, %v1905
        %v2106 = vmul.f32 %v1144, %v1906
        %v2107 = vmul.f32 %v1145, %v1907
        %v2108 = vmul.f32 %v1146, %v1908
        %v2109 = vmul.f32 %v1147, %v1909
        %v2110 = vmul.f32 %v1148, %v1910
        %v2111 = vmul.f32 %v1149, %v1911
        %v2112 = vmul.f32 %v1150, %v1912
        %v2113 = vmul.f32 %v1151, %v1913
        %v2114 = vmul.f32 %v1152, %v1914
        %v2115 = vmul.f32 %v1153, %v1915
        %v2116 = vmul.f32 %v1154, %v1916
        %v2117 = vmul.f32 %v1155, %v1917
        %v2118 = vmul.f32 %v1156, %v1918
        %v2119 = vmul.f32 %v1157, %v1919
        %v2120 = vmul.f32 %v1158, %v1920
        %v2121 = vmul.f32 %v1159, %v1921
        %v2122 = vmul.f32 %v1160, %v1922
        %v2123 = vmul.f32 %v1161, %v1923
        %v2124 = vmul.f32 %v1162, %v1924
        %v2125 = vmul.f32 %v1163, %v1925
        %v2126 = vmul.f32 %v1164, %v1926
        %v2127 = vmul.f32 %v1165, %v1927
        %v2128 = vmul.f32 %v1166, %v1928
        %v2129 = vmul.f32 %v1167, %v1929
        %v2130 = vmul.f32 %v1168, %v1930
        %v2131 = vmul.f32 %v1169, %v1931
        %v2132 = vmul.f32 %v1170, %v1932
        %v2133 = vmul.f32 %v1171, %v1933
        %v2134 = vmul.f32 %v1172, %v1934
        %v2135 = vmul.f32 %v1173, %v1935
        %v2136 = vmul.f32 %v1174, %v1936
        %v2137 = vmul.f32 %v1175, %v1937
        %v2138 = vmul.f32 %v1176, %v1938
        %v2139 = vmul.f32 %v1177, %v1939
        %v2140 = vmul.f32 %v1178, %v1940
        %v2141 = vmul.f32 %v1179, %v1941
        %v2142 = vmul.f32 %v1180, %v1942
        %v2143 = vmul.f32 %v1181, %v1943
        %v2144 = vmul.f32 %v1182, %v1944
        %v2145 = vmul.f32 %v1183, %v1945
        %v2146 = vmul.f32 %v1184, %v1946
        %v2147 = vmul.f32 %v1185, %v1947
        %v2148 = vmul.f32 %v1186, %v1948
        %v2149 = vmul.f32 %v1187, %v1949
        %v2150 = vmul.f32 %v1188, %v1950
        %v2151 = vmul.f32 %v1189, %v1951
        %v2152 = vmul.f32 %v1190, %v1952
        %v2153 = vmul.f32 %v1191, %v1953
        %v2154 = vmul.f32 %v1192, %v1954
        %v2155 = vmul.f32 %v1193, %v1955
        %v2156 = vmul.f32 %v1194, %v1956
        %v2157 = vmul.f32 %v1195, %v1957
        %v2158 = vmul.f32 %v1196, %v1958
        %v2159 = vmul.f32 %v1197, %v1959
        %v2160 = vmul.f32 %v1198, %v1960
        %v2161 = vmul.f32 %v1199, %v1961
        %v2162 = vmul.f32 %v1200, %v1962
        %v2163 = vmul.f32 %v1201, %v1963
        %v2164 = vmul.f32 %v1202, %v1964
        %v2165 = vmul.f32 %v1203, %v1965
        %v2166 = vmul.f32 %v1204, %v1966
        %v2167 = vmul.f32 %v1205, %v1967
        %v2168 = vmul.f32 %v1206, %v1968
        %v2169 = vmul.f32 %v1207, %v1969
        %v2170 = vmul.f32 %v1208, %v1970
        %v2171 = vmul.f32 %v1209, %v1971
        %v2172 = vmul.f32 %v1210, %v1972
        %v2173 = vmul.f32 %v1211, %v1973
        %v2174 = vmul.f32 %v1212, %v1974
        %v2175 = vmul.f32 %v1213, %v1975
        %v2176 = vmul.f32 %v1214, %v1976
        %v2177 = vmul.f32 %v1215, %v1977
        %v2178 = vmul.f32 %v1216, %v1978
        %v2179 = vmul.f32 %v1217, %v1979
        %2180 = vst [vmem:[%s172] sm:$0xff] %v1980
        %2181 = vst [vmem:[%s172 + $0x8] sm:$0xff] %v1981
        %2182 = vst [vmem:[%s172 + $0x10] sm:$0xff] %v1982
        %2183 = vst [vmem:[%s172 + $0x18] sm:$0xff] %v1983
        %2184 = vst [vmem:[%s172 + $0x20] sm:$0xff] %v1984
        %2185 = vst [vmem:[%s172 + $0x28] sm:$0xff] %v1985
        %2186 = vst [vmem:[%s172 + $0x30] sm:$0xff] %v1986
        %2187 = vst [vmem:[%s172 + $0x38] sm:$0xff] %v1987
        %2188 = vst [vmem:[%s172 + $0x40] sm:$0xff] %v1988
        %2189 = vst [vmem:[%s172 + $0x48] sm:$0xff] %v1989
        %2190 = vst [vmem:[%s172 + $0x50] sm:$0xff] %v1990
        %2191 = vst [vmem:[%s172 + $0x58] sm:$0xff] %v1991
        %2192 = vst [vmem:[%s172 + $0x60] sm:$0xff] %v1992
        %2193 = vst [vmem:[%s172 + $0x68] sm:$0xff] %v1993
        %2194 = vst [vmem:[%s172 + $0x70] sm:$0xff] %v1994
        %2195 = vst [vmem:[%s172 + $0x78] sm:$0xff] %v1995
        %2196 = vst [vmem:[%s172 + $0x80] sm:$0xff] %v1996
        %2197 = vst [vmem:[%s172 + $0x88] sm:$0xff] %v1997
        %2198 = vst [vmem:[%s172 + $0x90] sm:$0xff] %v1998
        %2199 = vst [vmem:[%s172 + $0x98] sm:$0xff] %v1999
        %2200 = vst [vmem:[%s172 + $0xa0] sm:$0xff] %v2000
        %2201 = vst [vmem:[%s172 + $0xa8] sm:$0xff] %v2001
        %2202 = vst [vmem:[%s172 + $0xb0] sm:$0xff] %v2002
        %2203 = vst [vmem:[%s172 + $0xb8] sm:$0xff] %v2003
        %2204 = vst [vmem:[%s172 + $0xc0] sm:$0xff] %v2004
        %2205 = vst [vmem:[%s172 + $0xc8] sm:$0xff] %v2005
        %2206 = vst [vmem:[%s172 + $0xd0] sm:$0xff] %v2006
        %2207 = vst [vmem:[%s172 + $0xd8] sm:$0xff] %v2007
        %2208 = vst [vmem:[%s172 + $0xe0] sm:$0xff] %v2008
        %2209 = vst [vmem:[%s172 + $0xe8] sm:$0xff] %v2009
        %2210 = vst [vmem:[%s172 + $0xf0] sm:$0xff] %v2010
        %2211 = vst [vmem:[%s172 + $0xf8] sm:$0xff] %v2011
        %2212 = vst [vmem:[%s172 + $0x100] sm:$0xff] %v2012
        %2213 = vst [vmem:[%s172 + $0x108] sm:$0xff] %v2013
        %2214 = vst [vmem:[%s172 + $0x110] sm:$0xff] %v2014
        %2215 = vst [vmem:[%s172 + $0x118] sm:$0xff] %v2015
        %2216 = vst [vmem:[%s172 + $0x120] sm:$0xff] %v2016
        %2217 = vst [vmem:[%s172 + $0x128] sm:$0xff] %v2017
        %2218 = vst [vmem:[%s172 + $0x130] sm:$0xff] %v2018
        %2219 = vst [vmem:[%s172 + $0x138] sm:$0xff] %v2019
        %2220 = vst [vmem:[%s172 + $0x140] sm:$0xff] %v2020
        %2221 = vst [vmem:[%s172 + $0x148] sm:$0xff] %v2021
        %2222 = vst [vmem:[%s172 + $0x150] sm:$0xff] %v2022
        %2223 = vst [vmem:[%s172 + $0x158] sm:$0xff] %v2023
        %2224 = vst [vmem:[%s172 + $0x160] sm:$0xff] %v2024
        %2225 = vst [vmem:[%s172 + $0x168] sm:$0xff] %v2025
        %2226 = vst [vmem:[%s172 + $0x170] sm:$0xff] %v2026
        %2227 = vst [vmem:[%s172 + $0x178] sm:$0xff] %v2027
        %2228 = vst [vmem:[%s172 + $0x180] sm:$0xff] %v2028
        %2229 = vst [vmem:[%s172 + $0x188] sm:$0xff] %v2029
        %2230 = vst [vmem:[%s172 + $0x190] sm:$0xff] %v2030
        %2231 = vst [vmem:[%s172 + $0x198] sm:$0xff] %v2031
        %2232 = vst [vmem:[%s172 + $0x1a0] sm:$0xff] %v2032
        %2233 = vst [vmem:[%s172 + $0x1a8] sm:$0xff] %v2033
        %2234 = vst [vmem:[%s172 + $0x1b0] sm:$0xff] %v2034
        %2235 = vst [vmem:[%s172 + $0x1b8] sm:$0xff] %v2035
        %2236 = vst [vmem:[%s172 + $0x1c0] sm:$0xff] %v2036
        %2237 = vst [vmem:[%s172 + $0x1c8] sm:$0xff] %v2037
        %2238 = vst [vmem:[%s172 + $0x1d0] sm:$0xff] %v2038
        %2239 = vst [vmem:[%s172 + $0x1d8] sm:$0xff] %v2039
        %2240 = vst [vmem:[%s172 + $0x1e0] sm:$0xff] %v2040
        %2241 = vst [vmem:[%s172 + $0x1e8] sm:$0xff] %v2041
        %2242 = vst [vmem:[%s172 + $0x1f0] sm:$0xff] %v2042
        %2243 = vst [vmem:[%s172 + $0x1f8] sm:$0xff] %v2043
        %2244 = vst [vmem:[%s172 + $0x200] sm:$0xff] %v2044
        %2245 = vst [vmem:[%s172 + $0x208] sm:$0xff] %v2045
        %2246 = vst [vmem:[%s172 + $0x210] sm:$0xff] %v2046
        %2247 = vst [vmem:[%s172 + $0x218] sm:$0xff] %v2047
        %2248 = vst [vmem:[%s172 + $0x220] sm:$0xff] %v2048
        %2249 = vst [vmem:[%s172 + $0x228] sm:$0xff] %v2049
        %2250 = vst [vmem:[%s172 + $0x230] sm:$0xff] %v2050
        %2251 = vst [vmem:[%s172 + $0x238] sm:$0xff] %v2051
        %2252 = vst [vmem:[%s172 + $0x240] sm:$0xff] %v2052
        %2253 = vst [vmem:[%s172 + $0x248] sm:$0xff] %v2053
        %2254 = vst [vmem:[%s172 + $0x250] sm:$0xff] %v2054
        %2255 = vst [vmem:[%s172 + $0x258] sm:$0xff] %v2055
        %2256 = vst [vmem:[%s172 + $0x260] sm:$0xff] %v2056
        %2257 = vst [vmem:[%s172 + $0x268] sm:$0xff] %v2057
        %2258 = vst [vmem:[%s172 + $0x270] sm:$0xff] %v2058
        %2259 = vst [vmem:[%s172 + $0x278] sm:$0xff] %v2059
        %2260 = vst [vmem:[%s172 + $0x280] sm:$0xff] %v2060
        %2261 = vst [vmem:[%s172 + $0x288] sm:$0xff] %v2061
        %2262 = vst [vmem:[%s172 + $0x290] sm:$0xff] %v2062
        %2263 = vst [vmem:[%s172 + $0x298] sm:$0xff] %v2063
        %2264 = vst [vmem:[%s172 + $0x2a0] sm:$0xff] %v2064
        %2265 = vst [vmem:[%s172 + $0x2a8] sm:$0xff] %v2065
        %2266 = vst [vmem:[%s172 + $0x2b0] sm:$0xff] %v2066
        %2267 = vst [vmem:[%s172 + $0x2b8] sm:$0xff] %v2067
        %2268 = vst [vmem:[%s172 + $0x2c0] sm:$0xff] %v2068
        %2269 = vst [vmem:[%s172 + $0x2c8] sm:$0xff] %v2069
        %2270 = vst [vmem:[%s172 + $0x2d0] sm:$0xff] %v2070
        %2271 = vst [vmem:[%s172 + $0x2d8] sm:$0xff] %v2071
        %2272 = vst [vmem:[%s172 + $0x2e0] sm:$0xff] %v2072
        %2273 = vst [vmem:[%s172 + $0x2e8] sm:$0xff] %v2073
        %2274 = vst [vmem:[%s172 + $0x2f0] sm:$0xff] %v2074
        %2275 = vst [vmem:[%s172 + $0x2f8] sm:$0xff] %v2075
        %2276 = vst [vmem:[%s172 + $0x300] sm:$0xff] %v2076
        %2277 = vst [vmem:[%s172 + $0x308] sm:$0xff] %v2077
        %2278 = vst [vmem:[%s172 + $0x310] sm:$0xff] %v2078
        %2279 = vst [vmem:[%s172 + $0x318] sm:$0xff] %v2079
        %s2280 = scalar_lea.vmem %s172, 800 [#allocation6]
        %2281 = vst [vmem:[%s2280] sm:$0xff] %v2080
        %2282 = vst [vmem:[%s2280 + $0x8] sm:$0xff] %v2081
        %2283 = vst [vmem:[%s2280 + $0x10] sm:$0xff] %v2082
        %2284 = vst [vmem:[%s2280 + $0x18] sm:$0xff] %v2083
        %2285 = vst [vmem:[%s2280 + $0x20] sm:$0xff] %v2084
        %2286 = vst [vmem:[%s2280 + $0x28] sm:$0xff] %v2085
        %2287 = vst [vmem:[%s2280 + $0x30] sm:$0xff] %v2086
        %2288 = vst [vmem:[%s2280 + $0x38] sm:$0xff] %v2087
        %2289 = vst [vmem:[%s2280 + $0x40] sm:$0xff] %v2088
        %2290 = vst [vmem:[%s2280 + $0x48] sm:$0xff] %v2089
        %2291 = vst [vmem:[%s2280 + $0x50] sm:$0xff] %v2090
        %2292 = vst [vmem:[%s2280 + $0x58] sm:$0xff] %v2091
        %2293 = vst [vmem:[%s2280 + $0x60] sm:$0xff] %v2092
        %2294 = vst [vmem:[%s2280 + $0x68] sm:$0xff] %v2093
        %2295 = vst [vmem:[%s2280 + $0x70] sm:$0xff] %v2094
        %2296 = vst [vmem:[%s2280 + $0x78] sm:$0xff] %v2095
        %2297 = vst [vmem:[%s2280 + $0x80] sm:$0xff] %v2096
        %2298 = vst [vmem:[%s2280 + $0x88] sm:$0xff] %v2097
        %2299 = vst [vmem:[%s2280 + $0x90] sm:$0xff] %v2098
        %2300 = vst [vmem:[%s2280 + $0x98] sm:$0xff] %v2099
        %2301 = vst [vmem:[%s2280 + $0xa0] sm:$0xff] %v2100
        %2302 = vst [vmem:[%s2280 + $0xa8] sm:$0xff] %v2101
        %2303 = vst [vmem:[%s2280 + $0xb0] sm:$0xff] %v2102
        %2304 = vst [vmem:[%s2280 + $0xb8] sm:$0xff] %v2103
        %2305 = vst [vmem:[%s2280 + $0xc0] sm:$0xff] %v2104
        %2306 = vst [vmem:[%s2280 + $0xc8] sm:$0xff] %v2105
        %2307 = vst [vmem:[%s2280 + $0xd0] sm:$0xff] %v2106
        %2308 = vst [vmem:[%s2280 + $0xd8] sm:$0xff] %v2107
        %2309 = vst [vmem:[%s2280 + $0xe0] sm:$0xff] %v2108
        %2310 = vst [vmem:[%s2280 + $0xe8] sm:$0xff] %v2109
        %2311 = vst [vmem:[%s2280 + $0xf0] sm:$0xff] %v2110
        %2312 = vst [vmem:[%s2280 + $0xf8] sm:$0xff] %v2111
        %2313 = vst [vmem:[%s2280 + $0x100] sm:$0xff] %v2112
        %2314 = vst [vmem:[%s2280 + $0x108] sm:$0xff] %v2113
        %2315 = vst [vmem:[%s2280 + $0x110] sm:$0xff] %v2114
        %2316 = vst [vmem:[%s2280 + $0x118] sm:$0xff] %v2115
        %2317 = vst [vmem:[%s2280 + $0x120] sm:$0xff] %v2116
        %2318 = vst [vmem:[%s2280 + $0x128] sm:$0xff] %v2117
        %2319 = vst [vmem:[%s2280 + $0x130] sm:$0xff] %v2118
        %2320 = vst [vmem:[%s2280 + $0x138] sm:$0xff] %v2119
        %2321 = vst [vmem:[%s2280 + $0x140] sm:$0xff] %v2120
        %2322 = vst [vmem:[%s2280 + $0x148] sm:$0xff] %v2121
        %2323 = vst [vmem:[%s2280 + $0x150] sm:$0xff] %v2122
        %2324 = vst [vmem:[%s2280 + $0x158] sm:$0xff] %v2123
        %2325 = vst [vmem:[%s2280 + $0x160] sm:$0xff] %v2124
        %2326 = vst [vmem:[%s2280 + $0x168] sm:$0xff] %v2125
        %2327 = vst [vmem:[%s2280 + $0x170] sm:$0xff] %v2126
        %2328 = vst [vmem:[%s2280 + $0x178] sm:$0xff] %v2127
        %2329 = vst [vmem:[%s2280 + $0x180] sm:$0xff] %v2128
        %2330 = vst [vmem:[%s2280 + $0x188] sm:$0xff] %v2129
        %2331 = vst [vmem:[%s2280 + $0x190] sm:$0xff] %v2130
        %2332 = vst [vmem:[%s2280 + $0x198] sm:$0xff] %v2131
        %2333 = vst [vmem:[%s2280 + $0x1a0] sm:$0xff] %v2132
        %2334 = vst [vmem:[%s2280 + $0x1a8] sm:$0xff] %v2133
        %2335 = vst [vmem:[%s2280 + $0x1b0] sm:$0xff] %v2134
        %2336 = vst [vmem:[%s2280 + $0x1b8] sm:$0xff] %v2135
        %2337 = vst [vmem:[%s2280 + $0x1c0] sm:$0xff] %v2136
        %2338 = vst [vmem:[%s2280 + $0x1c8] sm:$0xff] %v2137
        %2339 = vst [vmem:[%s2280 + $0x1d0] sm:$0xff] %v2138
        %2340 = vst [vmem:[%s2280 + $0x1d8] sm:$0xff] %v2139
        %2341 = vst [vmem:[%s2280 + $0x1e0] sm:$0xff] %v2140
        %2342 = vst [vmem:[%s2280 + $0x1e8] sm:$0xff] %v2141
        %2343 = vst [vmem:[%s2280 + $0x1f0] sm:$0xff] %v2142
        %2344 = vst [vmem:[%s2280 + $0x1f8] sm:$0xff] %v2143
        %2345 = vst [vmem:[%s2280 + $0x200] sm:$0xff] %v2144
        %2346 = vst [vmem:[%s2280 + $0x208] sm:$0xff] %v2145
        %2347 = vst [vmem:[%s2280 + $0x210] sm:$0xff] %v2146
        %2348 = vst [vmem:[%s2280 + $0x218] sm:$0xff] %v2147
        %2349 = vst [vmem:[%s2280 + $0x220] sm:$0xff] %v2148
        %2350 = vst [vmem:[%s2280 + $0x228] sm:$0xff] %v2149
        %2351 = vst [vmem:[%s2280 + $0x230] sm:$0xff] %v2150
        %2352 = vst [vmem:[%s2280 + $0x238] sm:$0xff] %v2151
        %2353 = vst [vmem:[%s2280 + $0x240] sm:$0xff] %v2152
        %2354 = vst [vmem:[%s2280 + $0x248] sm:$0xff] %v2153
        %2355 = vst [vmem:[%s2280 + $0x250] sm:$0xff] %v2154
        %2356 = vst [vmem:[%s2280 + $0x258] sm:$0xff] %v2155
        %2357 = vst [vmem:[%s2280 + $0x260] sm:$0xff] %v2156
        %2358 = vst [vmem:[%s2280 + $0x268] sm:$0xff] %v2157
        %2359 = vst [vmem:[%s2280 + $0x270] sm:$0xff] %v2158
        %2360 = vst [vmem:[%s2280 + $0x278] sm:$0xff] %v2159
        %2361 = vst [vmem:[%s2280 + $0x280] sm:$0xff] %v2160
        %2362 = vst [vmem:[%s2280 + $0x288] sm:$0xff] %v2161
        %2363 = vst [vmem:[%s2280 + $0x290] sm:$0xff] %v2162
        %2364 = vst [vmem:[%s2280 + $0x298] sm:$0xff] %v2163
        %2365 = vst [vmem:[%s2280 + $0x2a0] sm:$0xff] %v2164
        %2366 = vst [vmem:[%s2280 + $0x2a8] sm:$0xff] %v2165
        %2367 = vst [vmem:[%s2280 + $0x2b0] sm:$0xff] %v2166
        %2368 = vst [vmem:[%s2280 + $0x2b8] sm:$0xff] %v2167
        %2369 = vst [vmem:[%s2280 + $0x2c0] sm:$0xff] %v2168
        %2370 = vst [vmem:[%s2280 + $0x2c8] sm:$0xff] %v2169
        %2371 = vst [vmem:[%s2280 + $0x2d0] sm:$0xff] %v2170
        %2372 = vst [vmem:[%s2280 + $0x2d8] sm:$0xff] %v2171
        %2373 = vst [vmem:[%s2280 + $0x2e0] sm:$0xff] %v2172
        %2374 = vst [vmem:[%s2280 + $0x2e8] sm:$0xff] %v2173
        %2375 = vst [vmem:[%s2280 + $0x2f0] sm:$0xff] %v2174
        %2376 = vst [vmem:[%s2280 + $0x2f8] sm:$0xff] %v2175
        %2377 = vst [vmem:[%s2280 + $0x300] sm:$0xff] %v2176
        %2378 = vst [vmem:[%s2280 + $0x308] sm:$0xff] %v2177
        %2379 = vst [vmem:[%s2280 + $0x310] sm:$0xff] %v2178
        %2380 = vst [vmem:[%s2280 + $0x318] sm:$0xff] %v2179
        %vm2381 = vcmp.gt.f32.partialorder %v1480, 0.0
        %vm2382 = vcmp.gt.f32.partialorder %v1481, 0.0
        %vm2383 = vcmp.gt.f32.partialorder %v1482, 0.0
        %vm2384 = vcmp.gt.f32.partialorder %v1483, 0.0
        %vm2385 = vcmp.gt.f32.partialorder %v1484, 0.0
        %vm2386 = vcmp.gt.f32.partialorder %v1485, 0.0
        %vm2387 = vcmp.gt.f32.partialorder %v1486, 0.0
        %vm2388 = vcmp.gt.f32.partialorder %v1487, 0.0
        %vm2389 = vcmp.gt.f32.partialorder %v1488, 0.0
        %vm2390 = vcmp.gt.f32.partialorder %v1489, 0.0
        %vm2391 = vcmp.gt.f32.partialorder %v1490, 0.0
        %vm2392 = vcmp.gt.f32.partialorder %v1491, 0.0
        %vm2393 = vcmp.gt.f32.partialorder %v1492, 0.0
        %vm2394 = vcmp.gt.f32.partialorder %v1493, 0.0
        %vm2395 = vcmp.gt.f32.partialorder %v1494, 0.0
        %vm2396 = vcmp.gt.f32.partialorder %v1495, 0.0
        %vm2397 = vcmp.gt.f32.partialorder %v1496, 0.0
        %vm2398 = vcmp.gt.f32.partialorder %v1497, 0.0
        %vm2399 = vcmp.gt.f32.partialorder %v1498, 0.0
        %vm2400 = vcmp.gt.f32.partialorder %v1499, 0.0
        %vm2401 = vcmp.gt.f32.partialorder %v1500, 0.0
        %vm2402 = vcmp.gt.f32.partialorder %v1501, 0.0
        %vm2403 = vcmp.gt.f32.partialorder %v1502, 0.0
        %vm2404 = vcmp.gt.f32.partialorder %v1503, 0.0
        %vm2405 = vcmp.gt.f32.partialorder %v1504, 0.0
        %vm2406 = vcmp.gt.f32.partialorder %v1505, 0.0
        %vm2407 = vcmp.gt.f32.partialorder %v1506, 0.0
        %vm2408 = vcmp.gt.f32.partialorder %v1507, 0.0
        %vm2409 = vcmp.gt.f32.partialorder %v1508, 0.0
        %vm2410 = vcmp.gt.f32.partialorder %v1509, 0.0
        %vm2411 = vcmp.gt.f32.partialorder %v1510, 0.0
        %vm2412 = vcmp.gt.f32.partialorder %v1511, 0.0
        %vm2413 = vcmp.gt.f32.partialorder %v1512, 0.0
        %vm2414 = vcmp.gt.f32.partialorder %v1513, 0.0
        %vm2415 = vcmp.gt.f32.partialorder %v1514, 0.0
        %vm2416 = vcmp.gt.f32.partialorder %v1515, 0.0
        %vm2417 = vcmp.gt.f32.partialorder %v1516, 0.0
        %vm2418 = vcmp.gt.f32.partialorder %v1517, 0.0
        %vm2419 = vcmp.gt.f32.partialorder %v1518, 0.0
        %vm2420 = vcmp.gt.f32.partialorder %v1519, 0.0
        %vm2421 = vcmp.gt.f32.partialorder %v1520, 0.0
        %vm2422 = vcmp.gt.f32.partialorder %v1521, 0.0
        %vm2423 = vcmp.gt.f32.partialorder %v1522, 0.0
        %vm2424 = vcmp.gt.f32.partialorder %v1523, 0.0
        %vm2425 = vcmp.gt.f32.partialorder %v1524, 0.0
        %vm2426 = vcmp.gt.f32.partialorder %v1525, 0.0
        %vm2427 = vcmp.gt.f32.partialorder %v1526, 0.0
        %vm2428 = vcmp.gt.f32.partialorder %v1527, 0.0
        %vm2429 = vcmp.gt.f32.partialorder %v1528, 0.0
        %vm2430 = vcmp.gt.f32.partialorder %v1529, 0.0
        %vm2431 = vcmp.gt.f32.partialorder %v1530, 0.0
        %vm2432 = vcmp.gt.f32.partialorder %v1531, 0.0
        %vm2433 = vcmp.gt.f32.partialorder %v1532, 0.0
        %vm2434 = vcmp.gt.f32.partialorder %v1533, 0.0
        %vm2435 = vcmp.gt.f32.partialorder %v1534, 0.0
        %vm2436 = vcmp.gt.f32.partialorder %v1535, 0.0
        %vm2437 = vcmp.gt.f32.partialorder %v1536, 0.0
        %vm2438 = vcmp.gt.f32.partialorder %v1537, 0.0
        %vm2439 = vcmp.gt.f32.partialorder %v1538, 0.0
        %vm2440 = vcmp.gt.f32.partialorder %v1539, 0.0
        %vm2441 = vcmp.gt.f32.partialorder %v1540, 0.0
        %vm2442 = vcmp.gt.f32.partialorder %v1541, 0.0
        %vm2443 = vcmp.gt.f32.partialorder %v1542, 0.0
        %vm2444 = vcmp.gt.f32.partialorder %v1543, 0.0
        %vm2445 = vcmp.gt.f32.partialorder %v1544, 0.0
        %vm2446 = vcmp.gt.f32.partialorder %v1545, 0.0
        %vm2447 = vcmp.gt.f32.partialorder %v1546, 0.0
        %vm2448 = vcmp.gt.f32.partialorder %v1547, 0.0
        %vm2449 = vcmp.gt.f32.partialorder %v1548, 0.0
        %vm2450 = vcmp.gt.f32.partialorder %v1549, 0.0
        %vm2451 = vcmp.gt.f32.partialorder %v1550, 0.0
        %vm2452 = vcmp.gt.f32.partialorder %v1551, 0.0
        %vm2453 = vcmp.gt.f32.partialorder %v1552, 0.0
        %vm2454 = vcmp.gt.f32.partialorder %v1553, 0.0
        %vm2455 = vcmp.gt.f32.partialorder %v1554, 0.0
        %vm2456 = vcmp.gt.f32.partialorder %v1555, 0.0
        %vm2457 = vcmp.gt.f32.partialorder %v1556, 0.0
        %vm2458 = vcmp.gt.f32.partialorder %v1557, 0.0
        %vm2459 = vcmp.gt.f32.partialorder %v1558, 0.0
        %vm2460 = vcmp.gt.f32.partialorder %v1559, 0.0
        %vm2461 = vcmp.gt.f32.partialorder %v1560, 0.0
        %vm2462 = vcmp.gt.f32.partialorder %v1561, 0.0
        %vm2463 = vcmp.gt.f32.partialorder %v1562, 0.0
        %vm2464 = vcmp.gt.f32.partialorder %v1563, 0.0
        %vm2465 = vcmp.gt.f32.partialorder %v1564, 0.0
        %vm2466 = vcmp.gt.f32.partialorder %v1565, 0.0
        %vm2467 = vcmp.gt.f32.partialorder %v1566, 0.0
        %vm2468 = vcmp.gt.f32.partialorder %v1567, 0.0
        %vm2469 = vcmp.gt.f32.partialorder %v1568, 0.0
        %vm2470 = vcmp.gt.f32.partialorder %v1569, 0.0
        %vm2471 = vcmp.gt.f32.partialorder %v1570, 0.0
        %vm2472 = vcmp.gt.f32.partialorder %v1571, 0.0
        %vm2473 = vcmp.gt.f32.partialorder %v1572, 0.0
        %vm2474 = vcmp.gt.f32.partialorder %v1573, 0.0
        %vm2475 = vcmp.gt.f32.partialorder %v1574, 0.0
        %vm2476 = vcmp.gt.f32.partialorder %v1575, 0.0
        %vm2477 = vcmp.gt.f32.partialorder %v1576, 0.0
        %vm2478 = vcmp.gt.f32.partialorder %v1577, 0.0
        %vm2479 = vcmp.gt.f32.partialorder %v1578, 0.0
        %vm2480 = vcmp.gt.f32.partialorder %v1579, 0.0
        %vm2481 = vcmp.ge.f32.partialorder %v1980, 0.0
        %vm2482 = vcmp.ge.f32.partialorder %v1981, 0.0
        %vm2483 = vcmp.ge.f32.partialorder %v1982, 0.0
        %vm2484 = vcmp.ge.f32.partialorder %v1983, 0.0
        %vm2485 = vcmp.ge.f32.partialorder %v1984, 0.0
        %vm2486 = vcmp.ge.f32.partialorder %v1985, 0.0
        %vm2487 = vcmp.ge.f32.partialorder %v1986, 0.0
        %vm2488 = vcmp.ge.f32.partialorder %v1987, 0.0
        %vm2489 = vcmp.ge.f32.partialorder %v1988, 0.0
        %vm2490 = vcmp.ge.f32.partialorder %v1989, 0.0
        %vm2491 = vcmp.ge.f32.partialorder %v1990, 0.0
        %vm2492 = vcmp.ge.f32.partialorder %v1991, 0.0
        %vm2493 = vcmp.ge.f32.partialorder %v1992, 0.0
        %vm2494 = vcmp.ge.f32.partialorder %v1993, 0.0
        %vm2495 = vcmp.ge.f32.partialorder %v1994, 0.0
        %vm2496 = vcmp.ge.f32.partialorder %v1995, 0.0
        %vm2497 = vcmp.ge.f32.partialorder %v1996, 0.0
        %vm2498 = vcmp.ge.f32.partialorder %v1997, 0.0
        %vm2499 = vcmp.ge.f32.partialorder %v1998, 0.0
        %vm2500 = vcmp.ge.f32.partialorder %v1999, 0.0
        %vm2501 = vcmp.ge.f32.partialorder %v2000, 0.0
        %vm2502 = vcmp.ge.f32.partialorder %v2001, 0.0
        %vm2503 = vcmp.ge.f32.partialorder %v2002, 0.0
        %vm2504 = vcmp.ge.f32.partialorder %v2003, 0.0
        %vm2505 = vcmp.ge.f32.partialorder %v2004, 0.0
        %vm2506 = vcmp.ge.f32.partialorder %v2005, 0.0
        %vm2507 = vcmp.ge.f32.partialorder %v2006, 0.0
        %vm2508 = vcmp.ge.f32.partialorder %v2007, 0.0
        %vm2509 = vcmp.ge.f32.partialorder %v2008, 0.0
        %vm2510 = vcmp.ge.f32.partialorder %v2009, 0.0
        %vm2511 = vcmp.ge.f32.partialorder %v2010, 0.0
        %vm2512 = vcmp.ge.f32.partialorder %v2011, 0.0
        %vm2513 = vcmp.ge.f32.partialorder %v2012, 0.0
        %vm2514 = vcmp.ge.f32.partialorder %v2013, 0.0
        %vm2515 = vcmp.ge.f32.partialorder %v2014, 0.0
        %vm2516 = vcmp.ge.f32.partialorder %v2015, 0.0
        %vm2517 = vcmp.ge.f32.partialorder %v2016, 0.0
        %vm2518 = vcmp.ge.f32.partialorder %v2017, 0.0
        %vm2519 = vcmp.ge.f32.partialorder %v2018, 0.0
        %vm2520 = vcmp.ge.f32.partialorder %v2019, 0.0
        %vm2521 = vcmp.ge.f32.partialorder %v2020, 0.0
        %vm2522 = vcmp.ge.f32.partialorder %v2021, 0.0
        %vm2523 = vcmp.ge.f32.partialorder %v2022, 0.0
        %vm2524 = vcmp.ge.f32.partialorder %v2023, 0.0
        %vm2525 = vcmp.ge.f32.partialorder %v2024, 0.0
        %vm2526 = vcmp.ge.f32.partialorder %v2025, 0.0
        %vm2527 = vcmp.ge.f32.partialorder %v2026, 0.0
        %vm2528 = vcmp.ge.f32.partialorder %v2027, 0.0
        %vm2529 = vcmp.ge.f32.partialorder %v2028, 0.0
        %vm2530 = vcmp.ge.f32.partialorder %v2029, 0.0
        %vm2531 = vcmp.ge.f32.partialorder %v2030, 0.0
        %vm2532 = vcmp.ge.f32.partialorder %v2031, 0.0
        %vm2533 = vcmp.ge.f32.partialorder %v2032, 0.0
        %vm2534 = vcmp.ge.f32.partialorder %v2033, 0.0
        %vm2535 = vcmp.ge.f32.partialorder %v2034, 0.0
        %vm2536 = vcmp.ge.f32.partialorder %v2035, 0.0
        %vm2537 = vcmp.ge.f32.partialorder %v2036, 0.0
        %vm2538 = vcmp.ge.f32.partialorder %v2037, 0.0
        %vm2539 = vcmp.ge.f32.partialorder %v2038, 0.0
        %vm2540 = vcmp.ge.f32.partialorder %v2039, 0.0
        %vm2541 = vcmp.ge.f32.partialorder %v2040, 0.0
        %vm2542 = vcmp.ge.f32.partialorder %v2041, 0.0
        %vm2543 = vcmp.ge.f32.partialorder %v2042, 0.0
        %vm2544 = vcmp.ge.f32.partialorder %v2043, 0.0
        %vm2545 = vcmp.ge.f32.partialorder %v2044, 0.0
        %vm2546 = vcmp.ge.f32.partialorder %v2045, 0.0
        %vm2547 = vcmp.ge.f32.partialorder %v2046, 0.0
        %vm2548 = vcmp.ge.f32.partialorder %v2047, 0.0
        %vm2549 = vcmp.ge.f32.partialorder %v2048, 0.0
        %vm2550 = vcmp.ge.f32.partialorder %v2049, 0.0
        %vm2551 = vcmp.ge.f32.partialorder %v2050, 0.0
        %vm2552 = vcmp.ge.f32.partialorder %v2051, 0.0
        %vm2553 = vcmp.ge.f32.partialorder %v2052, 0.0
        %vm2554 = vcmp.ge.f32.partialorder %v2053, 0.0
        %vm2555 = vcmp.ge.f32.partialorder %v2054, 0.0
        %vm2556 = vcmp.ge.f32.partialorder %v2055, 0.0
        %vm2557 = vcmp.ge.f32.partialorder %v2056, 0.0
        %vm2558 = vcmp.ge.f32.partialorder %v2057, 0.0
        %vm2559 = vcmp.ge.f32.partialorder %v2058, 0.0
        %vm2560 = vcmp.ge.f32.partialorder %v2059, 0.0
        %vm2561 = vcmp.ge.f32.partialorder %v2060, 0.0
        %vm2562 = vcmp.ge.f32.partialorder %v2061, 0.0
        %vm2563 = vcmp.ge.f32.partialorder %v2062, 0.0
        %vm2564 = vcmp.ge.f32.partialorder %v2063, 0.0
        %vm2565 = vcmp.ge.f32.partialorder %v2064, 0.0
        %vm2566 = vcmp.ge.f32.partialorder %v2065, 0.0
        %vm2567 = vcmp.ge.f32.partialorder %v2066, 0.0
        %vm2568 = vcmp.ge.f32.partialorder %v2067, 0.0
        %vm2569 = vcmp.ge.f32.partialorder %v2068, 0.0
        %vm2570 = vcmp.ge.f32.partialorder %v2069, 0.0
        %vm2571 = vcmp.ge.f32.partialorder %v2070, 0.0
        %vm2572 = vcmp.ge.f32.partialorder %v2071, 0.0
        %vm2573 = vcmp.ge.f32.partialorder %v2072, 0.0
        %vm2574 = vcmp.ge.f32.partialorder %v2073, 0.0
        %vm2575 = vcmp.ge.f32.partialorder %v2074, 0.0
        %vm2576 = vcmp.ge.f32.partialorder %v2075, 0.0
        %vm2577 = vcmp.ge.f32.partialorder %v2076, 0.0
        %vm2578 = vcmp.ge.f32.partialorder %v2077, 0.0
        %vm2579 = vcmp.ge.f32.partialorder %v2078, 0.0
        %vm2580 = vcmp.ge.f32.partialorder %v2079, 0.0
        %vm2581 = vmand %vm2381, %vm2481
        %vm2582 = vmand %vm2382, %vm2482
        %vm2583 = vmand %vm2383, %vm2483
        %vm2584 = vmand %vm2384, %vm2484
        %vm2585 = vmand %vm2385, %vm2485
        %vm2586 = vmand %vm2386, %vm2486
        %vm2587 = vmand %vm2387, %vm2487
        %vm2588 = vmand %vm2388, %vm2488
        %vm2589 = vmand %vm2389, %vm2489
        %vm2590 = vmand %vm2390, %vm2490
        %vm2591 = vmand %vm2391, %vm2491
        %vm2592 = vmand %vm2392, %vm2492
        %vm2593 = vmand %vm2393, %vm2493
        %vm2594 = vmand %vm2394, %vm2494
        %vm2595 = vmand %vm2395, %vm2495
        %vm2596 = vmand %vm2396, %vm2496
        %vm2597 = vmand %vm2397, %vm2497
        %vm2598 = vmand %vm2398, %vm2498
        %vm2599 = vmand %vm2399, %vm2499
        %vm2600 = vmand %vm2400, %vm2500
        %vm2601 = vmand %vm2401, %vm2501
        %vm2602 = vmand %vm2402, %vm2502
        %vm2603 = vmand %vm2403, %vm2503
        %vm2604 = vmand %vm2404, %vm2504
        %vm2605 = vmand %vm2405, %vm2505
        %vm2606 = vmand %vm2406, %vm2506
        %vm2607 = vmand %vm2407, %vm2507
        %vm2608 = vmand %vm2408, %vm2508
        %vm2609 = vmand %vm2409, %vm2509
        %vm2610 = vmand %vm2410, %vm2510
        %vm2611 = vmand %vm2411, %vm2511
        %vm2612 = vmand %vm2412, %vm2512
        %vm2613 = vmand %vm2413, %vm2513
        %vm2614 = vmand %vm2414, %vm2514
        %vm2615 = vmand %vm2415, %vm2515
        %vm2616 = vmand %vm2416, %vm2516
        %vm2617 = vmand %vm2417, %vm2517
        %vm2618 = vmand %vm2418, %vm2518
        %vm2619 = vmand %vm2419, %vm2519
        %vm2620 = vmand %vm2420, %vm2520
        %vm2621 = vmand %vm2421, %vm2521
        %vm2622 = vmand %vm2422, %vm2522
        %vm2623 = vmand %vm2423, %vm2523
        %vm2624 = vmand %vm2424, %vm2524
        %vm2625 = vmand %vm2425, %vm2525
        %vm2626 = vmand %vm2426, %vm2526
        %vm2627 = vmand %vm2427, %vm2527
        %vm2628 = vmand %vm2428, %vm2528
        %vm2629 = vmand %vm2429, %vm2529
        %vm2630 = vmand %vm2430, %vm2530
        %vm2631 = vmand %vm2431, %vm2531
        %vm2632 = vmand %vm2432, %vm2532
        %vm2633 = vmand %vm2433, %vm2533
        %vm2634 = vmand %vm2434, %vm2534
        %vm2635 = vmand %vm2435, %vm2535
        %vm2636 = vmand %vm2436, %vm2536
        %vm2637 = vmand %vm2437, %vm2537
        %vm2638 = vmand %vm2438, %vm2538
        %vm2639 = vmand %vm2439, %vm2539
        %vm2640 = vmand %vm2440, %vm2540
        %vm2641 = vmand %vm2441, %vm2541
        %vm2642 = vmand %vm2442, %vm2542
        %vm2643 = vmand %vm2443, %vm2543
        %vm2644 = vmand %vm2444, %vm2544
        %vm2645 = vmand %vm2445, %vm2545
        %vm2646 = vmand %vm2446, %vm2546
        %vm2647 = vmand %vm2447, %vm2547
        %vm2648 = vmand %vm2448, %vm2548
        %vm2649 = vmand %vm2449, %vm2549
        %vm2650 = vmand %vm2450, %vm2550
        %vm2651 = vmand %vm2451, %vm2551
        %vm2652 = vmand %vm2452, %vm2552
        %vm2653 = vmand %vm2453, %vm2553
        %vm2654 = vmand %vm2454, %vm2554
        %vm2655 = vmand %vm2455, %vm2555
        %vm2656 = vmand %vm2456, %vm2556
        %vm2657 = vmand %vm2457, %vm2557
        %vm2658 = vmand %vm2458, %vm2558
        %vm2659 = vmand %vm2459, %vm2559
        %vm2660 = vmand %vm2460, %vm2560
        %vm2661 = vmand %vm2461, %vm2561
        %vm2662 = vmand %vm2462, %vm2562
        %vm2663 = vmand %vm2463, %vm2563
        %vm2664 = vmand %vm2464, %vm2564
        %vm2665 = vmand %vm2465, %vm2565
        %vm2666 = vmand %vm2466, %vm2566
        %vm2667 = vmand %vm2467, %vm2567
        %vm2668 = vmand %vm2468, %vm2568
        %vm2669 = vmand %vm2469, %vm2569
        %vm2670 = vmand %vm2470, %vm2570
        %vm2671 = vmand %vm2471, %vm2571
        %vm2672 = vmand %vm2472, %vm2572
        %vm2673 = vmand %vm2473, %vm2573
        %vm2674 = vmand %vm2474, %vm2574
        %vm2675 = vmand %vm2475, %vm2575
        %vm2676 = vmand %vm2476, %vm2576
        %vm2677 = vmand %vm2477, %vm2577
        %vm2678 = vmand %vm2478, %vm2578
        %vm2679 = vmand %vm2479, %vm2579
        %vm2680 = vmand %vm2480, %vm2580
        %vm2681 = vcmp.lt.f32.partialorder %v1980, 400.0
        %vm2682 = vcmp.lt.f32.partialorder %v1981, 400.0
        %vm2683 = vcmp.lt.f32.partialorder %v1982, 400.0
        %vm2684 = vcmp.lt.f32.partialorder %v1983, 400.0
        %vm2685 = vcmp.lt.f32.partialorder %v1984, 400.0
        %vm2686 = vcmp.lt.f32.partialorder %v1985, 400.0
        %vm2687 = vcmp.lt.f32.partialorder %v1986, 400.0
        %vm2688 = vcmp.lt.f32.partialorder %v1987, 400.0
        %vm2689 = vcmp.lt.f32.partialorder %v1988, 400.0
        %vm2690 = vcmp.lt.f32.partialorder %v1989, 400.0
        %vm2691 = vcmp.lt.f32.partialorder %v1990, 400.0
        %vm2692 = vcmp.lt.f32.partialorder %v1991, 400.0
        %vm2693 = vcmp.lt.f32.partialorder %v1992, 400.0
        %vm2694 = vcmp.lt.f32.partialorder %v1993, 400.0
        %vm2695 = vcmp.lt.f32.partialorder %v1994, 400.0
        %vm2696 = vcmp.lt.f32.partialorder %v1995, 400.0
        %vm2697 = vcmp.lt.f32.partialorder %v1996, 400.0
        %vm2698 = vcmp.lt.f32.partialorder %v1997, 400.0
        %vm2699 = vcmp.lt.f32.partialorder %v1998, 400.0
        %vm2700 = vcmp.lt.f32.partialorder %v1999, 400.0
        %vm2701 = vcmp.lt.f32.partialorder %v2000, 400.0
        %vm2702 = vcmp.lt.f32.partialorder %v2001, 400.0
        %vm2703 = vcmp.lt.f32.partialorder %v2002, 400.0
        %vm2704 = vcmp.lt.f32.partialorder %v2003, 400.0
        %vm2705 = vcmp.lt.f32.partialorder %v2004, 400.0
        %vm2706 = vcmp.lt.f32.partialorder %v2005, 400.0
        %vm2707 = vcmp.lt.f32.partialorder %v2006, 400.0
        %vm2708 = vcmp.lt.f32.partialorder %v2007, 400.0
        %vm2709 = vcmp.lt.f32.partialorder %v2008, 400.0
        %vm2710 = vcmp.lt.f32.partialorder %v2009, 400.0
        %vm2711 = vcmp.lt.f32.partialorder %v2010, 400.0
        %vm2712 = vcmp.lt.f32.partialorder %v2011, 400.0
        %vm2713 = vcmp.lt.f32.partialorder %v2012, 400.0
        %vm2714 = vcmp.lt.f32.partialorder %v2013, 400.0
        %vm2715 = vcmp.lt.f32.partialorder %v2014, 400.0
        %vm2716 = vcmp.lt.f32.partialorder %v2015, 400.0
        %vm2717 = vcmp.lt.f32.partialorder %v2016, 400.0
        %vm2718 = vcmp.lt.f32.partialorder %v2017, 400.0
        %vm2719 = vcmp.lt.f32.partialorder %v2018, 400.0
        %vm2720 = vcmp.lt.f32.partialorder %v2019, 400.0
        %vm2721 = vcmp.lt.f32.partialorder %v2020, 400.0
        %vm2722 = vcmp.lt.f32.partialorder %v2021, 400.0
        %vm2723 = vcmp.lt.f32.partialorder %v2022, 400.0
        %vm2724 = vcmp.lt.f32.partialorder %v2023, 400.0
        %vm2725 = vcmp.lt.f32.partialorder %v2024, 400.0
        %vm2726 = vcmp.lt.f32.partialorder %v2025, 400.0
        %vm2727 = vcmp.lt.f32.partialorder %v2026, 400.0
        %vm2728 = vcmp.lt.f32.partialorder %v2027, 400.0
        %vm2729 = vcmp.lt.f32.partialorder %v2028, 400.0
        %vm2730 = vcmp.lt.f32.partialorder %v2029, 400.0
        %vm2731 = vcmp.lt.f32.partialorder %v2030, 400.0
        %vm2732 = vcmp.lt.f32.partialorder %v2031, 400.0
        %vm2733 = vcmp.lt.f32.partialorder %v2032, 400.0
        %vm2734 = vcmp.lt.f32.partialorder %v2033, 400.0
        %vm2735 = vcmp.lt.f32.partialorder %v2034, 400.0
        %vm2736 = vcmp.lt.f32.partialorder %v2035, 400.0
        %vm2737 = vcmp.lt.f32.partialorder %v2036, 400.0
        %vm2738 = vcmp.lt.f32.partialorder %v2037, 400.0
        %vm2739 = vcmp.lt.f32.partialorder %v2038, 400.0
        %vm2740 = vcmp.lt.f32.partialorder %v2039, 400.0
        %vm2741 = vcmp.lt.f32.partialorder %v2040, 400.0
        %vm2742 = vcmp.lt.f32.partialorder %v2041, 400.0
        %vm2743 = vcmp.lt.f32.partialorder %v2042, 400.0
        %vm2744 = vcmp.lt.f32.partialorder %v2043, 400.0
        %vm2745 = vcmp.lt.f32.partialorder %v2044, 400.0
        %vm2746 = vcmp.lt.f32.partialorder %v2045, 400.0
        %vm2747 = vcmp.lt.f32.partialorder %v2046, 400.0
        %vm2748 = vcmp.lt.f32.partialorder %v2047, 400.0
        %vm2749 = vcmp.lt.f32.partialorder %v2048, 400.0
        %vm2750 = vcmp.lt.f32.partialorder %v2049, 400.0
        %vm2751 = vcmp.lt.f32.partialorder %v2050, 400.0
        %vm2752 = vcmp.lt.f32.partialorder %v2051, 400.0
        %vm2753 = vcmp.lt.f32.partialorder %v2052, 400.0
        %vm2754 = vcmp.lt.f32.partialorder %v2053, 400.0
        %vm2755 = vcmp.lt.f32.partialorder %v2054, 400.0
        %vm2756 = vcmp.lt.f32.partialorder %v2055, 400.0
        %vm2757 = vcmp.lt.f32.partialorder %v2056, 400.0
        %vm2758 = vcmp.lt.f32.partialorder %v2057, 400.0
        %vm2759 = vcmp.lt.f32.partialorder %v2058, 400.0
        %vm2760 = vcmp.lt.f32.partialorder %v2059, 400.0
        %vm2761 = vcmp.lt.f32.partialorder %v2060, 400.0
        %vm2762 = vcmp.lt.f32.partialorder %v2061, 400.0
        %vm2763 = vcmp.lt.f32.partialorder %v2062, 400.0
        %vm2764 = vcmp.lt.f32.partialorder %v2063, 400.0
        %vm2765 = vcmp.lt.f32.partialorder %v2064, 400.0
        %vm2766 = vcmp.lt.f32.partialorder %v2065, 400.0
        %vm2767 = vcmp.lt.f32.partialorder %v2066, 400.0
        %vm2768 = vcmp.lt.f32.partialorder %v2067, 400.0
        %vm2769 = vcmp.lt.f32.partialorder %v2068, 400.0
        %vm2770 = vcmp.lt.f32.partialorder %v2069, 400.0
        %vm2771 = vcmp.lt.f32.partialorder %v2070, 400.0
        %vm2772 = vcmp.lt.f32.partialorder %v2071, 400.0
        %vm2773 = vcmp.lt.f32.partialorder %v2072, 400.0
        %vm2774 = vcmp.lt.f32.partialorder %v2073, 400.0
        %vm2775 = vcmp.lt.f32.partialorder %v2074, 400.0
        %vm2776 = vcmp.lt.f32.partialorder %v2075, 400.0
        %vm2777 = vcmp.lt.f32.partialorder %v2076, 400.0
        %vm2778 = vcmp.lt.f32.partialorder %v2077, 400.0
        %vm2779 = vcmp.lt.f32.partialorder %v2078, 400.0
        %vm2780 = vcmp.lt.f32.partialorder %v2079, 400.0
        %vm2781 = vmand %vm2581, %vm2681
        %vm2782 = vmand %vm2582, %vm2682
        %vm2783 = vmand %vm2583, %vm2683
        %vm2784 = vmand %vm2584, %vm2684
        %vm2785 = vmand %vm2585, %vm2685
        %vm2786 = vmand %vm2586, %vm2686
        %vm2787 = vmand %vm2587, %vm2687
        %vm2788 = vmand %vm2588, %vm2688
        %vm2789 = vmand %vm2589, %vm2689
        %vm2790 = vmand %vm2590, %vm2690
        %vm2791 = vmand %vm2591, %vm2691
        %vm2792 = vmand %vm2592, %vm2692
        %vm2793 = vmand %vm2593, %vm2693
        %vm2794 = vmand %vm2594, %vm2694
        %vm2795 = vmand %vm2595, %vm2695
        %vm2796 = vmand %vm2596, %vm2696
        %vm2797 = vmand %vm2597, %vm2697
        %vm2798 = vmand %vm2598, %vm2698
        %vm2799 = vmand %vm2599, %vm2699
        %vm2800 = vmand %vm2600, %vm2700
        %vm2801 = vmand %vm2601, %vm2701
        %vm2802 = vmand %vm2602, %vm2702
        %vm2803 = vmand %vm2603, %vm2703
        %vm2804 = vmand %vm2604, %vm2704
        %vm2805 = vmand %vm2605, %vm2705
        %vm2806 = vmand %vm2606, %vm2706
        %vm2807 = vmand %vm2607, %vm2707
        %vm2808 = vmand %vm2608, %vm2708
        %vm2809 = vmand %vm2609, %vm2709
        %vm2810 = vmand %vm2610, %vm2710
        %vm2811 = vmand %vm2611, %vm2711
        %vm2812 = vmand %vm2612, %vm2712
        %vm2813 = vmand %vm2613, %vm2713
        %vm2814 = vmand %vm2614, %vm2714
        %vm2815 = vmand %vm2615, %vm2715
        %vm2816 = vmand %vm2616, %vm2716
        %vm2817 = vmand %vm2617, %vm2717
        %vm2818 = vmand %vm2618, %vm2718
        %vm2819 = vmand %vm2619, %vm2719
        %vm2820 = vmand %vm2620, %vm2720
        %vm2821 = vmand %vm2621, %vm2721
        %vm2822 = vmand %vm2622, %vm2722
        %vm2823 = vmand %vm2623, %vm2723
        %vm2824 = vmand %vm2624, %vm2724
        %vm2825 = vmand %vm2625, %vm2725
        %vm2826 = vmand %vm2626, %vm2726
        %vm2827 = vmand %vm2627, %vm2727
        %vm2828 = vmand %vm2628, %vm2728
        %vm2829 = vmand %vm2629, %vm2729
        %vm2830 = vmand %vm2630, %vm2730
        %vm2831 = vmand %vm2631, %vm2731
        %vm2832 = vmand %vm2632, %vm2732
        %vm2833 = vmand %vm2633, %vm2733
        %vm2834 = vmand %vm2634, %vm2734
        %vm2835 = vmand %vm2635, %vm2735
        %vm2836 = vmand %vm2636, %vm2736
        %vm2837 = vmand %vm2637, %vm2737
        %vm2838 = vmand %vm2638, %vm2738
        %vm2839 = vmand %vm2639, %vm2739
        %vm2840 = vmand %vm2640, %vm2740
        %vm2841 = vmand %vm2641, %vm2741
        %vm2842 = vmand %vm2642, %vm2742
        %vm2843 = vmand %vm2643, %vm2743
        %vm2844 = vmand %vm2644, %vm2744
        %vm2845 = vmand %vm2645, %vm2745
        %vm2846 = vmand %vm2646, %vm2746
        %vm2847 = vmand %vm2647, %vm2747
        %vm2848 = vmand %vm2648, %vm2748
        %vm2849 = vmand %vm2649, %vm2749
        %vm2850 = vmand %vm2650, %vm2750
        %vm2851 = vmand %vm2651, %vm2751
        %vm2852 = vmand %vm2652, %vm2752
        %vm2853 = vmand %vm2653, %vm2753
        %vm2854 = vmand %vm2654, %vm2754
        %vm2855 = vmand %vm2655, %vm2755
        %vm2856 = vmand %vm2656, %vm2756
        %vm2857 = vmand %vm2657, %vm2757
        %vm2858 = vmand %vm2658, %vm2758
        %vm2859 = vmand %vm2659, %vm2759
        %vm2860 = vmand %vm2660, %vm2760
        %vm2861 = vmand %vm2661, %vm2761
        %vm2862 = vmand %vm2662, %vm2762
        %vm2863 = vmand %vm2663, %vm2763
        %vm2864 = vmand %vm2664, %vm2764
        %vm2865 = vmand %vm2665, %vm2765
        %vm2866 = vmand %vm2666, %vm2766
        %vm2867 = vmand %vm2667, %vm2767
        %vm2868 = vmand %vm2668, %vm2768
        %vm2869 = vmand %vm2669, %vm2769
        %vm2870 = vmand %vm2670, %vm2770
        %vm2871 = vmand %vm2671, %vm2771
        %vm2872 = vmand %vm2672, %vm2772
        %vm2873 = vmand %vm2673, %vm2773
        %vm2874 = vmand %vm2674, %vm2774
        %vm2875 = vmand %vm2675, %vm2775
        %vm2876 = vmand %vm2676, %vm2776
        %vm2877 = vmand %vm2677, %vm2777
        %vm2878 = vmand %vm2678, %vm2778
        %vm2879 = vmand %vm2679, %vm2779
        %vm2880 = vmand %vm2680, %vm2780
        %vm2881 = vcmp.ge.f32.partialorder %v2080, 0.0
        %vm2882 = vcmp.ge.f32.partialorder %v2081, 0.0
        %vm2883 = vcmp.ge.f32.partialorder %v2082, 0.0
        %vm2884 = vcmp.ge.f32.partialorder %v2083, 0.0
        %vm2885 = vcmp.ge.f32.partialorder %v2084, 0.0
        %vm2886 = vcmp.ge.f32.partialorder %v2085, 0.0
        %vm2887 = vcmp.ge.f32.partialorder %v2086, 0.0
        %vm2888 = vcmp.ge.f32.partialorder %v2087, 0.0
        %vm2889 = vcmp.ge.f32.partialorder %v2088, 0.0
        %vm2890 = vcmp.ge.f32.partialorder %v2089, 0.0
        %vm2891 = vcmp.ge.f32.partialorder %v2090, 0.0
        %vm2892 = vcmp.ge.f32.partialorder %v2091, 0.0
        %vm2893 = vcmp.ge.f32.partialorder %v2092, 0.0
        %vm2894 = vcmp.ge.f32.partialorder %v2093, 0.0
        %vm2895 = vcmp.ge.f32.partialorder %v2094, 0.0
        %vm2896 = vcmp.ge.f32.partialorder %v2095, 0.0
        %vm2897 = vcmp.ge.f32.partialorder %v2096, 0.0
        %vm2898 = vcmp.ge.f32.partialorder %v2097, 0.0
        %vm2899 = vcmp.ge.f32.partialorder %v2098, 0.0
        %vm2900 = vcmp.ge.f32.partialorder %v2099, 0.0
        %vm2901 = vcmp.ge.f32.partialorder %v2100, 0.0
        %vm2902 = vcmp.ge.f32.partialorder %v2101, 0.0
        %vm2903 = vcmp.ge.f32.partialorder %v2102, 0.0
        %vm2904 = vcmp.ge.f32.partialorder %v2103, 0.0
        %vm2905 = vcmp.ge.f32.partialorder %v2104, 0.0
        %vm2906 = vcmp.ge.f32.partialorder %v2105, 0.0
        %vm2907 = vcmp.ge.f32.partialorder %v2106, 0.0
        %vm2908 = vcmp.ge.f32.partialorder %v2107, 0.0
        %vm2909 = vcmp.ge.f32.partialorder %v2108, 0.0
        %vm2910 = vcmp.ge.f32.partialorder %v2109, 0.0
        %vm2911 = vcmp.ge.f32.partialorder %v2110, 0.0
        %vm2912 = vcmp.ge.f32.partialorder %v2111, 0.0
        %vm2913 = vcmp.ge.f32.partialorder %v2112, 0.0
        %vm2914 = vcmp.ge.f32.partialorder %v2113, 0.0
        %vm2915 = vcmp.ge.f32.partialorder %v2114, 0.0
        %vm2916 = vcmp.ge.f32.partialorder %v2115, 0.0
        %vm2917 = vcmp.ge.f32.partialorder %v2116, 0.0
        %vm2918 = vcmp.ge.f32.partialorder %v2117, 0.0
        %vm2919 = vcmp.ge.f32.partialorder %v2118, 0.0
        %vm2920 = vcmp.ge.f32.partialorder %v2119, 0.0
        %vm2921 = vcmp.ge.f32.partialorder %v2120, 0.0
        %vm2922 = vcmp.ge.f32.partialorder %v2121, 0.0
        %vm2923 = vcmp.ge.f32.partialorder %v2122, 0.0
        %vm2924 = vcmp.ge.f32.partialorder %v2123, 0.0
        %vm2925 = vcmp.ge.f32.partialorder %v2124, 0.0
        %vm2926 = vcmp.ge.f32.partialorder %v2125, 0.0
        %vm2927 = vcmp.ge.f32.partialorder %v2126, 0.0
        %vm2928 = vcmp.ge.f32.partialorder %v2127, 0.0
        %vm2929 = vcmp.ge.f32.partialorder %v2128, 0.0
        %vm2930 = vcmp.ge.f32.partialorder %v2129, 0.0
        %vm2931 = vcmp.ge.f32.partialorder %v2130, 0.0
        %vm2932 = vcmp.ge.f32.partialorder %v2131, 0.0
        %vm2933 = vcmp.ge.f32.partialorder %v2132, 0.0
        %vm2934 = vcmp.ge.f32.partialorder %v2133, 0.0
        %vm2935 = vcmp.ge.f32.partialorder %v2134, 0.0
        %vm2936 = vcmp.ge.f32.partialorder %v2135, 0.0
        %vm2937 = vcmp.ge.f32.partialorder %v2136, 0.0
        %vm2938 = vcmp.ge.f32.partialorder %v2137, 0.0
        %vm2939 = vcmp.ge.f32.partialorder %v2138, 0.0
        %vm2940 = vcmp.ge.f32.partialorder %v2139, 0.0
        %vm2941 = vcmp.ge.f32.partialorder %v2140, 0.0
        %vm2942 = vcmp.ge.f32.partialorder %v2141, 0.0
        %vm2943 = vcmp.ge.f32.partialorder %v2142, 0.0
        %vm2944 = vcmp.ge.f32.partialorder %v2143, 0.0
        %vm2945 = vcmp.ge.f32.partialorder %v2144, 0.0
        %vm2946 = vcmp.ge.f32.partialorder %v2145, 0.0
        %vm2947 = vcmp.ge.f32.partialorder %v2146, 0.0
        %vm2948 = vcmp.ge.f32.partialorder %v2147, 0.0
        %vm2949 = vcmp.ge.f32.partialorder %v2148, 0.0
        %vm2950 = vcmp.ge.f32.partialorder %v2149, 0.0
        %vm2951 = vcmp.ge.f32.partialorder %v2150, 0.0
        %vm2952 = vcmp.ge.f32.partialorder %v2151, 0.0
        %vm2953 = vcmp.ge.f32.partialorder %v2152, 0.0
        %vm2954 = vcmp.ge.f32.partialorder %v2153, 0.0
        %vm2955 = vcmp.ge.f32.partialorder %v2154, 0.0
        %vm2956 = vcmp.ge.f32.partialorder %v2155, 0.0
        %vm2957 = vcmp.ge.f32.partialorder %v2156, 0.0
        %vm2958 = vcmp.ge.f32.partialorder %v2157, 0.0
        %vm2959 = vcmp.ge.f32.partialorder %v2158, 0.0
        %vm2960 = vcmp.ge.f32.partialorder %v2159, 0.0
        %vm2961 = vcmp.ge.f32.partialorder %v2160, 0.0
        %vm2962 = vcmp.ge.f32.partialorder %v2161, 0.0
        %vm2963 = vcmp.ge.f32.partialorder %v2162, 0.0
        %vm2964 = vcmp.ge.f32.partialorder %v2163, 0.0
        %vm2965 = vcmp.ge.f32.partialorder %v2164, 0.0
        %vm2966 = vcmp.ge.f32.partialorder %v2165, 0.0
        %vm2967 = vcmp.ge.f32.partialorder %v2166, 0.0
        %vm2968 = vcmp.ge.f32.partialorder %v2167, 0.0
        %vm2969 = vcmp.ge.f32.partialorder %v2168, 0.0
        %vm2970 = vcmp.ge.f32.partialorder %v2169, 0.0
        %vm2971 = vcmp.ge.f32.partialorder %v2170, 0.0
        %vm2972 = vcmp.ge.f32.partialorder %v2171, 0.0
        %vm2973 = vcmp.ge.f32.partialorder %v2172, 0.0
        %vm2974 = vcmp.ge.f32.partialorder %v2173, 0.0
        %vm2975 = vcmp.ge.f32.partialorder %v2174, 0.0
        %vm2976 = vcmp.ge.f32.partialorder %v2175, 0.0
        %vm2977 = vcmp.ge.f32.partialorder %v2176, 0.0
        %vm2978 = vcmp.ge.f32.partialorder %v2177, 0.0
        %vm2979 = vcmp.ge.f32.partialorder %v2178, 0.0
        %vm2980 = vcmp.ge.f32.partialorder %v2179, 0.0
        %vm2981 = vmand %vm2781, %vm2881
        %vm2982 = vmand %vm2782, %vm2882
        %vm2983 = vmand %vm2783, %vm2883
        %vm2984 = vmand %vm2784, %vm2884
        %vm2985 = vmand %vm2785, %vm2885
        %vm2986 = vmand %vm2786, %vm2886
        %vm2987 = vmand %vm2787, %vm2887
        %vm2988 = vmand %vm2788, %vm2888
        %vm2989 = vmand %vm2789, %vm2889
        %vm2990 = vmand %vm2790, %vm2890
        %vm2991 = vmand %vm2791, %vm2891
        %vm2992 = vmand %vm2792, %vm2892
        %vm2993 = vmand %vm2793, %vm2893
        %vm2994 = vmand %vm2794, %vm2894
        %vm2995 = vmand %vm2795, %vm2895
        %vm2996 = vmand %vm2796, %vm2896
        %vm2997 = vmand %vm2797, %vm2897
        %vm2998 = vmand %vm2798, %vm2898
        %vm2999 = vmand %vm2799, %vm2899
        %vm3000 = vmand %vm2800, %vm2900
        %vm3001 = vmand %vm2801, %vm2901
        %vm3002 = vmand %vm2802, %vm2902
        %vm3003 = vmand %vm2803, %vm2903
        %vm3004 = vmand %vm2804, %vm2904
        %vm3005 = vmand %vm2805, %vm2905
        %vm3006 = vmand %vm2806, %vm2906
        %vm3007 = vmand %vm2807, %vm2907
        %vm3008 = vmand %vm2808, %vm2908
        %vm3009 = vmand %vm2809, %vm2909
        %vm3010 = vmand %vm2810, %vm2910
        %vm3011 = vmand %vm2811, %vm2911
        %vm3012 = vmand %vm2812, %vm2912
        %vm3013 = vmand %vm2813, %vm2913
        %vm3014 = vmand %vm2814, %vm2914
        %vm3015 = vmand %vm2815, %vm2915
        %vm3016 = vmand %vm2816, %vm2916
        %vm3017 = vmand %vm2817, %vm2917
        %vm3018 = vmand %vm2818, %vm2918
        %vm3019 = vmand %vm2819, %vm2919
        %vm3020 = vmand %vm2820, %vm2920
        %vm3021 = vmand %vm2821, %vm2921
        %vm3022 = vmand %vm2822, %vm2922
        %vm3023 = vmand %vm2823, %vm2923
        %vm3024 = vmand %vm2824, %vm2924
        %vm3025 = vmand %vm2825, %vm2925
        %vm3026 = vmand %vm2826, %vm2926
        %vm3027 = vmand %vm2827, %vm2927
        %vm3028 = vmand %vm2828, %vm2928
        %vm3029 = vmand %vm2829, %vm2929
        %vm3030 = vmand %vm2830, %vm2930
        %vm3031 = vmand %vm2831, %vm2931
        %vm3032 = vmand %vm2832, %vm2932
        %vm3033 = vmand %vm2833, %vm2933
        %vm3034 = vmand %vm2834, %vm2934
        %vm3035 = vmand %vm2835, %vm2935
        %vm3036 = vmand %vm2836, %vm2936
        %vm3037 = vmand %vm2837, %vm2937
        %vm3038 = vmand %vm2838, %vm2938
        %vm3039 = vmand %vm2839, %vm2939
        %vm3040 = vmand %vm2840, %vm2940
        %vm3041 = vmand %vm2841, %vm2941
        %vm3042 = vmand %vm2842, %vm2942
        %vm3043 = vmand %vm2843, %vm2943
        %vm3044 = vmand %vm2844, %vm2944
        %vm3045 = vmand %vm2845, %vm2945
        %vm3046 = vmand %vm2846, %vm2946
        %vm3047 = vmand %vm2847, %vm2947
        %vm3048 = vmand %vm2848, %vm2948
        %vm3049 = vmand %vm2849, %vm2949
        %vm3050 = vmand %vm2850, %vm2950
        %vm3051 = vmand %vm2851, %vm2951
        %vm3052 = vmand %vm2852, %vm2952
        %vm3053 = vmand %vm2853, %vm2953
        %vm3054 = vmand %vm2854, %vm2954
        %vm3055 = vmand %vm2855, %vm2955
        %vm3056 = vmand %vm2856, %vm2956
        %vm3057 = vmand %vm2857, %vm2957
        %vm3058 = vmand %vm2858, %vm2958
        %vm3059 = vmand %vm2859, %vm2959
        %vm3060 = vmand %vm2860, %vm2960
        %vm3061 = vmand %vm2861, %vm2961
        %vm3062 = vmand %vm2862, %vm2962
        %vm3063 = vmand %vm2863, %vm2963
        %vm3064 = vmand %vm2864, %vm2964
        %vm3065 = vmand %vm2865, %vm2965
        %vm3066 = vmand %vm2866, %vm2966
        %vm3067 = vmand %vm2867, %vm2967
        %vm3068 = vmand %vm2868, %vm2968
        %vm3069 = vmand %vm2869, %vm2969
        %vm3070 = vmand %vm2870, %vm2970
        %vm3071 = vmand %vm2871, %vm2971
        %vm3072 = vmand %vm2872, %vm2972
        %vm3073 = vmand %vm2873, %vm2973
        %vm3074 = vmand %vm2874, %vm2974
        %vm3075 = vmand %vm2875, %vm2975
        %vm3076 = vmand %vm2876, %vm2976
        %vm3077 = vmand %vm2877, %vm2977
        %vm3078 = vmand %vm2878, %vm2978
        %vm3079 = vmand %vm2879, %vm2979
        %vm3080 = vmand %vm2880, %vm2980
        %vm3081 = vcmp.lt.f32.partialorder %v2080, 225.0
        %vm3082 = vcmp.lt.f32.partialorder %v2081, 225.0
        %vm3083 = vcmp.lt.f32.partialorder %v2082, 225.0
        %vm3084 = vcmp.lt.f32.partialorder %v2083, 225.0
        %vm3085 = vcmp.lt.f32.partialorder %v2084, 225.0
        %vm3086 = vcmp.lt.f32.partialorder %v2085, 225.0
        %vm3087 = vcmp.lt.f32.partialorder %v2086, 225.0
        %vm3088 = vcmp.lt.f32.partialorder %v2087, 225.0
        %vm3089 = vcmp.lt.f32.partialorder %v2088, 225.0
        %vm3090 = vcmp.lt.f32.partialorder %v2089, 225.0
        %vm3091 = vcmp.lt.f32.partialorder %v2090, 225.0
        %vm3092 = vcmp.lt.f32.partialorder %v2091, 225.0
        %vm3093 = vcmp.lt.f32.partialorder %v2092, 225.0
        %vm3094 = vcmp.lt.f32.partialorder %v2093, 225.0
        %vm3095 = vcmp.lt.f32.partialorder %v2094, 225.0
        %vm3096 = vcmp.lt.f32.partialorder %v2095, 225.0
        %vm3097 = vcmp.lt.f32.partialorder %v2096, 225.0
        %vm3098 = vcmp.lt.f32.partialorder %v2097, 225.0
        %vm3099 = vcmp.lt.f32.partialorder %v2098, 225.0
        %vm3100 = vcmp.lt.f32.partialorder %v2099, 225.0
        %vm3101 = vcmp.lt.f32.partialorder %v2100, 225.0
        %vm3102 = vcmp.lt.f32.partialorder %v2101, 225.0
        %vm3103 = vcmp.lt.f32.partialorder %v2102, 225.0
        %vm3104 = vcmp.lt.f32.partialorder %v2103, 225.0
        %vm3105 = vcmp.lt.f32.partialorder %v2104, 225.0
        %vm3106 = vcmp.lt.f32.partialorder %v2105, 225.0
        %vm3107 = vcmp.lt.f32.partialorder %v2106, 225.0
        %vm3108 = vcmp.lt.f32.partialorder %v2107, 225.0
        %vm3109 = vcmp.lt.f32.partialorder %v2108, 225.0
        %vm3110 = vcmp.lt.f32.partialorder %v2109, 225.0
        %vm3111 = vcmp.lt.f32.partialorder %v2110, 225.0
        %vm3112 = vcmp.lt.f32.partialorder %v2111, 225.0
        %vm3113 = vcmp.lt.f32.partialorder %v2112, 225.0
        %vm3114 = vcmp.lt.f32.partialorder %v2113, 225.0
        %vm3115 = vcmp.lt.f32.partialorder %v2114, 225.0
        %vm3116 = vcmp.lt.f32.partialorder %v2115, 225.0
        %vm3117 = vcmp.lt.f32.partialorder %v2116, 225.0
        %vm3118 = vcmp.lt.f32.partialorder %v2117, 225.0
        %vm3119 = vcmp.lt.f32.partialorder %v2118, 225.0
        %vm3120 = vcmp.lt.f32.partialorder %v2119, 225.0
        %vm3121 = vcmp.lt.f32.partialorder %v2120, 225.0
        %vm3122 = vcmp.lt.f32.partialorder %v2121, 225.0
        %vm3123 = vcmp.lt.f32.partialorder %v2122, 225.0
        %vm3124 = vcmp.lt.f32.partialorder %v2123, 225.0
        %vm3125 = vcmp.lt.f32.partialorder %v2124, 225.0
        %vm3126 = vcmp.lt.f32.partialorder %v2125, 225.0
        %vm3127 = vcmp.lt.f32.partialorder %v2126, 225.0
        %vm3128 = vcmp.lt.f32.partialorder %v2127, 225.0
        %vm3129 = vcmp.lt.f32.partialorder %v2128, 225.0
        %vm3130 = vcmp.lt.f32.partialorder %v2129, 225.0
        %vm3131 = vcmp.lt.f32.partialorder %v2130, 225.0
        %vm3132 = vcmp.lt.f32.partialorder %v2131, 225.0
        %vm3133 = vcmp.lt.f32.partialorder %v2132, 225.0
        %vm3134 = vcmp.lt.f32.partialorder %v2133, 225.0
        %vm3135 = vcmp.lt.f32.partialorder %v2134, 225.0
        %vm3136 = vcmp.lt.f32.partialorder %v2135, 225.0
        %vm3137 = vcmp.lt.f32.partialorder %v2136, 225.0
        %vm3138 = vcmp.lt.f32.partialorder %v2137, 225.0
        %vm3139 = vcmp.lt.f32.partialorder %v2138, 225.0
        %vm3140 = vcmp.lt.f32.partialorder %v2139, 225.0
        %vm3141 = vcmp.lt.f32.partialorder %v2140, 225.0
        %vm3142 = vcmp.lt.f32.partialorder %v2141, 225.0
        %vm3143 = vcmp.lt.f32.partialorder %v2142, 225.0
        %vm3144 = vcmp.lt.f32.partialorder %v2143, 225.0
        %vm3145 = vcmp.lt.f32.partialorder %v2144, 225.0
        %vm3146 = vcmp.lt.f32.partialorder %v2145, 225.0
        %vm3147 = vcmp.lt.f32.partialorder %v2146, 225.0
        %vm3148 = vcmp.lt.f32.partialorder %v2147, 225.0
        %vm3149 = vcmp.lt.f32.partialorder %v2148, 225.0
        %vm3150 = vcmp.lt.f32.partialorder %v2149, 225.0
        %vm3151 = vcmp.lt.f32.partialorder %v2150, 225.0
        %vm3152 = vcmp.lt.f32.partialorder %v2151, 225.0
        %vm3153 = vcmp.lt.f32.partialorder %v2152, 225.0
        %vm3154 = vcmp.lt.f32.partialorder %v2153, 225.0
        %vm3155 = vcmp.lt.f32.partialorder %v2154, 225.0
        %vm3156 = vcmp.lt.f32.partialorder %v2155, 225.0
        %vm3157 = vcmp.lt.f32.partialorder %v2156, 225.0
        %vm3158 = vcmp.lt.f32.partialorder %v2157, 225.0
        %vm3159 = vcmp.lt.f32.partialorder %v2158, 225.0
        %vm3160 = vcmp.lt.f32.partialorder %v2159, 225.0
        %vm3161 = vcmp.lt.f32.partialorder %v2160, 225.0
        %vm3162 = vcmp.lt.f32.partialorder %v2161, 225.0
        %vm3163 = vcmp.lt.f32.partialorder %v2162, 225.0
        %vm3164 = vcmp.lt.f32.partialorder %v2163, 225.0
        %vm3165 = vcmp.lt.f32.partialorder %v2164, 225.0
        %vm3166 = vcmp.lt.f32.partialorder %v2165, 225.0
        %vm3167 = vcmp.lt.f32.partialorder %v2166, 225.0
        %vm3168 = vcmp.lt.f32.partialorder %v2167, 225.0
        %vm3169 = vcmp.lt.f32.partialorder %v2168, 225.0
        %vm3170 = vcmp.lt.f32.partialorder %v2169, 225.0
        %vm3171 = vcmp.lt.f32.partialorder %v2170, 225.0
        %vm3172 = vcmp.lt.f32.partialorder %v2171, 225.0
        %vm3173 = vcmp.lt.f32.partialorder %v2172, 225.0
        %vm3174 = vcmp.lt.f32.partialorder %v2173, 225.0
        %vm3175 = vcmp.lt.f32.partialorder %v2174, 225.0
        %vm3176 = vcmp.lt.f32.partialorder %v2175, 225.0
        %vm3177 = vcmp.lt.f32.partialorder %v2176, 225.0
        %vm3178 = vcmp.lt.f32.partialorder %v2177, 225.0
        %vm3179 = vcmp.lt.f32.partialorder %v2178, 225.0
        %vm3180 = vcmp.lt.f32.partialorder %v2179, 225.0
        %vm3181 = vmand %vm2981, %vm3081
        %vm3182 = vmand %vm2982, %vm3082
        %vm3183 = vmand %vm2983, %vm3083
        %vm3184 = vmand %vm2984, %vm3084
        %vm3185 = vmand %vm2985, %vm3085
        %vm3186 = vmand %vm2986, %vm3086
        %vm3187 = vmand %vm2987, %vm3087
        %vm3188 = vmand %vm2988, %vm3088
        %vm3189 = vmand %vm2989, %vm3089
        %vm3190 = vmand %vm2990, %vm3090
        %vm3191 = vmand %vm2991, %vm3091
        %vm3192 = vmand %vm2992, %vm3092
        %vm3193 = vmand %vm2993, %vm3093
        %vm3194 = vmand %vm2994, %vm3094
        %vm3195 = vmand %vm2995, %vm3095
        %vm3196 = vmand %vm2996, %vm3096
        %vm3197 = vmand %vm2997, %vm3097
        %vm3198 = vmand %vm2998, %vm3098
        %vm3199 = vmand %vm2999, %vm3099
        %vm3200 = vmand %vm3000, %vm3100
        %vm3201 = vmand %vm3001, %vm3101
        %vm3202 = vmand %vm3002, %vm3102
        %vm3203 = vmand %vm3003, %vm3103
        %vm3204 = vmand %vm3004, %vm3104
        %vm3205 = vmand %vm3005, %vm3105
        %vm3206 = vmand %vm3006, %vm3106
        %vm3207 = vmand %vm3007, %vm3107
        %vm3208 = vmand %vm3008, %vm3108
        %vm3209 = vmand %vm3009, %vm3109
        %vm3210 = vmand %vm3010, %vm3110
        %vm3211 = vmand %vm3011, %vm3111
        %vm3212 = vmand %vm3012, %vm3112
        %vm3213 = vmand %vm3013, %vm3113
        %vm3214 = vmand %vm3014, %vm3114
        %vm3215 = vmand %vm3015, %vm3115
        %vm3216 = vmand %vm3016, %vm3116
        %vm3217 = vmand %vm3017, %vm3117
        %vm3218 = vmand %vm3018, %vm3118
        %vm3219 = vmand %vm3019, %vm3119
        %vm3220 = vmand %vm3020, %vm3120
        %vm3221 = vmand %vm3021, %vm3121
        %vm3222 = vmand %vm3022, %vm3122
        %vm3223 = vmand %vm3023, %vm3123
        %vm3224 = vmand %vm3024, %vm3124
        %vm3225 = vmand %vm3025, %vm3125
        %vm3226 = vmand %vm3026, %vm3126
        %vm3227 = vmand %vm3027, %vm3127
        %vm3228 = vmand %vm3028, %vm3128
        %vm3229 = vmand %vm3029, %vm3129
        %vm3230 = vmand %vm3030, %vm3130
        %vm3231 = vmand %vm3031, %vm3131
        %vm3232 = vmand %vm3032, %vm3132
        %vm3233 = vmand %vm3033, %vm3133
        %vm3234 = vmand %vm3034, %vm3134
        %vm3235 = vmand %vm3035, %vm3135
        %vm3236 = vmand %vm3036, %vm3136
        %vm3237 = vmand %vm3037, %vm3137
        %vm3238 = vmand %vm3038, %vm3138
        %vm3239 = vmand %vm3039, %vm3139
        %vm3240 = vmand %vm3040, %vm3140
        %vm3241 = vmand %vm3041, %vm3141
        %vm3242 = vmand %vm3042, %vm3142
        %vm3243 = vmand %vm3043, %vm3143
        %vm3244 = vmand %vm3044, %vm3144
        %vm3245 = vmand %vm3045, %vm3145
        %vm3246 = vmand %vm3046, %vm3146
        %vm3247 = vmand %vm3047, %vm3147
        %vm3248 = vmand %vm3048, %vm3148
        %vm3249 = vmand %vm3049, %vm3149
        %vm3250 = vmand %vm3050, %vm3150
        %vm3251 = vmand %vm3051, %vm3151
        %vm3252 = vmand %vm3052, %vm3152
        %vm3253 = vmand %vm3053, %vm3153
        %vm3254 = vmand %vm3054, %vm3154
        %vm3255 = vmand %vm3055, %vm3155
        %vm3256 = vmand %vm3056, %vm3156
        %vm3257 = vmand %vm3057, %vm3157
        %vm3258 = vmand %vm3058, %vm3158
        %vm3259 = vmand %vm3059, %vm3159
        %vm3260 = vmand %vm3060, %vm3160
        %vm3261 = vmand %vm3061, %vm3161
        %vm3262 = vmand %vm3062, %vm3162
        %vm3263 = vmand %vm3063, %vm3163
        %vm3264 = vmand %vm3064, %vm3164
        %vm3265 = vmand %vm3065, %vm3165
        %vm3266 = vmand %vm3066, %vm3166
        %vm3267 = vmand %vm3067, %vm3167
        %vm3268 = vmand %vm3068, %vm3168
        %vm3269 = vmand %vm3069, %vm3169
        %vm3270 = vmand %vm3070, %vm3170
        %vm3271 = vmand %vm3071, %vm3171
        %vm3272 = vmand %vm3072, %vm3172
        %vm3273 = vmand %vm3073, %vm3173
        %vm3274 = vmand %vm3074, %vm3174
        %vm3275 = vmand %vm3075, %vm3175
        %vm3276 = vmand %vm3076, %vm3176
        %vm3277 = vmand %vm3077, %vm3177
        %vm3278 = vmand %vm3078, %vm3178
        %vm3279 = vmand %vm3079, %vm3179
        %vm3280 = vmand %vm3080, %vm3180
        %vm3281 = vmpackc.low %vm3206, %vm3181
        %vm3282 = vmpackc.low %vm3256, %vm3231
        %v3283 = vsel %vm3281, 16711935, 0
        %v3284 = vsel %vm3282, 16711935, 0
        %v3285 = vpack.c.b8 %v3284, %v3283
        %vm3286 = vnez %v3285
        %vm3287 = vmpackc.low %vm3207, %vm3182
        %vm3288 = vmpackc.low %vm3257, %vm3232
        %v3289 = vsel %vm3287, 16711935, 0
        %v3290 = vsel %vm3288, 16711935, 0
        %v3291 = vpack.c.b8 %v3290, %v3289
        %vm3292 = vnez %v3291
        %vm3293 = vmpackc.low %vm3208, %vm3183
        %vm3294 = vmpackc.low %vm3258, %vm3233
        %v3295 = vsel %vm3293, 16711935, 0
        %v3296 = vsel %vm3294, 16711935, 0
        %v3297 = vpack.c.b8 %v3296, %v3295
        %vm3298 = vnez %v3297
        %vm3299 = vmpackc.low %vm3209, %vm3184
        %vm3300 = vmpackc.low %vm3259, %vm3234
        %v3301 = vsel %vm3299, 16711935, 0
        %v3302 = vsel %vm3300, 16711935, 0
        %v3303 = vpack.c.b8 %v3302, %v3301
        %vm3304 = vnez %v3303
        %vm3305 = vmpackc.low %vm3210, %vm3185
        %vm3306 = vmpackc.low %vm3260, %vm3235
        %v3307 = vsel %vm3305, 16711935, 0
        %v3308 = vsel %vm3306, 16711935, 0
        %v3309 = vpack.c.b8 %v3308, %v3307
        %vm3310 = vnez %v3309
        %vm3311 = vmpackc.low %vm3211, %vm3186
        %vm3312 = vmpackc.low %vm3261, %vm3236
        %v3313 = vsel %vm3311, 16711935, 0
        %v3314 = vsel %vm3312, 16711935, 0
        %v3315 = vpack.c.b8 %v3314, %v3313
        %vm3316 = vnez %v3315
        %vm3317 = vmpackc.low %vm3212, %vm3187
        %vm3318 = vmpackc.low %vm3262, %vm3237
        %v3319 = vsel %vm3317, 16711935, 0
        %v3320 = vsel %vm3318, 16711935, 0
        %v3321 = vpack.c.b8 %v3320, %v3319
        %vm3322 = vnez %v3321
        %vm3323 = vmpackc.low %vm3213, %vm3188
        %vm3324 = vmpackc.low %vm3263, %vm3238
        %v3325 = vsel %vm3323, 16711935, 0
        %v3326 = vsel %vm3324, 16711935, 0
        %v3327 = vpack.c.b8 %v3326, %v3325
        %vm3328 = vnez %v3327
        %vm3329 = vmpackc.low %vm3214, %vm3189
        %vm3330 = vmpackc.low %vm3264, %vm3239
        %v3331 = vsel %vm3329, 16711935, 0
        %v3332 = vsel %vm3330, 16711935, 0
        %v3333 = vpack.c.b8 %v3332, %v3331
        %vm3334 = vnez %v3333
        %vm3335 = vmpackc.low %vm3215, %vm3190
        %vm3336 = vmpackc.low %vm3265, %vm3240
        %v3337 = vsel %vm3335, 16711935, 0
        %v3338 = vsel %vm3336, 16711935, 0
        %v3339 = vpack.c.b8 %v3338, %v3337
        %vm3340 = vnez %v3339
        %vm3341 = vmpackc.low %vm3216, %vm3191
        %vm3342 = vmpackc.low %vm3266, %vm3241
        %v3343 = vsel %vm3341, 16711935, 0
        %v3344 = vsel %vm3342, 16711935, 0
        %v3345 = vpack.c.b8 %v3344, %v3343
        %vm3346 = vnez %v3345
        %vm3347 = vmpackc.low %vm3217, %vm3192
        %vm3348 = vmpackc.low %vm3267, %vm3242
        %v3349 = vsel %vm3347, 16711935, 0
        %v3350 = vsel %vm3348, 16711935, 0
        %v3351 = vpack.c.b8 %v3350, %v3349
        %vm3352 = vnez %v3351
        %vm3353 = vmpackc.low %vm3218, %vm3193
        %vm3354 = vmpackc.low %vm3268, %vm3243
        %v3355 = vsel %vm3353, 16711935, 0
        %v3356 = vsel %vm3354, 16711935, 0
        %v3357 = vpack.c.b8 %v3356, %v3355
        %vm3358 = vnez %v3357
        %vm3359 = vmpackc.low %vm3219, %vm3194
        %vm3360 = vmpackc.low %vm3269, %vm3244
        %v3361 = vsel %vm3359, 16711935, 0
        %v3362 = vsel %vm3360, 16711935, 0
        %v3363 = vpack.c.b8 %v3362, %v3361
        %vm3364 = vnez %v3363
        %vm3365 = vmpackc.low %vm3220, %vm3195
        %vm3366 = vmpackc.low %vm3270, %vm3245
        %v3367 = vsel %vm3365, 16711935, 0
        %v3368 = vsel %vm3366, 16711935, 0
        %v3369 = vpack.c.b8 %v3368, %v3367
        %vm3370 = vnez %v3369
        %vm3371 = vmpackc.low %vm3221, %vm3196
        %vm3372 = vmpackc.low %vm3271, %vm3246
        %v3373 = vsel %vm3371, 16711935, 0
        %v3374 = vsel %vm3372, 16711935, 0
        %v3375 = vpack.c.b8 %v3374, %v3373
        %vm3376 = vnez %v3375
        %vm3377 = vmpackc.low %vm3222, %vm3197
        %vm3378 = vmpackc.low %vm3272, %vm3247
        %v3379 = vsel %vm3377, 16711935, 0
        %v3380 = vsel %vm3378, 16711935, 0
        %v3381 = vpack.c.b8 %v3380, %v3379
        %vm3382 = vnez %v3381
        %vm3383 = vmpackc.low %vm3223, %vm3198
        %vm3384 = vmpackc.low %vm3273, %vm3248
        %v3385 = vsel %vm3383, 16711935, 0
        %v3386 = vsel %vm3384, 16711935, 0
        %v3387 = vpack.c.b8 %v3386, %v3385
        %vm3388 = vnez %v3387
        %vm3389 = vmpackc.low %vm3224, %vm3199
        %vm3390 = vmpackc.low %vm3274, %vm3249
        %v3391 = vsel %vm3389, 16711935, 0
        %v3392 = vsel %vm3390, 16711935, 0
        %v3393 = vpack.c.b8 %v3392, %v3391
        %vm3394 = vnez %v3393
        %vm3395 = vmpackc.low %vm3225, %vm3200
        %vm3396 = vmpackc.low %vm3275, %vm3250
        %v3397 = vsel %vm3395, 16711935, 0
        %v3398 = vsel %vm3396, 16711935, 0
        %v3399 = vpack.c.b8 %v3398, %v3397
        %vm3400 = vnez %v3399
        %vm3401 = vmpackc.low %vm3226, %vm3201
        %vm3402 = vmpackc.low %vm3276, %vm3251
        %v3403 = vsel %vm3401, 16711935, 0
        %v3404 = vsel %vm3402, 16711935, 0
        %v3405 = vpack.c.b8 %v3404, %v3403
        %vm3406 = vnez %v3405
        %vm3407 = vmpackc.low %vm3227, %vm3202
        %vm3408 = vmpackc.low %vm3277, %vm3252
        %v3409 = vsel %vm3407, 16711935, 0
        %v3410 = vsel %vm3408, 16711935, 0
        %v3411 = vpack.c.b8 %v3410, %v3409
        %vm3412 = vnez %v3411
        %vm3413 = vmpackc.low %vm3228, %vm3203
        %vm3414 = vmpackc.low %vm3278, %vm3253
        %v3415 = vsel %vm3413, 16711935, 0
        %v3416 = vsel %vm3414, 16711935, 0
        %v3417 = vpack.c.b8 %v3416, %v3415
        %vm3418 = vnez %v3417
        %vm3419 = vmpackc.low %vm3229, %vm3204
        %vm3420 = vmpackc.low %vm3279, %vm3254
        %v3421 = vsel %vm3419, 16711935, 0
        %v3422 = vsel %vm3420, 16711935, 0
        %v3423 = vpack.c.b8 %v3422, %v3421
        %vm3424 = vnez %v3423
        %vm3425 = vmpackc.low %vm3230, %vm3205
        %vm3426 = vmpackc.low %vm3280, %vm3255
        %v3427 = vsel %vm3425, 16711935, 0
        %v3428 = vsel %vm3426, 16711935, 0
        %v3429 = vpack.c.b8 %v3428, %v3427
        %vm3430 = vnez %v3429
        %v3431 = vsel %vm3286, 16843009, 0
        %v3432 = vsel %vm3292, 16843009, 0
        %v3433 = vsel %vm3298, 16843009, 0
        %v3434 = vsel %vm3304, 16843009, 0
        %v3435 = vsel %vm3310, 16843009, 0
        %v3436 = vsel %vm3316, 16843009, 0
        %v3437 = vsel %vm3322, 16843009, 0
        %v3438 = vsel %vm3328, 16843009, 0
        %v3439 = vsel %vm3334, 16843009, 0
        %v3440 = vsel %vm3340, 16843009, 0
        %v3441 = vsel %vm3346, 16843009, 0
        %v3442 = vsel %vm3352, 16843009, 0
        %v3443 = vsel %vm3358, 16843009, 0
        %v3444 = vsel %vm3364, 16843009, 0
        %v3445 = vsel %vm3370, 16843009, 0
        %v3446 = vsel %vm3376, 16843009, 0
        %v3447 = vsel %vm3382, 16843009, 0
        %v3448 = vsel %vm3388, 16843009, 0
        %v3449 = vsel %vm3394, 16843009, 0
        %v3450 = vsel %vm3400, 16843009, 0
        %v3451 = vsel %vm3406, 16843009, 0
        %v3452 = vsel %vm3412, 16843009, 0
        %v3453 = vsel %vm3418, 16843009, 0
        %v3454 = vsel %vm3424, 16843009, 0
        %v3455 = vsel %vm3430, 16843009, 0
        %v3456 = vunpack.c.0.s8 %v3431
        %v3457 = vunpack.c.0.s8 %v3432
        %v3458 = vunpack.c.0.s8 %v3433
        %v3459 = vunpack.c.0.s8 %v3434
        %v3460 = vunpack.c.0.s8 %v3435
        %v3461 = vunpack.c.0.s8 %v3436
        %v3462 = vunpack.c.0.s8 %v3437
        %v3463 = vunpack.c.0.s8 %v3438
        %v3464 = vunpack.c.0.s8 %v3439
        %v3465 = vunpack.c.0.s8 %v3440
        %v3466 = vunpack.c.0.s8 %v3441
        %v3467 = vunpack.c.0.s8 %v3442
        %v3468 = vunpack.c.0.s8 %v3443
        %v3469 = vunpack.c.0.s8 %v3444
        %v3470 = vunpack.c.0.s8 %v3445
        %v3471 = vunpack.c.0.s8 %v3446
        %v3472 = vunpack.c.0.s8 %v3447
        %v3473 = vunpack.c.0.s8 %v3448
        %v3474 = vunpack.c.0.s8 %v3449
        %v3475 = vunpack.c.0.s8 %v3450
        %v3476 = vunpack.c.0.s8 %v3451
        %v3477 = vunpack.c.0.s8 %v3452
        %v3478 = vunpack.c.0.s8 %v3453
        %v3479 = vunpack.c.0.s8 %v3454
        %v3480 = vunpack.c.0.s8 %v3455
        %v3481 = vunpack.c.1.s8 %v3431
        %v3482 = vunpack.c.1.s8 %v3432
        %v3483 = vunpack.c.1.s8 %v3433
        %v3484 = vunpack.c.1.s8 %v3434
        %v3485 = vunpack.c.1.s8 %v3435
        %v3486 = vunpack.c.1.s8 %v3436
        %v3487 = vunpack.c.1.s8 %v3437
        %v3488 = vunpack.c.1.s8 %v3438
        %v3489 = vunpack.c.1.s8 %v3439
        %v3490 = vunpack.c.1.s8 %v3440
        %v3491 = vunpack.c.1.s8 %v3441
        %v3492 = vunpack.c.1.s8 %v3442
        %v3493 = vunpack.c.1.s8 %v3443
        %v3494 = vunpack.c.1.s8 %v3444
        %v3495 = vunpack.c.1.s8 %v3445
        %v3496 = vunpack.c.1.s8 %v3446
        %v3497 = vunpack.c.1.s8 %v3447
        %v3498 = vunpack.c.1.s8 %v3448
        %v3499 = vunpack.c.1.s8 %v3449
        %v3500 = vunpack.c.1.s8 %v3450
        %v3501 = vunpack.c.1.s8 %v3451
        %v3502 = vunpack.c.1.s8 %v3452
        %v3503 = vunpack.c.1.s8 %v3453
        %v3504 = vunpack.c.1.s8 %v3454
        %v3505 = vunpack.c.1.s8 %v3455
        %v3506 = vunpack.c.2.s8 %v3431
        %v3507 = vunpack.c.2.s8 %v3432
        %v3508 = vunpack.c.2.s8 %v3433
        %v3509 = vunpack.c.2.s8 %v3434
        %v3510 = vunpack.c.2.s8 %v3435
        %v3511 = vunpack.c.2.s8 %v3436
        %v3512 = vunpack.c.2.s8 %v3437
        %v3513 = vunpack.c.2.s8 %v3438
        %v3514 = vunpack.c.2.s8 %v3439
        %v3515 = vunpack.c.2.s8 %v3440
        %v3516 = vunpack.c.2.s8 %v3441
        %v3517 = vunpack.c.2.s8 %v3442
        %v3518 = vunpack.c.2.s8 %v3443
        %v3519 = vunpack.c.2.s8 %v3444
        %v3520 = vunpack.c.2.s8 %v3445
        %v3521 = vunpack.c.2.s8 %v3446
        %v3522 = vunpack.c.2.s8 %v3447
        %v3523 = vunpack.c.2.s8 %v3448
        %v3524 = vunpack.c.2.s8 %v3449
        %v3525 = vunpack.c.2.s8 %v3450
        %v3526 = vunpack.c.2.s8 %v3451
        %v3527 = vunpack.c.2.s8 %v3452
        %v3528 = vunpack.c.2.s8 %v3453
        %v3529 = vunpack.c.2.s8 %v3454
        %v3530 = vunpack.c.2.s8 %v3455
        %v3531 = vunpack.c.3.s8 %v3431
        %v3532 = vunpack.c.3.s8 %v3432
        %v3533 = vunpack.c.3.s8 %v3433
        %v3534 = vunpack.c.3.s8 %v3434
        %v3535 = vunpack.c.3.s8 %v3435
        %v3536 = vunpack.c.3.s8 %v3436
        %v3537 = vunpack.c.3.s8 %v3437
        %v3538 = vunpack.c.3.s8 %v3438
        %v3539 = vunpack.c.3.s8 %v3439
        %v3540 = vunpack.c.3.s8 %v3440
        %v3541 = vunpack.c.3.s8 %v3441
        %v3542 = vunpack.c.3.s8 %v3442
        %v3543 = vunpack.c.3.s8 %v3443
        %v3544 = vunpack.c.3.s8 %v3444
        %v3545 = vunpack.c.3.s8 %v3445
        %v3546 = vunpack.c.3.s8 %v3446
        %v3547 = vunpack.c.3.s8 %v3447
        %v3548 = vunpack.c.3.s8 %v3448
        %v3549 = vunpack.c.3.s8 %v3449
        %v3550 = vunpack.c.3.s8 %v3450
        %v3551 = vunpack.c.3.s8 %v3451
        %v3552 = vunpack.c.3.s8 %v3452
        %v3553 = vunpack.c.3.s8 %v3453
        %v3554 = vunpack.c.3.s8 %v3454
        %v3555 = vunpack.c.3.s8 %v3455
        %v3556 = vpack.c.b16 %v3457, %v3456
        %v3557 = vpack.c.b16 %v3459, %v3458
        %v3558 = vpack.c.b8 %v3557, %v3556
        %v3559 = vpack.c.b16 %v3461, %v3460
        %v3560 = vpack.c.b16 %v3463, %v3462
        %v3561 = vpack.c.b8 %v3560, %v3559
        %v3562 = vpack.c.b16 %v3465, %v3464
        %v3563 = vpack.c.b16 %v3467, %v3466
        %v3564 = vpack.c.b8 %v3563, %v3562
        %v3565 = vpack.c.b16 %v3469, %v3468
        %v3566 = vpack.c.b16 %v3471, %v3470
        %v3567 = vpack.c.b8 %v3566, %v3565
        %v3568 = vpack.c.b16 %v3473, %v3472
        %v3569 = vpack.c.b16 %v3475, %v3474
        %v3570 = vpack.c.b8 %v3569, %v3568
        %v3571 = vpack.c.b16 %v3477, %v3476
        %v3572 = vpack.c.b16 %v3479, %v3478
        %v3573 = vpack.c.b8 %v3572, %v3571
        %v3574 = vpack.c.b16 %v3480, %v3480
        %v3575 = vpack.c.b8 %v3574, %v3574
        %v3576 = vpack.c.b16 %v3482, %v3481
        %v3577 = vpack.c.b16 %v3484, %v3483
        %v3578 = vpack.c.b8 %v3577, %v3576
        %v3579 = vpack.c.b16 %v3486, %v3485
        %v3580 = vpack.c.b16 %v3488, %v3487
        %v3581 = vpack.c.b8 %v3580, %v3579
        %v3582 = vpack.c.b16 %v3490, %v3489
        %v3583 = vpack.c.b16 %v3492, %v3491
        %v3584 = vpack.c.b8 %v3583, %v3582
        %v3585 = vpack.c.b16 %v3494, %v3493
        %v3586 = vpack.c.b16 %v3496, %v3495
        %v3587 = vpack.c.b8 %v3586, %v3585
        %v3588 = vpack.c.b16 %v3498, %v3497
        %v3589 = vpack.c.b16 %v3500, %v3499
        %v3590 = vpack.c.b8 %v3589, %v3588
        %v3591 = vpack.c.b16 %v3502, %v3501
        %v3592 = vpack.c.b16 %v3504, %v3503
        %v3593 = vpack.c.b8 %v3592, %v3591
        %v3594 = vpack.c.b16 %v3505, %v3505
        %v3595 = vpack.c.b8 %v3594, %v3594
        %v3596 = vpack.c.b16 %v3507, %v3506
        %v3597 = vpack.c.b16 %v3509, %v3508
        %v3598 = vpack.c.b8 %v3597, %v3596
        %v3599 = vpack.c.b16 %v3511, %v3510
        %v3600 = vpack.c.b16 %v3513, %v3512
        %v3601 = vpack.c.b8 %v3600, %v3599
        %v3602 = vpack.c.b16 %v3515, %v3514
        %v3603 = vpack.c.b16 %v3517, %v3516
        %v3604 = vpack.c.b8 %v3603, %v3602
        %v3605 = vpack.c.b16 %v3519, %v3518
        %v3606 = vpack.c.b16 %v3521, %v3520
        %v3607 = vpack.c.b8 %v3606, %v3605
        %v3608 = vpack.c.b16 %v3523, %v3522
        %v3609 = vpack.c.b16 %v3525, %v3524
        %v3610 = vpack.c.b8 %v3609, %v3608
        %v3611 = vpack.c.b16 %v3527, %v3526
        %v3612 = vpack.c.b16 %v3529, %v3528
        %v3613 = vpack.c.b8 %v3612, %v3611
        %v3614 = vpack.c.b16 %v3530, %v3530
        %v3615 = vpack.c.b8 %v3614, %v3614
        %v3616 = vpack.c.b16 %v3532, %v3531
        %v3617 = vpack.c.b16 %v3534, %v3533
        %v3618 = vpack.c.b8 %v3617, %v3616
        %v3619 = vpack.c.b16 %v3536, %v3535
        %v3620 = vpack.c.b16 %v3538, %v3537
        %v3621 = vpack.c.b8 %v3620, %v3619
        %v3622 = vpack.c.b16 %v3540, %v3539
        %v3623 = vpack.c.b16 %v3542, %v3541
        %v3624 = vpack.c.b8 %v3623, %v3622
        %v3625 = vpack.c.b16 %v3544, %v3543
        %v3626 = vpack.c.b16 %v3546, %v3545
        %v3627 = vpack.c.b8 %v3626, %v3625
        %v3628 = vpack.c.b16 %v3548, %v3547
        %v3629 = vpack.c.b16 %v3550, %v3549
        %v3630 = vpack.c.b8 %v3629, %v3628
        %v3631 = vpack.c.b16 %v3552, %v3551
        %v3632 = vpack.c.b16 %v3554, %v3553
        %v3633 = vpack.c.b8 %v3632, %v3631
        %v3634 = vpack.c.b16 %v3555, %v3555
        %v3635 = vpack.c.b8 %v3634, %v3634
        %3636 = vst [vmem:[%s187] sm:$0xff] %v3558
        %3637 = vst [vmem:[%s187 + $0x8] sm:$0xff] %v3561
        %3638 = vst [vmem:[%s187 + $0x10] sm:$0xff] %v3564
        %3639 = vst [vmem:[%s187 + $0x18] sm:$0xff] %v3567
        %3640 = vst [vmem:[%s187 + $0x20] sm:$0xff] %v3570
        %3641 = vst [vmem:[%s187 + $0x28] sm:$0xff] %v3573
        %3642 = vst [vmem:[%s187 + $0x30] sm:$0x3] %v3575
        %3643 = vst [vmem:[%s187 + $0x32] sm:$0xff] %v3578
        %3644 = vst [vmem:[%s187 + $0x3a] sm:$0xff] %v3581
        %3645 = vst [vmem:[%s187 + $0x42] sm:$0xff] %v3584
        %3646 = vst [vmem:[%s187 + $0x4a] sm:$0xff] %v3587
        %3647 = vst [vmem:[%s187 + $0x52] sm:$0xff] %v3590
        %3648 = vst [vmem:[%s187 + $0x5a] sm:$0xff] %v3593
        %3649 = vst [vmem:[%s187 + $0x62] sm:$0x3] %v3595
        %3650 = vst [vmem:[%s187 + $0x64] sm:$0xff] %v3598
        %3651 = vst [vmem:[%s187 + $0x6c] sm:$0xff] %v3601
        %3652 = vst [vmem:[%s187 + $0x74] sm:$0xff] %v3604
        %3653 = vst [vmem:[%s187 + $0x7c] sm:$0xff] %v3607
        %3654 = vst [vmem:[%s187 + $0x84] sm:$0xff] %v3610
        %3655 = vst [vmem:[%s187 + $0x8c] sm:$0xff] %v3613
        %3656 = vst [vmem:[%s187 + $0x94] sm:$0x3] %v3615
        %3657 = vst [vmem:[%s187 + $0x96] sm:$0xff] %v3618
        %3658 = vst [vmem:[%s187 + $0x9e] sm:$0xff] %v3621
        %3659 = vst [vmem:[%s187 + $0xa6] sm:$0xff] %v3624
        %3660 = vst [vmem:[%s187 + $0xae] sm:$0xff] %v3627
        %3661 = vst [vmem:[%s187 + $0xb6] sm:$0xff] %v3630
        %3662 = vst [vmem:[%s187 + $0xbe] sm:$0xff] %v3633
        %3663 = vst [vmem:[%s187 + $0xc6] sm:$0x3] %v3635
        %s3664 = sand.u32 %s67, 1
        %s3665 = sand.u32 %s67, 1
        %s3666 = smul.addr %s3665, 1600
        %s3667 = scalar_lea.vmem [#allocation6], %s3666
        %s3668 = smul.u32 4, %s17
        %p3669 = scmp.lt.s32.totalorder %s3668, 27
        %s3670 = scalar_select %p3669, %s3668, 27
        %s3671 = smul.addr %s3670, 25
        %s3672 = smul.addr %s3671, 2
        %s3673 = scalar_lea.vmem %s3, %s3672
        // Predicated region
        $region37: #{vox2pix_pallas.1} parent=27 // pred_check
          %p3674 = pneg %p77
        $region38: #{vox2pix_pallas.1} parent=27 // pred_check_branch
          %3676 = sbr.rel (%p3674) target = $region40
        $region39: #{vox2pix_pallas.1} parent=27 // pred_region
          %s3677 = smul.u32 4, %s17
          %s3678 = smul.addr %s3677, 25
          %s3679 = smul.addr %s3678, 8
          %s3680 = scalar_lea.vmem %s2, %s3679
          // Predicated region
          $region41: #{vox2pix_pallas.1} parent=39 // pred_check
            _
          $region42: #{vox2pix_pallas.1} parent=39 // pred_check_branch
            %3682 = sbr.rel (0) target = $region44
          $region43: #{vox2pix_pallas.1} parent=39 // pred_region
            // Predicated region
            $region45: #{vox2pix_pallas.1} parent=43 // pred_check
              _
            $region46: #{vox2pix_pallas.1} parent=43 // pred_check_branch
              %3684 = sbr.rel (0) target = $region48
            $region47: #{vox2pix_pallas.1} parent=43 // pred_region
              loop: start=0, step=1, limit=1
              $region49: #{vox2pix_pallas.1} parent=47 // loop_pre_header
                _
              $region50: #{vox2pix_pallas.1} parent=47 // loop_header
                %s3686 = sphi 0, %s3690
                %p3687 = scmp.ge.s32.totalorder %s3686, 1
                %s3691 = sphi %s3667, %s3667
                %s3692 = sphi %s3680, %s3680
              $region51: #{vox2pix_pallas.1} parent=47 // loop_header_branch
                %3689 = sbr.rel (%p3687) target = $region55
              $region52: #{vox2pix_pallas.1} parent=47 // loop_body
                %v3693 = vld [vmem:[%s3691] sm:$0xff]
                %3694 = vst [vmem:[%s3692] sm:$0xff] %v3693
                %v3695 = vld [vmem:[%s3691 + $0x8] sm:$0xff]
                %3696 = vst [vmem:[%s3692 + $0x8] sm:$0xff] %v3695
                %v3697 = vld [vmem:[%s3691 + $0x10] sm:$0xff]
                %3698 = vst [vmem:[%s3692 + $0x10] sm:$0xff] %v3697
                %v3699 = vld [vmem:[%s3691 + $0x18] sm:$0xff]
                %3700 = vst [vmem:[%s3692 + $0x18] sm:$0xff] %v3699
                %v3701 = vld [vmem:[%s3691 + $0x20] sm:$0xff]
                %3702 = vst [vmem:[%s3692 + $0x20] sm:$0xff] %v3701
                %v3703 = vld [vmem:[%s3691 + $0x28] sm:$0xff]
                %3704 = vst [vmem:[%s3692 + $0x28] sm:$0xff] %v3703
                %v3705 = vld [vmem:[%s3691 + $0x30] sm:$0xff]
                %3706 = vst [vmem:[%s3692 + $0x30] sm:$0xff] %v3705
                %v3707 = vld [vmem:[%s3691 + $0x38] sm:$0xff]
                %3708 = vst [vmem:[%s3692 + $0x38] sm:$0xff] %v3707
                %v3709 = vld [vmem:[%s3691 + $0x40] sm:$0xff]
                %3710 = vst [vmem:[%s3692 + $0x40] sm:$0xff] %v3709
                %v3711 = vld [vmem:[%s3691 + $0x48] sm:$0xff]
                %3712 = vst [vmem:[%s3692 + $0x48] sm:$0xff] %v3711
                %v3713 = vld [vmem:[%s3691 + $0x50] sm:$0xff]
                %3714 = vst [vmem:[%s3692 + $0x50] sm:$0xff] %v3713
                %v3715 = vld [vmem:[%s3691 + $0x58] sm:$0xff]
                %3716 = vst [vmem:[%s3692 + $0x58] sm:$0xff] %v3715
                %v3717 = vld [vmem:[%s3691 + $0x60] sm:$0xff]
                %3718 = vst [vmem:[%s3692 + $0x60] sm:$0xff] %v3717
                %v3719 = vld [vmem:[%s3691 + $0x68] sm:$0xff]
                %3720 = vst [vmem:[%s3692 + $0x68] sm:$0xff] %v3719
                %v3721 = vld [vmem:[%s3691 + $0x70] sm:$0xff]
                %3722 = vst [vmem:[%s3692 + $0x70] sm:$0xff] %v3721
                %v3723 = vld [vmem:[%s3691 + $0x78] sm:$0xff]
                %3724 = vst [vmem:[%s3692 + $0x78] sm:$0xff] %v3723
                %v3725 = vld [vmem:[%s3691 + $0x80] sm:$0xff]
                %3726 = vst [vmem:[%s3692 + $0x80] sm:$0xff] %v3725
                %v3727 = vld [vmem:[%s3691 + $0x88] sm:$0xff]
                %3728 = vst [vmem:[%s3692 + $0x88] sm:$0xff] %v3727
                %v3729 = vld [vmem:[%s3691 + $0x90] sm:$0xff]
                %3730 = vst [vmem:[%s3692 + $0x90] sm:$0xff] %v3729
                %v3731 = vld [vmem:[%s3691 + $0x98] sm:$0xff]
                %3732 = vst [vmem:[%s3692 + $0x98] sm:$0xff] %v3731
                %v3733 = vld [vmem:[%s3691 + $0xa0] sm:$0xff]
                %3734 = vst [vmem:[%s3692 + $0xa0] sm:$0xff] %v3733
                %v3735 = vld [vmem:[%s3691 + $0xa8] sm:$0xff]
                %3736 = vst [vmem:[%s3692 + $0xa8] sm:$0xff] %v3735
                %v3737 = vld [vmem:[%s3691 + $0xb0] sm:$0xff]
                %3738 = vst [vmem:[%s3692 + $0xb0] sm:$0xff] %v3737
                %v3739 = vld [vmem:[%s3691 + $0xb8] sm:$0xff]
                %3740 = vst [vmem:[%s3692 + $0xb8] sm:$0xff] %v3739
                %v3741 = vld [vmem:[%s3691 + $0xc0] sm:$0xff]
                %3742 = vst [vmem:[%s3692 + $0xc0] sm:$0xff] %v3741
                %v3743 = vld [vmem:[%s3691 + $0xc8] sm:$0xff]
                %3744 = vst [vmem:[%s3692 + $0xc8] sm:$0xff] %v3743
                %v3745 = vld [vmem:[%s3691 + $0xd0] sm:$0xff]
                %3746 = vst [vmem:[%s3692 + $0xd0] sm:$0xff] %v3745
                %v3747 = vld [vmem:[%s3691 + $0xd8] sm:$0xff]
                %3748 = vst [vmem:[%s3692 + $0xd8] sm:$0xff] %v3747
                %v3749 = vld [vmem:[%s3691 + $0xe0] sm:$0xff]
                %3750 = vst [vmem:[%s3692 + $0xe0] sm:$0xff] %v3749
                %v3751 = vld [vmem:[%s3691 + $0xe8] sm:$0xff]
                %3752 = vst [vmem:[%s3692 + $0xe8] sm:$0xff] %v3751
                %v3753 = vld [vmem:[%s3691 + $0xf0] sm:$0xff]
                %3754 = vst [vmem:[%s3692 + $0xf0] sm:$0xff] %v3753
                %v3755 = vld [vmem:[%s3691 + $0xf8] sm:$0xff]
                %3756 = vst [vmem:[%s3692 + $0xf8] sm:$0xff] %v3755
                %v3757 = vld [vmem:[%s3691 + $0x100] sm:$0xff]
                %3758 = vst [vmem:[%s3692 + $0x100] sm:$0xff] %v3757
                %v3759 = vld [vmem:[%s3691 + $0x108] sm:$0xff]
                %3760 = vst [vmem:[%s3692 + $0x108] sm:$0xff] %v3759
                %v3761 = vld [vmem:[%s3691 + $0x110] sm:$0xff]
                %3762 = vst [vmem:[%s3692 + $0x110] sm:$0xff] %v3761
                %v3763 = vld [vmem:[%s3691 + $0x118] sm:$0xff]
                %3764 = vst [vmem:[%s3692 + $0x118] sm:$0xff] %v3763
                %v3765 = vld [vmem:[%s3691 + $0x120] sm:$0xff]
                %3766 = vst [vmem:[%s3692 + $0x120] sm:$0xff] %v3765
                %v3767 = vld [vmem:[%s3691 + $0x128] sm:$0xff]
                %3768 = vst [vmem:[%s3692 + $0x128] sm:$0xff] %v3767
                %v3769 = vld [vmem:[%s3691 + $0x130] sm:$0xff]
                %3770 = vst [vmem:[%s3692 + $0x130] sm:$0xff] %v3769
                %v3771 = vld [vmem:[%s3691 + $0x138] sm:$0xff]
                %3772 = vst [vmem:[%s3692 + $0x138] sm:$0xff] %v3771
                %v3773 = vld [vmem:[%s3691 + $0x140] sm:$0xff]
                %3774 = vst [vmem:[%s3692 + $0x140] sm:$0xff] %v3773
                %v3775 = vld [vmem:[%s3691 + $0x148] sm:$0xff]
                %3776 = vst [vmem:[%s3692 + $0x148] sm:$0xff] %v3775
                %v3777 = vld [vmem:[%s3691 + $0x150] sm:$0xff]
                %3778 = vst [vmem:[%s3692 + $0x150] sm:$0xff] %v3777
                %v3779 = vld [vmem:[%s3691 + $0x158] sm:$0xff]
                %3780 = vst [vmem:[%s3692 + $0x158] sm:$0xff] %v3779
                %v3781 = vld [vmem:[%s3691 + $0x160] sm:$0xff]
                %3782 = vst [vmem:[%s3692 + $0x160] sm:$0xff] %v3781
                %v3783 = vld [vmem:[%s3691 + $0x168] sm:$0xff]
                %3784 = vst [vmem:[%s3692 + $0x168] sm:$0xff] %v3783
                %v3785 = vld [vmem:[%s3691 + $0x170] sm:$0xff]
                %3786 = vst [vmem:[%s3692 + $0x170] sm:$0xff] %v3785
                %v3787 = vld [vmem:[%s3691 + $0x178] sm:$0xff]
                %3788 = vst [vmem:[%s3692 + $0x178] sm:$0xff] %v3787
                %v3789 = vld [vmem:[%s3691 + $0x180] sm:$0xff]
                %3790 = vst [vmem:[%s3692 + $0x180] sm:$0xff] %v3789
                %v3791 = vld [vmem:[%s3691 + $0x188] sm:$0xff]
                %3792 = vst [vmem:[%s3692 + $0x188] sm:$0xff] %v3791
                %v3793 = vld [vmem:[%s3691 + $0x190] sm:$0xff]
                %3794 = vst [vmem:[%s3692 + $0x190] sm:$0xff] %v3793
                %v3795 = vld [vmem:[%s3691 + $0x198] sm:$0xff]
                %3796 = vst [vmem:[%s3692 + $0x198] sm:$0xff] %v3795
                %v3797 = vld [vmem:[%s3691 + $0x1a0] sm:$0xff]
                %3798 = vst [vmem:[%s3692 + $0x1a0] sm:$0xff] %v3797
                %v3799 = vld [vmem:[%s3691 + $0x1a8] sm:$0xff]
                %3800 = vst [vmem:[%s3692 + $0x1a8] sm:$0xff] %v3799
                %v3801 = vld [vmem:[%s3691 + $0x1b0] sm:$0xff]
                %3802 = vst [vmem:[%s3692 + $0x1b0] sm:$0xff] %v3801
                %v3803 = vld [vmem:[%s3691 + $0x1b8] sm:$0xff]
                %3804 = vst [vmem:[%s3692 + $0x1b8] sm:$0xff] %v3803
                %v3805 = vld [vmem:[%s3691 + $0x1c0] sm:$0xff]
                %3806 = vst [vmem:[%s3692 + $0x1c0] sm:$0xff] %v3805
                %v3807 = vld [vmem:[%s3691 + $0x1c8] sm:$0xff]
                %3808 = vst [vmem:[%s3692 + $0x1c8] sm:$0xff] %v3807
                %v3809 = vld [vmem:[%s3691 + $0x1d0] sm:$0xff]
                %3810 = vst [vmem:[%s3692 + $0x1d0] sm:$0xff] %v3809
                %v3811 = vld [vmem:[%s3691 + $0x1d8] sm:$0xff]
                %3812 = vst [vmem:[%s3692 + $0x1d8] sm:$0xff] %v3811
                %v3813 = vld [vmem:[%s3691 + $0x1e0] sm:$0xff]
                %3814 = vst [vmem:[%s3692 + $0x1e0] sm:$0xff] %v3813
                %v3815 = vld [vmem:[%s3691 + $0x1e8] sm:$0xff]
                %3816 = vst [vmem:[%s3692 + $0x1e8] sm:$0xff] %v3815
                %v3817 = vld [vmem:[%s3691 + $0x1f0] sm:$0xff]
                %3818 = vst [vmem:[%s3692 + $0x1f0] sm:$0xff] %v3817
                %v3819 = vld [vmem:[%s3691 + $0x1f8] sm:$0xff]
                %3820 = vst [vmem:[%s3692 + $0x1f8] sm:$0xff] %v3819
                %v3821 = vld [vmem:[%s3691 + $0x200] sm:$0xff]
                %3822 = vst [vmem:[%s3692 + $0x200] sm:$0xff] %v3821
                %v3823 = vld [vmem:[%s3691 + $0x208] sm:$0xff]
                %3824 = vst [vmem:[%s3692 + $0x208] sm:$0xff] %v3823
                %v3825 = vld [vmem:[%s3691 + $0x210] sm:$0xff]
                %3826 = vst [vmem:[%s3692 + $0x210] sm:$0xff] %v3825
                %v3827 = vld [vmem:[%s3691 + $0x218] sm:$0xff]
                %3828 = vst [vmem:[%s3692 + $0x218] sm:$0xff] %v3827
                %v3829 = vld [vmem:[%s3691 + $0x220] sm:$0xff]
                %3830 = vst [vmem:[%s3692 + $0x220] sm:$0xff] %v3829
                %v3831 = vld [vmem:[%s3691 + $0x228] sm:$0xff]
                %3832 = vst [vmem:[%s3692 + $0x228] sm:$0xff] %v3831
                %v3833 = vld [vmem:[%s3691 + $0x230] sm:$0xff]
                %3834 = vst [vmem:[%s3692 + $0x230] sm:$0xff] %v3833
                %v3835 = vld [vmem:[%s3691 + $0x238] sm:$0xff]
                %3836 = vst [vmem:[%s3692 + $0x238] sm:$0xff] %v3835
                %v3837 = vld [vmem:[%s3691 + $0x240] sm:$0xff]
                %3838 = vst [vmem:[%s3692 + $0x240] sm:$0xff] %v3837
                %v3839 = vld [vmem:[%s3691 + $0x248] sm:$0xff]
                %3840 = vst [vmem:[%s3692 + $0x248] sm:$0xff] %v3839
                %v3841 = vld [vmem:[%s3691 + $0x250] sm:$0xff]
                %3842 = vst [vmem:[%s3692 + $0x250] sm:$0xff] %v3841
                %v3843 = vld [vmem:[%s3691 + $0x258] sm:$0xff]
                %3844 = vst [vmem:[%s3692 + $0x258] sm:$0xff] %v3843
                %v3845 = vld [vmem:[%s3691 + $0x260] sm:$0xff]
                %3846 = vst [vmem:[%s3692 + $0x260] sm:$0xff] %v3845
                %v3847 = vld [vmem:[%s3691 + $0x268] sm:$0xff]
                %3848 = vst [vmem:[%s3692 + $0x268] sm:$0xff] %v3847
                %v3849 = vld [vmem:[%s3691 + $0x270] sm:$0xff]
                %3850 = vst [vmem:[%s3692 + $0x270] sm:$0xff] %v3849
                %v3851 = vld [vmem:[%s3691 + $0x278] sm:$0xff]
                %3852 = vst [vmem:[%s3692 + $0x278] sm:$0xff] %v3851
                %v3853 = vld [vmem:[%s3691 + $0x280] sm:$0xff]
                %3854 = vst [vmem:[%s3692 + $0x280] sm:$0xff] %v3853
                %v3855 = vld [vmem:[%s3691 + $0x288] sm:$0xff]
                %3856 = vst [vmem:[%s3692 + $0x288] sm:$0xff] %v3855
                %v3857 = vld [vmem:[%s3691 + $0x290] sm:$0xff]
                %3858 = vst [vmem:[%s3692 + $0x290] sm:$0xff] %v3857
                %v3859 = vld [vmem:[%s3691 + $0x298] sm:$0xff]
                %3860 = vst [vmem:[%s3692 + $0x298] sm:$0xff] %v3859
                %v3861 = vld [vmem:[%s3691 + $0x2a0] sm:$0xff]
                %3862 = vst [vmem:[%s3692 + $0x2a0] sm:$0xff] %v3861
                %v3863 = vld [vmem:[%s3691 + $0x2a8] sm:$0xff]
                %3864 = vst [vmem:[%s3692 + $0x2a8] sm:$0xff] %v3863
                %v3865 = vld [vmem:[%s3691 + $0x2b0] sm:$0xff]
                %3866 = vst [vmem:[%s3692 + $0x2b0] sm:$0xff] %v3865
                %v3867 = vld [vmem:[%s3691 + $0x2b8] sm:$0xff]
                %3868 = vst [vmem:[%s3692 + $0x2b8] sm:$0xff] %v3867
                %v3869 = vld [vmem:[%s3691 + $0x2c0] sm:$0xff]
                %3870 = vst [vmem:[%s3692 + $0x2c0] sm:$0xff] %v3869
                %v3871 = vld [vmem:[%s3691 + $0x2c8] sm:$0xff]
                %3872 = vst [vmem:[%s3692 + $0x2c8] sm:$0xff] %v3871
                %v3873 = vld [vmem:[%s3691 + $0x2d0] sm:$0xff]
                %3874 = vst [vmem:[%s3692 + $0x2d0] sm:$0xff] %v3873
                %v3875 = vld [vmem:[%s3691 + $0x2d8] sm:$0xff]
                %3876 = vst [vmem:[%s3692 + $0x2d8] sm:$0xff] %v3875
                %v3877 = vld [vmem:[%s3691 + $0x2e0] sm:$0xff]
                %3878 = vst [vmem:[%s3692 + $0x2e0] sm:$0xff] %v3877
                %v3879 = vld [vmem:[%s3691 + $0x2e8] sm:$0xff]
                %3880 = vst [vmem:[%s3692 + $0x2e8] sm:$0xff] %v3879
                %v3881 = vld [vmem:[%s3691 + $0x2f0] sm:$0xff]
                %3882 = vst [vmem:[%s3692 + $0x2f0] sm:$0xff] %v3881
                %v3883 = vld [vmem:[%s3691 + $0x2f8] sm:$0xff]
                %3884 = vst [vmem:[%s3692 + $0x2f8] sm:$0xff] %v3883
                %v3885 = vld [vmem:[%s3691 + $0x300] sm:$0xff]
                %3886 = vst [vmem:[%s3692 + $0x300] sm:$0xff] %v3885
                %v3887 = vld [vmem:[%s3691 + $0x308] sm:$0xff]
                %3888 = vst [vmem:[%s3692 + $0x308] sm:$0xff] %v3887
                %v3889 = vld [vmem:[%s3691 + $0x310] sm:$0xff]
                %3890 = vst [vmem:[%s3692 + $0x310] sm:$0xff] %v3889
                %v3891 = vld [vmem:[%s3691 + $0x318] sm:$0xff]
                %3892 = vst [vmem:[%s3692 + $0x318] sm:$0xff] %v3891
                %v3893 = vld [vmem:[%s3691 + $0x320] sm:$0xff]
                %3894 = vst [vmem:[%s3692 + $0x15e0] sm:$0xff] %v3893
                %v3895 = vld [vmem:[%s3691 + $0x328] sm:$0xff]
                %3896 = vst [vmem:[%s3692 + $0x15e8] sm:$0xff] %v3895
                %v3897 = vld [vmem:[%s3691 + $0x330] sm:$0xff]
                %3898 = vst [vmem:[%s3692 + $0x15f0] sm:$0xff] %v3897
                %v3899 = vld [vmem:[%s3691 + $0x338] sm:$0xff]
                %3900 = vst [vmem:[%s3692 + $0x15f8] sm:$0xff] %v3899
                %v3901 = vld [vmem:[%s3691 + $0x340] sm:$0xff]
                %3902 = vst [vmem:[%s3692 + $0x1600] sm:$0xff] %v3901
                %v3903 = vld [vmem:[%s3691 + $0x348] sm:$0xff]
                %3904 = vst [vmem:[%s3692 + $0x1608] sm:$0xff] %v3903
                %v3905 = vld [vmem:[%s3691 + $0x350] sm:$0xff]
                %3906 = vst [vmem:[%s3692 + $0x1610] sm:$0xff] %v3905
                %v3907 = vld [vmem:[%s3691 + $0x358] sm:$0xff]
                %3908 = vst [vmem:[%s3692 + $0x1618] sm:$0xff] %v3907
                %v3909 = vld [vmem:[%s3691 + $0x360] sm:$0xff]
                %3910 = vst [vmem:[%s3692 + $0x1620] sm:$0xff] %v3909
                %v3911 = vld [vmem:[%s3691 + $0x368] sm:$0xff]
                %3912 = vst [vmem:[%s3692 + $0x1628] sm:$0xff] %v3911
                %v3913 = vld [vmem:[%s3691 + $0x370] sm:$0xff]
                %3914 = vst [vmem:[%s3692 + $0x1630] sm:$0xff] %v3913
                %v3915 = vld [vmem:[%s3691 + $0x378] sm:$0xff]
                %3916 = vst [vmem:[%s3692 + $0x1638] sm:$0xff] %v3915
                %v3917 = vld [vmem:[%s3691 + $0x380] sm:$0xff]
                %3918 = vst [vmem:[%s3692 + $0x1640] sm:$0xff] %v3917
                %v3919 = vld [vmem:[%s3691 + $0x388] sm:$0xff]
                %3920 = vst [vmem:[%s3692 + $0x1648] sm:$0xff] %v3919
                %v3921 = vld [vmem:[%s3691 + $0x390] sm:$0xff]
                %3922 = vst [vmem:[%s3692 + $0x1650] sm:$0xff] %v3921
                %v3923 = vld [vmem:[%s3691 + $0x398] sm:$0xff]
                %3924 = vst [vmem:[%s3692 + $0x1658] sm:$0xff] %v3923
                %v3925 = vld [vmem:[%s3691 + $0x3a0] sm:$0xff]
                %3926 = vst [vmem:[%s3692 + $0x1660] sm:$0xff] %v3925
                %v3927 = vld [vmem:[%s3691 + $0x3a8] sm:$0xff]
                %3928 = vst [vmem:[%s3692 + $0x1668] sm:$0xff] %v3927
                %v3929 = vld [vmem:[%s3691 + $0x3b0] sm:$0xff]
                %3930 = vst [vmem:[%s3692 + $0x1670] sm:$0xff] %v3929
                %v3931 = vld [vmem:[%s3691 + $0x3b8] sm:$0xff]
                %3932 = vst [vmem:[%s3692 + $0x1678] sm:$0xff] %v3931
                %v3933 = vld [vmem:[%s3691 + $0x3c0] sm:$0xff]
                %3934 = vst [vmem:[%s3692 + $0x1680] sm:$0xff] %v3933
                %v3935 = vld [vmem:[%s3691 + $0x3c8] sm:$0xff]
                %3936 = vst [vmem:[%s3692 + $0x1688] sm:$0xff] %v3935
                %v3937 = vld [vmem:[%s3691 + $0x3d0] sm:$0xff]
                %3938 = vst [vmem:[%s3692 + $0x1690] sm:$0xff] %v3937
                %v3939 = vld [vmem:[%s3691 + $0x3d8] sm:$0xff]
                %3940 = vst [vmem:[%s3692 + $0x1698] sm:$0xff] %v3939
                %v3941 = vld [vmem:[%s3691 + $0x3e0] sm:$0xff]
                %3942 = vst [vmem:[%s3692 + $0x16a0] sm:$0xff] %v3941
                %v3943 = vld [vmem:[%s3691 + $0x3e8] sm:$0xff]
                %3944 = vst [vmem:[%s3692 + $0x16a8] sm:$0xff] %v3943
                %v3945 = vld [vmem:[%s3691 + $0x3f0] sm:$0xff]
                %3946 = vst [vmem:[%s3692 + $0x16b0] sm:$0xff] %v3945
                %v3947 = vld [vmem:[%s3691 + $0x3f8] sm:$0xff]
                %3948 = vst [vmem:[%s3692 + $0x16b8] sm:$0xff] %v3947
                %v3949 = vld [vmem:[%s3691 + $0x400] sm:$0xff]
                %3950 = vst [vmem:[%s3692 + $0x16c0] sm:$0xff] %v3949
                %v3951 = vld [vmem:[%s3691 + $0x408] sm:$0xff]
                %3952 = vst [vmem:[%s3692 + $0x16c8] sm:$0xff] %v3951
                %v3953 = vld [vmem:[%s3691 + $0x410] sm:$0xff]
                %3954 = vst [vmem:[%s3692 + $0x16d0] sm:$0xff] %v3953
                %v3955 = vld [vmem:[%s3691 + $0x418] sm:$0xff]
                %3956 = vst [vmem:[%s3692 + $0x16d8] sm:$0xff] %v3955
                %v3957 = vld [vmem:[%s3691 + $0x420] sm:$0xff]
                %3958 = vst [vmem:[%s3692 + $0x16e0] sm:$0xff] %v3957
                %v3959 = vld [vmem:[%s3691 + $0x428] sm:$0xff]
                %3960 = vst [vmem:[%s3692 + $0x16e8] sm:$0xff] %v3959
                %v3961 = vld [vmem:[%s3691 + $0x430] sm:$0xff]
                %3962 = vst [vmem:[%s3692 + $0x16f0] sm:$0xff] %v3961
                %v3963 = vld [vmem:[%s3691 + $0x438] sm:$0xff]
                %3964 = vst [vmem:[%s3692 + $0x16f8] sm:$0xff] %v3963
                %v3965 = vld [vmem:[%s3691 + $0x440] sm:$0xff]
                %3966 = vst [vmem:[%s3692 + $0x1700] sm:$0xff] %v3965
                %v3967 = vld [vmem:[%s3691 + $0x448] sm:$0xff]
                %3968 = vst [vmem:[%s3692 + $0x1708] sm:$0xff] %v3967
                %v3969 = vld [vmem:[%s3691 + $0x450] sm:$0xff]
                %3970 = vst [vmem:[%s3692 + $0x1710] sm:$0xff] %v3969
                %v3971 = vld [vmem:[%s3691 + $0x458] sm:$0xff]
                %3972 = vst [vmem:[%s3692 + $0x1718] sm:$0xff] %v3971
                %v3973 = vld [vmem:[%s3691 + $0x460] sm:$0xff]
                %3974 = vst [vmem:[%s3692 + $0x1720] sm:$0xff] %v3973
                %v3975 = vld [vmem:[%s3691 + $0x468] sm:$0xff]
                %3976 = vst [vmem:[%s3692 + $0x1728] sm:$0xff] %v3975
                %v3977 = vld [vmem:[%s3691 + $0x470] sm:$0xff]
                %3978 = vst [vmem:[%s3692 + $0x1730] sm:$0xff] %v3977
                %v3979 = vld [vmem:[%s3691 + $0x478] sm:$0xff]
                %3980 = vst [vmem:[%s3692 + $0x1738] sm:$0xff] %v3979
                %v3981 = vld [vmem:[%s3691 + $0x480] sm:$0xff]
                %3982 = vst [vmem:[%s3692 + $0x1740] sm:$0xff] %v3981
                %v3983 = vld [vmem:[%s3691 + $0x488] sm:$0xff]
                %3984 = vst [vmem:[%s3692 + $0x1748] sm:$0xff] %v3983
                %v3985 = vld [vmem:[%s3691 + $0x490] sm:$0xff]
                %3986 = vst [vmem:[%s3692 + $0x1750] sm:$0xff] %v3985
                %v3987 = vld [vmem:[%s3691 + $0x498] sm:$0xff]
                %3988 = vst [vmem:[%s3692 + $0x1758] sm:$0xff] %v3987
                %v3989 = vld [vmem:[%s3691 + $0x4a0] sm:$0xff]
                %3990 = vst [vmem:[%s3692 + $0x1760] sm:$0xff] %v3989
                %v3991 = vld [vmem:[%s3691 + $0x4a8] sm:$0xff]
                %3992 = vst [vmem:[%s3692 + $0x1768] sm:$0xff] %v3991
                %v3993 = vld [vmem:[%s3691 + $0x4b0] sm:$0xff]
                %3994 = vst [vmem:[%s3692 + $0x1770] sm:$0xff] %v3993
                %v3995 = vld [vmem:[%s3691 + $0x4b8] sm:$0xff]
                %3996 = vst [vmem:[%s3692 + $0x1778] sm:$0xff] %v3995
                %v3997 = vld [vmem:[%s3691 + $0x4c0] sm:$0xff]
                %3998 = vst [vmem:[%s3692 + $0x1780] sm:$0xff] %v3997
                %v3999 = vld [vmem:[%s3691 + $0x4c8] sm:$0xff]
                %4000 = vst [vmem:[%s3692 + $0x1788] sm:$0xff] %v3999
                %v4001 = vld [vmem:[%s3691 + $0x4d0] sm:$0xff]
                %4002 = vst [vmem:[%s3692 + $0x1790] sm:$0xff] %v4001
                %v4003 = vld [vmem:[%s3691 + $0x4d8] sm:$0xff]
                %4004 = vst [vmem:[%s3692 + $0x1798] sm:$0xff] %v4003
                %v4005 = vld [vmem:[%s3691 + $0x4e0] sm:$0xff]
                %4006 = vst [vmem:[%s3692 + $0x17a0] sm:$0xff] %v4005
                %v4007 = vld [vmem:[%s3691 + $0x4e8] sm:$0xff]
                %4008 = vst [vmem:[%s3692 + $0x17a8] sm:$0xff] %v4007
                %v4009 = vld [vmem:[%s3691 + $0x4f0] sm:$0xff]
                %4010 = vst [vmem:[%s3692 + $0x17b0] sm:$0xff] %v4009
                %v4011 = vld [vmem:[%s3691 + $0x4f8] sm:$0xff]
                %4012 = vst [vmem:[%s3692 + $0x17b8] sm:$0xff] %v4011
                %v4013 = vld [vmem:[%s3691 + $0x500] sm:$0xff]
                %4014 = vst [vmem:[%s3692 + $0x17c0] sm:$0xff] %v4013
                %v4015 = vld [vmem:[%s3691 + $0x508] sm:$0xff]
                %4016 = vst [vmem:[%s3692 + $0x17c8] sm:$0xff] %v4015
                %v4017 = vld [vmem:[%s3691 + $0x510] sm:$0xff]
                %4018 = vst [vmem:[%s3692 + $0x17d0] sm:$0xff] %v4017
                %v4019 = vld [vmem:[%s3691 + $0x518] sm:$0xff]
                %4020 = vst [vmem:[%s3692 + $0x17d8] sm:$0xff] %v4019
                %v4021 = vld [vmem:[%s3691 + $0x520] sm:$0xff]
                %4022 = vst [vmem:[%s3692 + $0x17e0] sm:$0xff] %v4021
                %v4023 = vld [vmem:[%s3691 + $0x528] sm:$0xff]
                %4024 = vst [vmem:[%s3692 + $0x17e8] sm:$0xff] %v4023
                %v4025 = vld [vmem:[%s3691 + $0x530] sm:$0xff]
                %4026 = vst [vmem:[%s3692 + $0x17f0] sm:$0xff] %v4025
                %v4027 = vld [vmem:[%s3691 + $0x538] sm:$0xff]
                %4028 = vst [vmem:[%s3692 + $0x17f8] sm:$0xff] %v4027
                %v4029 = vld [vmem:[%s3691 + $0x540] sm:$0xff]
                %4030 = vst [vmem:[%s3692 + $0x1800] sm:$0xff] %v4029
                %v4031 = vld [vmem:[%s3691 + $0x548] sm:$0xff]
                %4032 = vst [vmem:[%s3692 + $0x1808] sm:$0xff] %v4031
                %v4033 = vld [vmem:[%s3691 + $0x550] sm:$0xff]
                %4034 = vst [vmem:[%s3692 + $0x1810] sm:$0xff] %v4033
                %v4035 = vld [vmem:[%s3691 + $0x558] sm:$0xff]
                %4036 = vst [vmem:[%s3692 + $0x1818] sm:$0xff] %v4035
                %v4037 = vld [vmem:[%s3691 + $0x560] sm:$0xff]
                %4038 = vst [vmem:[%s3692 + $0x1820] sm:$0xff] %v4037
                %v4039 = vld [vmem:[%s3691 + $0x568] sm:$0xff]
                %4040 = vst [vmem:[%s3692 + $0x1828] sm:$0xff] %v4039
                %v4041 = vld [vmem:[%s3691 + $0x570] sm:$0xff]
                %4042 = vst [vmem:[%s3692 + $0x1830] sm:$0xff] %v4041
                %v4043 = vld [vmem:[%s3691 + $0x578] sm:$0xff]
                %4044 = vst [vmem:[%s3692 + $0x1838] sm:$0xff] %v4043
                %v4045 = vld [vmem:[%s3691 + $0x580] sm:$0xff]
                %4046 = vst [vmem:[%s3692 + $0x1840] sm:$0xff] %v4045
                %v4047 = vld [vmem:[%s3691 + $0x588] sm:$0xff]
                %4048 = vst [vmem:[%s3692 + $0x1848] sm:$0xff] %v4047
                %v4049 = vld [vmem:[%s3691 + $0x590] sm:$0xff]
                %4050 = vst [vmem:[%s3692 + $0x1850] sm:$0xff] %v4049
                %v4051 = vld [vmem:[%s3691 + $0x598] sm:$0xff]
                %4052 = vst [vmem:[%s3692 + $0x1858] sm:$0xff] %v4051
                %v4053 = vld [vmem:[%s3691 + $0x5a0] sm:$0xff]
                %4054 = vst [vmem:[%s3692 + $0x1860] sm:$0xff] %v4053
                %v4055 = vld [vmem:[%s3691 + $0x5a8] sm:$0xff]
                %4056 = vst [vmem:[%s3692 + $0x1868] sm:$0xff] %v4055
                %v4057 = vld [vmem:[%s3691 + $0x5b0] sm:$0xff]
                %4058 = vst [vmem:[%s3692 + $0x1870] sm:$0xff] %v4057
                %v4059 = vld [vmem:[%s3691 + $0x5b8] sm:$0xff]
                %4060 = vst [vmem:[%s3692 + $0x1878] sm:$0xff] %v4059
                %v4061 = vld [vmem:[%s3691 + $0x5c0] sm:$0xff]
                %4062 = vst [vmem:[%s3692 + $0x1880] sm:$0xff] %v4061
                %v4063 = vld [vmem:[%s3691 + $0x5c8] sm:$0xff]
                %4064 = vst [vmem:[%s3692 + $0x1888] sm:$0xff] %v4063
                %v4065 = vld [vmem:[%s3691 + $0x5d0] sm:$0xff]
                %4066 = vst [vmem:[%s3692 + $0x1890] sm:$0xff] %v4065
                %v4067 = vld [vmem:[%s3691 + $0x5d8] sm:$0xff]
                %4068 = vst [vmem:[%s3692 + $0x1898] sm:$0xff] %v4067
                %v4069 = vld [vmem:[%s3691 + $0x5e0] sm:$0xff]
                %4070 = vst [vmem:[%s3692 + $0x18a0] sm:$0xff] %v4069
                %v4071 = vld [vmem:[%s3691 + $0x5e8] sm:$0xff]
                %4072 = vst [vmem:[%s3692 + $0x18a8] sm:$0xff] %v4071
                %v4073 = vld [vmem:[%s3691 + $0x5f0] sm:$0xff]
                %4074 = vst [vmem:[%s3692 + $0x18b0] sm:$0xff] %v4073
                %v4075 = vld [vmem:[%s3691 + $0x5f8] sm:$0xff]
                %4076 = vst [vmem:[%s3692 + $0x18b8] sm:$0xff] %v4075
                %v4077 = vld [vmem:[%s3691 + $0x600] sm:$0xff]
                %4078 = vst [vmem:[%s3692 + $0x18c0] sm:$0xff] %v4077
                %v4079 = vld [vmem:[%s3691 + $0x608] sm:$0xff]
                %4080 = vst [vmem:[%s3692 + $0x18c8] sm:$0xff] %v4079
                %v4081 = vld [vmem:[%s3691 + $0x610] sm:$0xff]
                %4082 = vst [vmem:[%s3692 + $0x18d0] sm:$0xff] %v4081
                %v4083 = vld [vmem:[%s3691 + $0x618] sm:$0xff]
                %4084 = vst [vmem:[%s3692 + $0x18d8] sm:$0xff] %v4083
                %v4085 = vld [vmem:[%s3691 + $0x620] sm:$0xff]
                %4086 = vst [vmem:[%s3692 + $0x18e0] sm:$0xff] %v4085
                %v4087 = vld [vmem:[%s3691 + $0x628] sm:$0xff]
                %4088 = vst [vmem:[%s3692 + $0x18e8] sm:$0xff] %v4087
                %v4089 = vld [vmem:[%s3691 + $0x630] sm:$0xff]
                %4090 = vst [vmem:[%s3692 + $0x18f0] sm:$0xff] %v4089
                %v4091 = vld [vmem:[%s3691 + $0x638] sm:$0xff]
                %4092 = vst [vmem:[%s3692 + $0x18f8] sm:$0xff] %v4091
              $region53: #{vox2pix_pallas.1} parent=47 // loop_footer
                %s3690 = sadd.s32 1, %s3686
              $region54: #{vox2pix_pallas.1} parent=47 // loop_footer_branch
                %3685 = sbr.rel target = $region50
              $region55: #{vox2pix_pallas.1} parent=47 // loop_exit
                _
            $region48: #{vox2pix_pallas.1} parent=43 // pred_fallthru
              _
            // Predicated region
            $region56: #{vox2pix_pallas.1} parent=43 // pred_check
              _
            $region57: #{vox2pix_pallas.1} parent=43 // pred_check_branch
              %4094 = sbr.rel target = $region59
            $region58: #{vox2pix_pallas.1} parent=43 // pred_region
              _
            $region59: #{vox2pix_pallas.1} parent=43 // pred_fallthru
              _
          $region44: #{vox2pix_pallas.1} parent=39 // pred_fallthru
            _
          %4095 = vnop
        $region40: #{vox2pix_pallas.1} parent=27 // pred_fallthru
          _
        // Predicated region
        $region60: #{vox2pix_pallas.1} parent=27 // pred_check
          %p4096 = pneg %p103
        $region61: #{vox2pix_pallas.1} parent=27 // pred_check_branch
          %4098 = sbr.rel (%p4096) target = $region63
        $region62: #{vox2pix_pallas.1} parent=27 // pred_region
          %s4099 = smul.u32 4, %s17
        $region63: #{vox2pix_pallas.1} parent=27 // pred_fallthru
          _
      $region28: #{vox2pix_pallas.1} parent=5 // pred_fallthru
        _
      %p4100 = scmp.le.s32.totalorder 2, %s12
      // Predicated region
      $region64: #{vox2pix_pallas.1} parent=5 // pred_check
        %p4101 = pneg %p4100
      $region65: #{vox2pix_pallas.1} parent=5 // pred_check_branch
        %4103 = sbr.rel (%p4101) target = $region67
      $region66: #{vox2pix_pallas.1} parent=5 // pred_region
        %s4104 = ssub.s32 %s12, 2
        // Predicated region
        $region68: #{vox2pix_pallas.1} parent=66 // pred_check
          %p4105 = pneg %p83
        $region69: #{vox2pix_pallas.1} parent=66 // pred_check_branch
          %4107 = sbr.rel (%p4105) target = $region71
        $region70: #{vox2pix_pallas.1} parent=66 // pred_region
          %s4108 = sand.u32 %s68, 1
          %s4109 = sand.u32 %s68, 1
          %s4110 = smul.addr %s4109, 1600
          %s4111 = scalar_lea.vmem [#allocation6], %s4110
        $region71: #{vox2pix_pallas.1} parent=66 // pred_fallthru
          _
        // Predicated region
        $region72: #{vox2pix_pallas.1} parent=66 // pred_check
          %p4112 = pneg %p109
        $region73: #{vox2pix_pallas.1} parent=66 // pred_check_branch
          %4114 = sbr.rel (%p4112) target = $region75
        $region74: #{vox2pix_pallas.1} parent=66 // pred_region
          %s4115 = smul.u32 4, %s18
          %p4116 = scmp.lt.s32.totalorder %s4115, 27
          %s4117 = scalar_select %p4116, %s4115, 27
          %s4118 = smul.addr %s4117, 25
          %s4119 = smul.addr %s4118, 2
          %s4120 = scalar_lea.vmem %s3, %s4119
        $region75: #{vox2pix_pallas.1} parent=66 // pred_fallthru
          _
      $region67: #{vox2pix_pallas.1} parent=5 // pred_fallthru
        _
    $region6: #{vox2pix_pallas.1} parent=1 // loop_footer
      %s16 = sadd.s32 1, %s12
    $region7: #{vox2pix_pallas.1} parent=1 // loop_footer_branch
      %11 = sbr.rel target = $region3
    $region8: #{vox2pix_pallas.1} parent=1 // loop_exit
      _
    %4121 = vsyncpa [#allocation3], 1
    %s4122 = scalar_lea.sflag [#allocation3], 1
    %4123 = vsyncpa %s4122, 1
    %4124 = vsyncpa [#allocation5], 1

</llo_original>
